<compile_context>
chip_gen: v5e
topology: v5e:2x2
jax: 0.10.0
libtpu: 0.0.40
codegen_flags: <defaults>
</compile_context>

<pallas_src>
import functools

import jax
import jax.numpy as jnp
from jax.experimental import pallas as pl
from jax.experimental.pallas import tpu as pltpu


# ----------------------------------------------------------------------------
# Pallas kernels
# ----------------------------------------------------------------------------
def _mm_bias_tanh_kernel(a_ref, b_ref, bias_ref, o_ref, *, apply_tanh):
    acc = jnp.dot(a_ref[...], b_ref[...], preferred_element_type=jnp.float32)
    acc = acc + bias_ref[...]            # bias is (R,1) f32, broadcasts along lanes
    if apply_tanh:
        acc = jnp.tanh(acc)
    o_ref[...] = acc.astype(o_ref.dtype)


def _mm_kernel(a_ref, b_ref, o_ref):
    o_ref[...] = jnp.dot(a_ref[...], b_ref[...],
                         preferred_element_type=jnp.float32).astype(o_ref.dtype)


def pallas_matmul(a, b, bias=None, apply_tanh=False, col_tile=512):
    """O = (tanh)(a @ b + bias); a:(R,K), b:(K,C), bias:(R,1)|None -> (R,C) f32.

    Rows are never padded (full-extent blocks); only the lane (C) dimension is tiled,
    and only when C > col_tile. a/b go to the MXU in bf16, accumulation is f32.
    """
    R, K = a.shape
    K2, C = b.shape
    assert K == K2
    a = a.astype(jnp.bfloat16)
    b = b.astype(jnp.bfloat16)
    if C > col_tile:
        Cp = pl.cdiv(C, col_tile) * col_tile
        b = jnp.pad(b, ((0, 0), (0, Cp - C)))
        tc = col_tile
    else:
        Cp, tc = C, C

    in_specs = [pl.BlockSpec((R, K), lambda i: (0, 0)),
                pl.BlockSpec((K, tc), lambda i: (0, i))]
    args = [a, b]
    if bias is not None:
        in_specs.append(pl.BlockSpec((R, 1), lambda i: (0, 0)))
        args.append(bias.astype(jnp.float32).reshape(R, 1))
        kern = functools.partial(_mm_bias_tanh_kernel, apply_tanh=apply_tanh)
    else:
        assert not apply_tanh
        kern = _mm_kernel

    out = pl.pallas_call(
        kern,
        out_shape=jax.ShapeDtypeStruct((R, Cp), jnp.float32),
        grid_spec=pltpu.PrefetchScalarGridSpec(
            num_scalar_prefetch=0,
            grid=(Cp // tc,),
            in_specs=in_specs,
            out_specs=pl.BlockSpec((R, tc), lambda i: (0, i)),
        ),
        compiler_params=pltpu.CompilerParams(
            dimension_semantics=("parallel",),
            vmem_limit_bytes=32 * 1024 * 1024),
    )(*args)
    return out[:, :C] if Cp != C else out


def _middle_kernel(p3_ref, w3_ref, b3_ref, w1s_ref, b1_ref,
                   wd1s_ref, bd1s_ref, wd1m_ref, o_ref, *, batch):
    """Fused: convE3 (im2col matmul) + flatten + linearE1 + linearD1 + convD1 dense matmul."""
    # convE3: (4B,864) @ (864,64) + bias, tanh.  Rows ordered (spatial slot s major, batch minor).
    t = jnp.tanh(jnp.dot(p3_ref[...], w3_ref[...],
                         preferred_element_type=jnp.float32) + b3_ref[...])
    # linearE1 over the PyTorch NCHW-flattened vector, as 4 per-slot (B,64)@(64,5) matmuls.
    y = b1_ref[...]                                                    # (1, 5)
    for s in range(4):
        ts = t[s * batch:(s + 1) * batch, :]                           # (B, 64)
        y = y + jnp.dot(ts, w1s_ref[s], preferred_element_type=jnp.float32)
    # linearD1 + the dense matmul half of ConvTranspose2d #1, one decoder spatial slot at a time.
    for s in range(4):
        xs = jnp.dot(y, wd1s_ref[s], preferred_element_type=jnp.float32) + bd1s_ref[s]  # (B,64)
        zs = jnp.dot(xs, wd1m_ref[...], preferred_element_type=jnp.float32)             # (B,864)
        o_ref[s * batch:(s + 1) * batch, :] = zs


def fused_middle(p3, w3, b3, w1s, b1, wd1s, bd1s, wd1m, batch):
    M, N = p3.shape[0], wd1m.shape[1]

    def full(shape):
        return pl.BlockSpec(shape, lambda *_: (0,) * len(shape))

    return pl.pallas_call(
        functools.partial(_middle_kernel, batch=batch),
        out_shape=jax.ShapeDtypeStruct((M, N), jnp.float32),
        grid_spec=pltpu.PrefetchScalarGridSpec(
            num_scalar_prefetch=0,
            grid=(1,),
            in_specs=[full(p3.shape), full(w3.shape), full(b3.shape),
                      full(w1s.shape), full(b1.shape), full(wd1s.shape),
                      full(bd1s.shape), full(wd1m.shape)],
            out_specs=full((M, N)),
        ),
        compiler_params=pltpu.CompilerParams(
            dimension_semantics=("arbitrary",),
            vmem_limit_bytes=32 * 1024 * 1024),
    )(p3, w3, b3, w1s, b1, wd1s, bd1s, wd1m)


# ----------------------------------------------------------------------------
# Conv wrappers (layout plumbing in XLA, matmuls in Pallas)
# ----------------------------------------------------------------------------
def _im2col_taps(x, kh, kw, sh, sw):
    """x NHWC -> stacked tap slices (kh*kw, B, OH, OW, C)."""
    B, H, W, C = x.shape
    OH = (H - kh) // sh + 1
    OW = (W - kw) // sw + 1
    taps = [x[:, i:i + sh * (OH - 1) + 1:sh, j:j + sw * (OW - 1) + 1:sw, :]
            for i in range(kh) for j in range(kw)]
    return jnp.stack(taps, axis=0), OH, OW


def conv2d_enc(x, w_mat, bias, kh, kw, sh, sw):
    """Standard conv, x NHWC, w_mat (Cout, kh*kw*Cin); lane-dense (Cout, B*OH*OW) output."""
    B, H, W, C = x.shape
    taps, OH, OW = _im2col_taps(x, kh, kw, sh, sw)
    # TODO(synk): the patch matrix is still materialized by XLA (<= 200 KB at these shapes);
    # for large inputs move the tap loop inside the kernel to avoid the kh*kw traffic blowup.
    pt = taps.transpose(0, 4, 1, 2, 3).reshape(kh * kw * C, B * OH * OW)
    cout = w_mat.shape[0]
    o = pallas_matmul(w_mat, pt, bias=bias, apply_tanh=True)      # (Cout, B*OH*OW)
    return o.reshape(cout, B, OH, OW).transpose(1, 2, 3, 0)       # NHWC


def conv_transpose_col2im(x, w_mat, bias, kh, kw, sh, sw, transpose_mm=False):
    """ConvTranspose2d as one dense matmul + overlap-add (no zero-dilated input).

    x NHWC (B,H,W,Cin); w_mat (Cin, kh*kw*Cout), columns ordered (i, j, co).
    """
    B, H, W, Cin = x.shape
    cout = w_mat.shape[1] // (kh * kw)
    oht = (H - 1) * sh + kh
    owt = (W - 1) * sw + kw
    a = x.reshape(B * H * W, Cin)
    if transpose_mm:    # put the large B*H*W dimension on lanes
        zt = pallas_matmul(w_mat.T, a.T)                          # (kh*kw*Cout, B*H*W)
        z = zt.reshape(kh, kw, cout, B, H, W).transpose(3, 4, 5, 0, 1, 2)
    else:               # kh*kw*Cout is already the large/lane dimension
        z = pallas_matmul(a, w_mat).reshape(B, H, W, kh, kw, cout)
    y = jnp.zeros((B, oht, owt, cout), jnp.float32)
    for i in range(kh):
        for j in range(kw):
            y = y.at[:, i:i + sh * (H - 1) + 1:sh,
                     j:j + sw * (W - 1) + 1:sw, :].add(z[:, :, :, i, j, :])
    return jnp.tanh(y + bias.reshape(1, 1, 1, cout))


# ----------------------------------------------------------------------------
# Parameters
# ----------------------------------------------------------------------------
def _uniform(key, shape, fan_in):
    bound = 1.0 / jnp.sqrt(float(fan_in))
    return jax.random.uniform(key, shape, jnp.float32, -bound, bound)


def init_params(key):
    ks = jax.random.split(key, 16)
    p = {}
    # Encoder
    p["convE1_w"] = _uniform(ks[0], (8, 1, 5, 10), 1 * 5 * 10)
    p["convE1_b"] = _uniform(ks[1], (8,), 1 * 5 * 10)
    p["convE2_w"] = _uniform(ks[2], (36, 8, 4, 6), 8 * 4 * 6)
    p["convE2_b"] = _uniform(ks[3], (36,), 8 * 4 * 6)
    p["convE3_w"] = _uniform(ks[4], (64, 36, 3, 8), 36 * 3 * 8)
    p["convE3_b"] = _uniform(ks[5], (64,), 36 * 3 * 8)
    p["linE1_w"] = _uniform(ks[6], (5, 256), 256)      # PyTorch (out, in)
    p["linE1_b"] = _uniform(ks[7], (5,), 256)
    # Decoder
    p["linD1_w"] = _uniform(ks[8], (256, 5), 5)        # PyTorch (out, in)
    p["linD1_b"] = _uniform(ks[9], (256,), 5)
    p["convD1_w"] = _uniform(ks[10], (64, 36, 3, 8), 36 * 3 * 8)   # (Cin, Cout, KH, KW)
    p["convD1_b"] = _uniform(ks[11], (36,), 36 * 3 * 8)
    p["convD2_w"] = _uniform(ks[12], (36, 8, 4, 6), 8 * 4 * 6)
    p["convD2_b"] = _uniform(ks[13], (8,), 8 * 4 * 6)
    p["convD3_w"] = _uniform(ks[14], (8, 1, 3, 10), 1 * 3 * 10)
    p["convD3_b"] = _uniform(ks[15], (1,), 1 * 3 * 10)
    return p


def prepare_params(p):
    """Reshape / permute / cast weights once so the forward pass does no weight shuffling."""
    prep = {}
    # Encoder convs: (Cout, kh*kw*Cin) matrices, bf16 for the MXU; biases f32 (R,1).
    prep["wE1t"] = p["convE1_w"].transpose(0, 2, 3, 1).reshape(8, 50).astype(jnp.bfloat16)
    prep["bE1"] = p["convE1_b"].reshape(8, 1)
    prep["wE2t"] = p["convE2_w"].transpose(0, 2, 3, 1).reshape(36, 192).astype(jnp.bfloat16)
    prep["bE2"] = p["convE2_b"].reshape(36, 1)
    # Fused middle kernel operands (kept f32; tiny).
    prep["wE3m"] = p["convE3_w"].transpose(2, 3, 1, 0).reshape(864, 64)       # (kh*kw*Cin, Cout)
    prep["bE3"] = p["convE3_b"].reshape(1, 64)
    # linearE1 split by encoder spatial slot s = h*2 + w (absorbs the NCHW flatten permutation).
    prep["w1s"] = p["linE1_w"].reshape(5, 64, 4).transpose(2, 1, 0)           # (4, 64, 5)
    prep["b1"] = p["linE1_b"].reshape(1, 5)
    # linearD1 split by decoder spatial slot (absorbs the reshape to (B,64,2,2)).
    prep["wd1s"] = p["linD1_w"].reshape(64, 4, 5).transpose(1, 2, 0)          # (4, 5, 64)
    prep["bd1s"] = p["linD1_b"].reshape(64, 4).T.reshape(4, 1, 64)            # (4, 1, 64)
    # convD1 dense matmul weight (Cin, kh*kw*Cout); bias added after overlap-add.
    prep["wd1m"] = p["convD1_w"].transpose(0, 2, 3, 1).reshape(64, 864)
    prep["bD1"] = p["convD1_b"]
    # convD2 / convD3 col2im weights, bf16.
    prep["wD2m"] = p["convD2_w"].transpose(0, 2, 3, 1).reshape(36, 192).astype(jnp.bfloat16)
    prep["bD2"] = p["convD2_b"]
    prep["wD3m"] = p["convD3_w"].transpose(0, 2, 3, 1).reshape(8, 30).astype(jnp.bfloat16)
    prep["bD3"] = p["convD3_b"]
    return prep


# ----------------------------------------------------------------------------
# Full forward pass (Autoencoder = Encoder -> Decoder), 5 pallas_calls total
# ----------------------------------------------------------------------------
def autoencoder_forward(x_nchw, prep):
    B = x_nchw.shape[0]
    x = jnp.transpose(x_nchw, (0, 2, 3, 1))                       # NHWC (B,27,200,1)
    x = jnp.pad(x, ((0, 0), (1, 1), (0, 0), (0, 0)))              # ZeroPad2d((0,0,1,1)) -> H=29

    # --- Encoder convs (fused bias+tanh, lane-dense outputs) ---
    x = conv2d_enc(x, prep["wE1t"], prep["bE1"], 5, 10, 2, 5)     # (B,13,39,8)
    x = conv2d_enc(x, prep["wE2t"], prep["bE2"], 4, 6, 2, 3)      # (B,5,12,36)

    # --- Fused middle: convE3 + flatten + linearE1 + linearD1 + convD1 matmul ---
    taps3, oh3, ow3 = _im2col_taps(x, 3, 8, 2, 4)                 # (24,B,2,2,36)
    assert oh3 == 2 and ow3 == 2
    p3 = taps3.transpose(2, 3, 1, 0, 4).reshape(oh3 * ow3 * B, 3 * 8 * 36)   # (4B, 864)
    zd1 = fused_middle(p3, prep["wE3m"], prep["bE3"], prep["w1s"], prep["b1"],
                       prep["wd1s"], prep["bd1s"], prep["wd1m"], batch=B)    # (4B, 864)

    # col2im overlap-add for ConvTranspose2d #1 (input spatial 2x2) + bias + tanh
    z5 = zd1.reshape(2, 2, B, 3, 8, 36)                           # (h, w, b, i, j, co)
    y = jnp.zeros((B, 5, 12, 36), jnp.float32)
    for h in range(2):
        for w in range(2):
            y = y.at[:, 2 * h:2 * h + 3, 4 * w:4 * w + 8, :].add(z5[h, w])
    y = jnp.tanh(y + prep["bD1"].reshape(1, 1, 1, 36))            # (B,5,12,36)

    # --- Remaining transposed convs via col2im matmuls ---
    y = conv_transpose_col2im(y, prep["wD2m"], prep["bD2"], 4, 6, 2, 3)                      # (B,12,39,8)
    y = conv_transpose_col2im(y, prep["wD3m"], prep["bD3"], 3, 10, 2, 5, transpose_mm=True)  # (B,25,200,1)

    return jnp.transpose(y, (0, 3, 1, 2))                         # NCHW (B,1,25,200)


if __name__ == "__main__":
    key = jax.random.PRNGKey(0)
    pkey, xkey = jax.random.split(key)
    params = init_params(pkey)
    prep = prepare_params(params)
    # Smallest input consistent with the module: flatten-to-256 forces (1, 27, 200) spatial.
    x = jax.random.normal(xkey, (2, 1, 27, 200), jnp.float32)
    fwd = jax.jit(autoencoder_forward)
    y = fwd(x, prep)
    jax.block_until_ready(y)
    # PyTorch shapes: encoder 29x200 -> 13x39 -> 5x12 -> 2x2; decoder 2x2 -> 5x12 -> 12x39 -> 25x200.
    assert y.shape == (2, 1, 25, 200), y.shape
    assert bool(jnp.all(jnp.isfinite(y)))
    print("KERNEL_OK")
</pallas_src>

<mosaic_0001>
module attributes {stable_mosaic.version = 11 : i64} {
  func.func @_mm_bias_tanh_kernel(%arg0: i32, %arg1: memref<8x50xbf16, #tpu.memory_space<vmem>>, %arg2: memref<50x512xbf16, #tpu.memory_space<vmem>>, %arg3: memref<8x1xf32, #tpu.memory_space<vmem>>, %arg4: memref<8x512xf32, #tpu.memory_space<vmem>>) attributes {dimension_semantics = [#tpu.dimension_semantics<parallel>], iteration_bounds = array<i64: 2>, scalar_prefetch = 0 : i64, scratch_operands = 0 : i64, tpu.core_type = #tpu.core_type<tc>, window_params = [{pipeline_mode = #tpu.pipeline_mode<synchronous>, transform_indices = @transform_0, window_bounds = array<i64: 8, 50>}, {transform_indices = @transform_1, window_bounds = array<i64: 50, 512>}, {pipeline_mode = #tpu.pipeline_mode<synchronous>, transform_indices = @transform_2, window_bounds = array<i64: 8, 1>}, {transform_indices = @transform_3, window_bounds = array<i64: 8, 512>}]} {
    %c0 = arith.constant 0 : index
    %c0_0 = arith.constant 0 : index
    %0 = vector.load %arg1[%c0, %c0_0] : memref<8x50xbf16, #tpu.memory_space<vmem>>, vector<8x50xbf16>
    %c0_1 = arith.constant 0 : index
    %c0_2 = arith.constant 0 : index
    %1 = vector.load %arg2[%c0_1, %c0_2] : memref<50x512xbf16, #tpu.memory_space<vmem>>, vector<50x512xbf16>
    %cst = arith.constant dense<0.000000e+00> : vector<8x512xf32>
    %2 = tpu.matmul %0, %1, %cst {dimension_numbers = #tpu.dot_dimension_numbers<[1], [0], [0], [1], [0, 0, 1, 1], [], []>} : vector<8x50xbf16>, vector<50x512xbf16>, vector<8x512xf32> -> vector<8x512xf32>
    %c0_3 = arith.constant 0 : index
    %c0_4 = arith.constant 0 : index
    %3 = vector.load %arg3[%c0_3, %c0_4] : memref<8x1xf32, #tpu.memory_space<vmem>>, vector<8x1xf32>
    %4 = vector.broadcast %3 : vector<8x1xf32> to vector<8x512xf32>
    %5 = arith.addf %2, %4 : vector<8x512xf32>
    %6 = math.tanh %5 : vector<8x512xf32>
    %c0_5 = arith.constant 0 : index
    %c0_6 = arith.constant 0 : index
    %7 = vector.load %arg4[%c0_5, %c0_6] : memref<8x512xf32, #tpu.memory_space<vmem>>, vector<8x512xf32>
    tpu.vector_store %arg4[%c0_5, %c0_6], %6 {strides = array<i32>} : memref<8x512xf32, #tpu.memory_space<vmem>>, vector<8x512xf32>,
    return
  }
  func.func @transform_0(%arg0: i32) -> (i32, i32) {
    %c0_i32 = arith.constant 0 : i32
    %c0_i32_0 = arith.constant 0 : i32
    %c0_i32_1 = arith.constant 0 : i32
    return %c0_i32, %c0_i32_0 : i32, i32
  }
  func.func @transform_1(%arg0: i32) -> (i32, i32) {
    %c0_i32 = arith.constant 0 : i32
    %c0_i32_0 = arith.constant 0 : i32
    return %c0_i32, %arg0 : i32, i32
  }
  func.func @transform_2(%arg0: i32) -> (i32, i32) {
    %c0_i32 = arith.constant 0 : i32
    %c0_i32_0 = arith.constant 0 : i32
    %c0_i32_1 = arith.constant 0 : i32
    return %c0_i32, %c0_i32_0 : i32, i32
  }
  func.func @transform_3(%arg0: i32) -> (i32, i32) {
    %c0_i32 = arith.constant 0 : i32
    %c0_i32_0 = arith.constant 0 : i32
    return %c0_i32, %arg0 : i32, i32
  }
}

module attributes {stable_mosaic.version = 11 : i64} {
  func.func @_mm_bias_tanh_kernel(%arg0: i32, %arg1: memref<36x192xbf16, #tpu.memory_space<vmem>>, %arg2: memref<192x120xbf16, #tpu.memory_space<vmem>>, %arg3: memref<36x1xf32, #tpu.memory_space<vmem>>, %arg4: memref<36x120xf32, #tpu.memory_space<vmem>>) attributes {dimension_semantics = [#tpu.dimension_semantics<parallel>], iteration_bounds = array<i64: 1>, scalar_prefetch = 0 : i64, scratch_operands = 0 : i64, tpu.core_type = #tpu.core_type<tc>, window_params = [{pipeline_mode = #tpu.pipeline_mode<synchronous>, transform_indices = @transform_0, window_bounds = array<i64: 36, 192>}, {transform_indices = @transform_1, window_bounds = array<i64: 192, 120>}, {pipeline_mode = #tpu.pipeline_mode<synchronous>, transform_indices = @transform_2, window_bounds = array<i64: 36, 1>}, {transform_indices = @transform_3, window_bounds = array<i64: 36, 120>}]} {
    %c0 = arith.constant 0 : index
    %c0_0 = arith.constant 0 : index
    %0 = vector.load %arg1[%c0, %c0_0] : memref<36x192xbf16, #tpu.memory_space<vmem>>, vector<36x192xbf16>
    %c0_1 = arith.constant 0 : index
    %c0_2 = arith.constant 0 : index
    %1 = vector.load %arg2[%c0_1, %c0_2] : memref<192x120xbf16, #tpu.memory_space<vmem>>, vector<192x120xbf16>
    %cst = arith.constant dense<0.000000e+00> : vector<36x120xf32>
    %2 = tpu.matmul %0, %1, %cst {dimension_numbers = #tpu.dot_dimension_numbers<[1], [0], [0], [1], [0, 0, 1, 1], [], []>} : vector<36x192xbf16>, vector<192x120xbf16>, vector<36x120xf32> -> vector<36x120xf32>
    %c0_3 = arith.constant 0 : index
    %c0_4 = arith.constant 0 : index
    %3 = vector.load %arg3[%c0_3, %c0_4] : memref<36x1xf32, #tpu.memory_space<vmem>>, vector<36x1xf32>
    %4 = vector.broadcast %3 : vector<36x1xf32> to vector<36x120xf32>
    %5 = arith.addf %2, %4 : vector<36x120xf32>
    %6 = math.tanh %5 : vector<36x120xf32>
    %c0_5 = arith.constant 0 : index
    %c0_6 = arith.constant 0 : index
    %7 = vector.load %arg4[%c0_5, %c0_6] : memref<36x120xf32, #tpu.memory_space<vmem>>, vector<36x120xf32>
    tpu.vector_store %arg4[%c0_5, %c0_6], %6 {strides = array<i32>} : memref<36x120xf32, #tpu.memory_space<vmem>>, vector<36x120xf32>,
    return
  }
  func.func @transform_0(%arg0: i32) -> (i32, i32) {
    %c0_i32 = arith.constant 0 : i32
    %c0_i32_0 = arith.constant 0 : i32
    %c0_i32_1 = arith.constant 0 : i32
    return %c0_i32, %c0_i32_0 : i32, i32
  }
  func.func @transform_1(%arg0: i32) -> (i32, i32) {
    %c0_i32 = arith.constant 0 : i32
    %c0_i32_0 = arith.constant 0 : i32
    return %c0_i32, %arg0 : i32, i32
  }
  func.func @transform_2(%arg0: i32) -> (i32, i32) {
    %c0_i32 = arith.constant 0 : i32
    %c0_i32_0 = arith.constant 0 : i32
    %c0_i32_1 = arith.constant 0 : i32
    return %c0_i32, %c0_i32_0 : i32, i32
  }
  func.func @transform_3(%arg0: i32) -> (i32, i32) {
    %c0_i32 = arith.constant 0 : i32
    %c0_i32_0 = arith.constant 0 : i32
    return %c0_i32, %arg0 : i32, i32
  }
}

module attributes {stable_mosaic.version = 11 : i64} {
  func.func @_middle_kernel(%arg0: i32, %arg1: memref<8x864xf32, #tpu.memory_space<vmem>>, %arg2: memref<864x64xf32, #tpu.memory_space<vmem>>, %arg3: memref<1x64xf32, #tpu.memory_space<vmem>>, %arg4: memref<4x64x5xf32, #tpu.memory_space<vmem>>, %arg5: memref<1x5xf32, #tpu.memory_space<vmem>>, %arg6: memref<4x5x64xf32, #tpu.memory_space<vmem>>, %arg7: memref<4x1x64xf32, #tpu.memory_space<vmem>>, %arg8: memref<64x864xf32, #tpu.memory_space<vmem>>, %arg9: memref<8x864xf32, #tpu.memory_space<vmem>>) attributes {dimension_semantics = [#tpu.dimension_semantics<arbitrary>], iteration_bounds = array<i64: 1>, scalar_prefetch = 0 : i64, scratch_operands = 0 : i64, tpu.core_type = #tpu.core_type<tc>, window_params = [{pipeline_mode = #tpu.pipeline_mode<synchronous>, transform_indices = @transform_0, window_bounds = array<i64: 8, 864>}, {pipeline_mode = #tpu.pipeline_mode<synchronous>, transform_indices = @transform_1, window_bounds = array<i64: 864, 64>}, {pipeline_mode = #tpu.pipeline_mode<synchronous>, transform_indices = @transform_2, window_bounds = array<i64: 1, 64>}, {pipeline_mode = #tpu.pipeline_mode<synchronous>, transform_indices = @transform_3, window_bounds = array<i64: 4, 64, 5>}, {pipeline_mode = #tpu.pipeline_mode<synchronous>, transform_indices = @transform_4, window_bounds = array<i64: 1, 5>}, {pipeline_mode = #tpu.pipeline_mode<synchronous>, transform_indices = @transform_5, window_bounds = array<i64: 4, 5, 64>}, {pipeline_mode = #tpu.pipeline_mode<synchronous>, transform_indices = @transform_6, window_bounds = array<i64: 4, 1, 64>}, {pipeline_mode = #tpu.pipeline_mode<synchronous>, transform_indices = @transform_7, window_bounds = array<i64: 64, 864>}, {pipeline_mode = #tpu.pipeline_mode<synchronous>, transform_indices = @transform_8, window_bounds = array<i64: 8, 864>}]} {
    %c0 = arith.constant 0 : index
    %c0_0 = arith.constant 0 : index
    %0 = vector.load %arg1[%c0, %c0_0] : memref<8x864xf32, #tpu.memory_space<vmem>>, vector<8x864xf32>
    %c0_1 = arith.constant 0 : index
    %c0_2 = arith.constant 0 : index
    %1 = vector.load %arg2[%c0_1, %c0_2] : memref<864x64xf32, #tpu.memory_space<vmem>>, vector<864x64xf32>
    %cst = arith.constant dense<0.000000e+00> : vector<8x64xf32>
    %2 = tpu.matmul %0, %1, %cst {dimension_numbers = #tpu.dot_dimension_numbers<[1], [0], [0], [1], [0, 0, 1, 1], [], []>} : vector<8x864xf32>, vector<864x64xf32>, vector<8x64xf32> -> vector<8x64xf32>
    %c0_3 = arith.constant 0 : index
    %c0_4 = arith.constant 0 : index
    %3 = vector.load %arg3[%c0_3, %c0_4] : memref<1x64xf32, #tpu.memory_space<vmem>>, vector<1x64xf32>
    %4 = vector.broadcast %3 : vector<1x64xf32> to vector<8x64xf32>
    %5 = arith.addf %2, %4 : vector<8x64xf32>
    %6 = math.tanh %5 : vector<8x64xf32>
    %c0_5 = arith.constant 0 : index
    %c0_6 = arith.constant 0 : index
    %7 = vector.load %arg5[%c0_5, %c0_6] : memref<1x5xf32, #tpu.memory_space<vmem>>, vector<1x5xf32>
    %8 = vector.extract_strided_slice %6 {offsets = [0, 0], sizes = [2, 64], strides = [1, 1]} : vector<8x64xf32> to vector<2x64xf32>
    %c0_7 = arith.constant 0 : index
    %c0_8 = arith.constant 0 : index
    %c0_9 = arith.constant 0 : index
    %9 = vector.load %arg4[%c0_7, %c0_8, %c0_9] : memref<4x64x5xf32, #tpu.memory_space<vmem>>, vector<1x64x5xf32>
    %10 = vector.shape_cast %9 : vector<1x64x5xf32> to vector<64x5xf32>
    %cst_10 = arith.constant dense<0.000000e+00> : vector<2x5xf32>
    %11 = tpu.matmul %8, %10, %cst_10 {dimension_numbers = #tpu.dot_dimension_numbers<[1], [0], [0], [1], [0, 0, 1, 1], [], []>} : vector<2x64xf32>, vector<64x5xf32>, vector<2x5xf32> -> vector<2x5xf32>
    %12 = vector.broadcast %7 : vector<1x5xf32> to vector<2x5xf32>
    %13 = arith.addf %12, %11 : vector<2x5xf32>
    %14 = vector.extract_strided_slice %6 {offsets = [2, 0], sizes = [2, 64], strides = [1, 1]} : vector<8x64xf32> to vector<2x64xf32>
    %c1 = arith.constant 1 : index
    %c0_11 = arith.constant 0 : index
    %c0_12 = arith.constant 0 : index
    %15 = vector.load %arg4[%c1, %c0_11, %c0_12] : memref<4x64x5xf32, #tpu.memory_space<vmem>>, vector<1x64x5xf32>
    %16 = vector.shape_cast %15 : vector<1x64x5xf32> to vector<64x5xf32>
    %cst_13 = arith.constant dense<0.000000e+00> : vector<2x5xf32>
    %17 = tpu.matmul %14, %16, %cst_13 {dimension_numbers = #tpu.dot_dimension_numbers<[1], [0], [0], [1], [0, 0, 1, 1], [], []>} : vector<2x64xf32>, vector<64x5xf32>, vector<2x5xf32> -> vector<2x5xf32>
    %18 = arith.addf %13, %17 : vector<2x5xf32>
    %19 = vector.extract_strided_slice %6 {offsets = [4, 0], sizes = [2, 64], strides = [1, 1]} : vector<8x64xf32> to vector<2x64xf32>
    %c2 = arith.constant 2 : index
    %c0_14 = arith.constant 0 : index
    %c0_15 = arith.constant 0 : index
    %20 = vector.load %arg4[%c2, %c0_14, %c0_15] : memref<4x64x5xf32, #tpu.memory_space<vmem>>, vector<1x64x5xf32>
    %21 = vector.shape_cast %20 : vector<1x64x5xf32> to vector<64x5xf32>
    %cst_16 = arith.constant dense<0.000000e+00> : vector<2x5xf32>
    %22 = tpu.matmul %19, %21, %cst_16 {dimension_numbers = #tpu.dot_dimension_numbers<[1], [0], [0], [1], [0, 0, 1, 1], [], []>} : vector<2x64xf32>, vector<64x5xf32>, vector<2x5xf32> -> vector<2x5xf32>
    %23 = arith.addf %18, %22 : vector<2x5xf32>
    %24 = vector.extract_strided_slice %6 {offsets = [6, 0], sizes = [2, 64], strides = [1, 1]} : vector<8x64xf32> to vector<2x64xf32>
    %c3 = arith.constant 3 : index
    %c0_17 = arith.constant 0 : index
    %c0_18 = arith.constant 0 : index
    %25 = vector.load %arg4[%c3, %c0_17, %c0_18] : memref<4x64x5xf32, #tpu.memory_space<vmem>>, vector<1x64x5xf32>
    %26 = vector.shape_cast %25 : vector<1x64x5xf32> to vector<64x5xf32>
    %cst_19 = arith.constant dense<0.000000e+00> : vector<2x5xf32>
    %27 = tpu.matmul %24, %26, %cst_19 {dimension_numbers = #tpu.dot_dimension_numbers<[1], [0], [0], [1], [0, 0, 1, 1], [], []>} : vector<2x64xf32>, vector<64x5xf32>, vector<2x5xf32> -> vector<2x5xf32>
    %28 = arith.addf %23, %27 : vector<2x5xf32>
    %c0_20 = arith.constant 0 : index
    %c0_21 = arith.constant 0 : index
    %c0_22 = arith.constant 0 : index
    %29 = vector.load %arg6[%c0_20, %c0_21, %c0_22] : memref<4x5x64xf32, #tpu.memory_space<vmem>>, vector<1x5x64xf32>
    %30 = vector.shape_cast %29 : vector<1x5x64xf32> to vector<5x64xf32>
    %cst_23 = arith.constant dense<0.000000e+00> : vector<2x64xf32>
    %31 = tpu.matmul %28, %30, %cst_23 {dimension_numbers = #tpu.dot_dimension_numbers<[1], [0], [0], [1], [0, 0, 1, 1], [], []>} : vector<2x5xf32>, vector<5x64xf32>, vector<2x64xf32> -> vector<2x64xf32>
    %c0_24 = arith.constant 0 : index
    %c0_25 = arith.constant 0 : index
    %c0_26 = arith.constant 0 : index
    %32 = vector.load %arg7[%c0_24, %c0_25, %c0_26] : memref<4x1x64xf32, #tpu.memory_space<vmem>>, vector<1x1x64xf32>
    %33 = vector.shape_cast %32 : vector<1x1x64xf32> to vector<1x64xf32>
    %34 = vector.broadcast %33 : vector<1x64xf32> to vector<2x64xf32>
    %35 = arith.addf %31, %34 : vector<2x64xf32>
    %c0_27 = arith.constant 0 : index
    %c0_28 = arith.constant 0 : index
    %36 = vector.load %arg8[%c0_27, %c0_28] : memref<64x864xf32, #tpu.memory_space<vmem>>, vector<64x864xf32>
    %cst_29 = arith.constant dense<0.000000e+00> : vector<2x864xf32>
    %37 = tpu.matmul %35, %36, %cst_29 {dimension_numbers = #tpu.dot_dimension_numbers<[1], [0], [0], [1], [0, 0, 1, 1], [], []>} : vector<2x64xf32>, vector<64x864xf32>, vector<2x864xf32> -> vector<2x864xf32>
    %c0_30 = arith.constant 0 : index
    %c0_31 = arith.constant 0 : index
    %38 = vector.load %arg9[%c0_30, %c0_31] : memref<8x864xf32, #tpu.memory_space<vmem>>, vector<2x864xf32>
    tpu.vector_store %arg9[%c0_30, %c0_31], %37 {strides = array<i32>} : memref<8x864xf32, #tpu.memory_space<vmem>>, vector<2x864xf32>,
    %c1_32 = arith.constant 1 : index
    %c0_33 = arith.constant 0 : index
    %c0_34 = arith.constant 0 : index
    %39 = vector.load %arg6[%c1_32, %c0_33, %c0_34] : memref<4x5x64xf32, #tpu.memory_space<vmem>>, vector<1x5x64xf32>
    %40 = vector.shape_cast %39 : vector<1x5x64xf32> to vector<5x64xf32>
    %cst_35 = arith.constant dense<0.000000e+00> : vector<2x64xf32>
    %41 = tpu.matmul %28, %40, %cst_35 {dimension_numbers = #tpu.dot_dimension_numbers<[1], [0], [0], [1], [0, 0, 1, 1], [], []>} : vector<2x5xf32>, vector<5x64xf32>, vector<2x64xf32> -> vector<2x64xf32>
    %c1_36 = arith.constant 1 : index
    %c0_37 = arith.constant 0 : index
    %c0_38 = arith.constant 0 : index
    %42 = vector.load %arg7[%c1_36, %c0_37, %c0_38] : memref<4x1x64xf32, #tpu.memory_space<vmem>>, vector<1x1x64xf32>
    %43 = vector.shape_cast %42 : vector<1x1x64xf32> to vector<1x64xf32>
    %44 = vector.broadcast %43 : vector<1x64xf32> to vector<2x64xf32>
    %45 = arith.addf %41, %44 : vector<2x64xf32>
    %c0_39 = arith.constant 0 : index
    %c0_40 = arith.constant 0 : index
    %46 = vector.load %arg8[%c0_39, %c0_40] : memref<64x864xf32, #tpu.memory_space<vmem>>, vector<64x864xf32>
    %cst_41 = arith.constant dense<0.000000e+00> : vector<2x864xf32>
    %47 = tpu.matmul %45, %46, %cst_41 {dimension_numbers = #tpu.dot_dimension_numbers<[1], [0], [0], [1], [0, 0, 1, 1], [], []>} : vector<2x64xf32>, vector<64x864xf32>, vector<2x864xf32> -> vector<2x864xf32>
    %c2_42 = arith.constant 2 : index
    %c0_43 = arith.constant 0 : index
    %48 = vector.load %arg9[%c2_42, %c0_43] : memref<8x864xf32, #tpu.memory_space<vmem>>, vector<2x864xf32>
    tpu.vector_store %arg9[%c2_42, %c0_43], %47 {strides = array<i32>} : memref<8x864xf32, #tpu.memory_space<vmem>>, vector<2x864xf32>,
    %c2_44 = arith.constant 2 : index
    %c0_45 = arith.constant 0 : index
    %c0_46 = arith.constant 0 : index
    %49 = vector.load %arg6[%c2_44, %c0_45, %c0_46] : memref<4x5x64xf32, #tpu.memory_space<vmem>>, vector<1x5x64xf32>
    %50 = vector.shape_cast %49 : vector<1x5x64xf32> to vector<5x64xf32>
    %cst_47 = arith.constant dense<0.000000e+00> : vector<2x64xf32>
    %51 = tpu.matmul %28, %50, %cst_47 {dimension_numbers = #tpu.dot_dimension_numbers<[1], [0], [0], [1], [0, 0, 1, 1], [], []>} : vector<2x5xf32>, vector<5x64xf32>, vector<2x64xf32> -> vector<2x64xf32>
    %c2_48 = arith.constant 2 : index
    %c0_49 = arith.constant 0 : index
    %c0_50 = arith.constant 0 : index
    %52 = vector.load %arg7[%c2_48, %c0_49, %c0_50] : memref<4x1x64xf32, #tpu.memory_space<vmem>>, vector<1x1x64xf32>
    %53 = vector.shape_cast %52 : vector<1x1x64xf32> to vector<1x64xf32>
    %54 = vector.broadcast %53 : vector<1x64xf32> to vector<2x64xf32>
    %55 = arith.addf %51, %54 : vector<2x64xf32>
    %c0_51 = arith.constant 0 : index
    %c0_52 = arith.constant 0 : index
    %56 = vector.load %arg8[%c0_51, %c0_52] : memref<64x864xf32, #tpu.memory_space<vmem>>, vector<64x864xf32>
    %cst_53 = arith.constant dense<0.000000e+00> : vector<2x864xf32>
    %57 = tpu.matmul %55, %56, %cst_53 {dimension_numbers = #tpu.dot_dimension_numbers<[1], [0], [0], [1], [0, 0, 1, 1], [], []>} : vector<2x64xf32>, vector<64x864xf32>, vector<2x864xf32> -> vector<2x864xf32>
    %c4 = arith.constant 4 : index
    %c0_54 = arith.constant 0 : index
    %58 = vector.load %arg9[%c4, %c0_54] : memref<8x864xf32, #tpu.memory_space<vmem>>, vector<2x864xf32>
    tpu.vector_store %arg9[%c4, %c0_54], %57 {strides = array<i32>} : memref<8x864xf32, #tpu.memory_space<vmem>>, vector<2x864xf32>,
    %c3_55 = arith.constant 3 : index
    %c0_56 = arith.constant 0 : index
    %c0_57 = arith.constant 0 : index
    %59 = vector.load %arg6[%c3_55, %c0_56, %c0_57] : memref<4x5x64xf32, #tpu.memory_space<vmem>>, vector<1x5x64xf32>
    %60 = vector.shape_cast %59 : vector<1x5x64xf32> to vector<5x64xf32>
    %cst_58 = arith.constant dense<0.000000e+00> : vector<2x64xf32>
    %61 = tpu.matmul %28, %60, %cst_58 {dimension_numbers = #tpu.dot_dimension_numbers<[1], [0], [0], [1], [0, 0, 1, 1], [], []>} : vector<2x5xf32>, vector<5x64xf32>, vector<2x64xf32> -> vector<2x64xf32>
    %c3_59 = arith.constant 3 : index
    %c0_60 = arith.constant 0 : index
    %c0_61 = arith.constant 0 : index
    %62 = vector.load %arg7[%c3_59, %c0_60, %c0_61] : memref<4x1x64xf32, #tpu.memory_space<vmem>>, vector<1x1x64xf32>
    %63 = vector.shape_cast %62 : vector<1x1x64xf32> to vector<1x64xf32>
    %64 = vector.broadcast %63 : vector<1x64xf32> to vector<2x64xf32>
    %65 = arith.addf %61, %64 : vector<2x64xf32>
    %c0_62 = arith.constant 0 : index
    %c0_63 = arith.constant 0 : index
    %66 = vector.load %arg8[%c0_62, %c0_63] : memref<64x864xf32, #tpu.memory_space<vmem>>, vector<64x864xf32>
    %cst_64 = arith.constant dense<0.000000e+00> : vector<2x864xf32>
    %67 = tpu.matmul %65, %66, %cst_64 {dimension_numbers = #tpu.dot_dimension_numbers<[1], [0], [0], [1], [0, 0, 1, 1], [], []>} : vector<2x64xf32>, vector<64x864xf32>, vector<2x864xf32> -> vector<2x864xf32>
    %c6 = arith.constant 6 : index
    %c0_65 = arith.constant 0 : index
    %68 = vector.load %arg9[%c6, %c0_65] : memref<8x864xf32, #tpu.memory_space<vmem>>, vector<2x864xf32>
    tpu.vector_store %arg9[%c6, %c0_65], %67 {strides = array<i32>} : memref<8x864xf32, #tpu.memory_space<vmem>>, vector<2x864xf32>,
    return
  }
  func.func @transform_0(%arg0: i32) -> (i32, i32) {
    %c0_i32 = arith.constant 0 : i32
    %c0_i32_0 = arith.constant 0 : i32
    %c0_i32_1 = arith.constant 0 : i32
    return %c0_i32, %c0_i32_0 : i32, i32
  }
  func.func @transform_1(%arg0: i32) -> (i32, i32) {
    %c0_i32 = arith.constant 0 : i32
    %c0_i32_0 = arith.constant 0 : i32
    %c0_i32_1 = arith.constant 0 : i32
    return %c0_i32, %c0_i32_0 : i32, i32
  }
  func.func @transform_2(%arg0: i32) -> (i32, i32) {
    %c0_i32 = arith.constant 0 : i32
    %c0_i32_0 = arith.constant 0 : i32
    %c0_i32_1 = arith.constant 0 : i32
    return %c0_i32, %c0_i32_0 : i32, i32
  }
  func.func @transform_3(%arg0: i32) -> (i32, i32, i32) {
    %c0_i32 = arith.constant 0 : i32
    %c0_i32_0 = arith.constant 0 : i32
    %c0_i32_1 = arith.constant 0 : i32
    %c0_i32_2 = arith.constant 0 : i32
    return %c0_i32, %c0_i32_0, %c0_i32_1 : i32, i32, i32
  }
  func.func @transform_4(%arg0: i32) -> (i32, i32) {
    %c0_i32 = arith.constant 0 : i32
    %c0_i32_0 = arith.constant 0 : i32
    %c0_i32_1 = arith.constant 0 : i32
    return %c0_i32, %c0_i32_0 : i32, i32
  }
  func.func @transform_5(%arg0: i32) -> (i32, i32, i32) {
    %c0_i32 = arith.constant 0 : i32
    %c0_i32_0 = arith.constant 0 : i32
    %c0_i32_1 = arith.constant 0 : i32
    %c0_i32_2 = arith.constant 0 : i32
    return %c0_i32, %c0_i32_0, %c0_i32_1 : i32, i32, i32
  }
  func.func @transform_6(%arg0: i32) -> (i32, i32, i32) {
    %c0_i32 = arith.constant 0 : i32
    %c0_i32_0 = arith.constant 0 : i32
    %c0_i32_1 = arith.constant 0 : i32
    %c0_i32_2 = arith.constant 0 : i32
    return %c0_i32, %c0_i32_0, %c0_i32_1 : i32, i32, i32
  }
  func.func @transform_7(%arg0: i32) -> (i32, i32) {
    %c0_i32 = arith.constant 0 : i32
    %c0_i32_0 = arith.constant 0 : i32
    %c0_i32_1 = arith.constant 0 : i32
    return %c0_i32, %c0_i32_0 : i32, i32
  }
  func.func @transform_8(%arg0: i32) -> (i32, i32) {
    %c0_i32 = arith.constant 0 : i32
    %c0_i32_0 = arith.constant 0 : i32
    %c0_i32_1 = arith.constant 0 : i32
    return %c0_i32, %c0_i32_0 : i32, i32
  }
}

module attributes {stable_mosaic.version = 11 : i64} {
  func.func @_mm_kernel(%arg0: i32, %arg1: memref<120x36xbf16, #tpu.memory_space<vmem>>, %arg2: memref<36x192xbf16, #tpu.memory_space<vmem>>, %arg3: memref<120x192xf32, #tpu.memory_space<vmem>>) attributes {dimension_semantics = [#tpu.dimension_semantics<parallel>], iteration_bounds = array<i64: 1>, scalar_prefetch = 0 : i64, scratch_operands = 0 : i64, tpu.core_type = #tpu.core_type<tc>, window_params = [{pipeline_mode = #tpu.pipeline_mode<synchronous>, transform_indices = @transform_0, window_bounds = array<i64: 120, 36>}, {transform_indices = @transform_1, window_bounds = array<i64: 36, 192>}, {transform_indices = @transform_2, window_bounds = array<i64: 120, 192>}]} {
    %c0 = arith.constant 0 : index
    %c0_0 = arith.constant 0 : index
    %0 = vector.load %arg1[%c0, %c0_0] : memref<120x36xbf16, #tpu.memory_space<vmem>>, vector<120x36xbf16>
    %c0_1 = arith.constant 0 : index
    %c0_2 = arith.constant 0 : index
    %1 = vector.load %arg2[%c0_1, %c0_2] : memref<36x192xbf16, #tpu.memory_space<vmem>>, vector<36x192xbf16>
    %cst = arith.constant dense<0.000000e+00> : vector<120x192xf32>
    %2 = tpu.matmul %0, %1, %cst {dimension_numbers = #tpu.dot_dimension_numbers<[1], [0], [0], [1], [0, 0, 1, 1], [], []>} : vector<120x36xbf16>, vector<36x192xbf16>, vector<120x192xf32> -> vector<120x192xf32>
    %c0_3 = arith.constant 0 : index
    %c0_4 = arith.constant 0 : index
    %3 = vector.load %arg3[%c0_3, %c0_4] : memref<120x192xf32, #tpu.memory_space<vmem>>, vector<120x192xf32>
    tpu.vector_store %arg3[%c0_3, %c0_4], %2 {strides = array<i32>} : memref<120x192xf32, #tpu.memory_space<vmem>>, vector<120x192xf32>,
    return
  }
  func.func @transform_0(%arg0: i32) -> (i32, i32) {
    %c0_i32 = arith.constant 0 : i32
    %c0_i32_0 = arith.constant 0 : i32
    %c0_i32_1 = arith.constant 0 : i32
    return %c0_i32, %c0_i32_0 : i32, i32
  }
  func.func @transform_1(%arg0: i32) -> (i32, i32) {
    %c0_i32 = arith.constant 0 : i32
    %c0_i32_0 = arith.constant 0 : i32
    return %c0_i32, %arg0 : i32, i32
  }
  func.func @transform_2(%arg0: i32) -> (i32, i32) {
    %c0_i32 = arith.constant 0 : i32
    %c0_i32_0 = arith.constant 0 : i32
    return %c0_i32, %arg0 : i32, i32
  }
}

module attributes {stable_mosaic.version = 11 : i64} {
  func.func @_mm_kernel(%arg0: i32, %arg1: memref<30x8xbf16, #tpu.memory_space<vmem>>, %arg2: memref<8x512xbf16, #tpu.memory_space<vmem>>, %arg3: memref<30x512xf32, #tpu.memory_space<vmem>>) attributes {dimension_semantics = [#tpu.dimension_semantics<parallel>], iteration_bounds = array<i64: 2>, scalar_prefetch = 0 : i64, scratch_operands = 0 : i64, tpu.core_type = #tpu.core_type<tc>, window_params = [{pipeline_mode = #tpu.pipeline_mode<synchronous>, transform_indices = @transform_0, window_bounds = array<i64: 30, 8>}, {transform_indices = @transform_1, window_bounds = array<i64: 8, 512>}, {transform_indices = @transform_2, window_bounds = array<i64: 30, 512>}]} {
    %c0 = arith.constant 0 : index
    %c0_0 = arith.constant 0 : index
    %0 = vector.load %arg1[%c0, %c0_0] : memref<30x8xbf16, #tpu.memory_space<vmem>>, vector<30x8xbf16>
    %c0_1 = arith.constant 0 : index
    %c0_2 = arith.constant 0 : index
    %1 = vector.load %arg2[%c0_1, %c0_2] : memref<8x512xbf16, #tpu.memory_space<vmem>>, vector<8x512xbf16>
    %cst = arith.constant dense<0.000000e+00> : vector<30x512xf32>
    %2 = tpu.matmul %0, %1, %cst {dimension_numbers = #tpu.dot_dimension_numbers<[1], [0], [0], [1], [0, 0, 1, 1], [], []>} : vector<30x8xbf16>, vector<8x512xbf16>, vector<30x512xf32> -> vector<30x512xf32>
    %c0_3 = arith.constant 0 : index
    %c0_4 = arith.constant 0 : index
    %3 = vector.load %arg3[%c0_3, %c0_4] : memref<30x512xf32, #tpu.memory_space<vmem>>, vector<30x512xf32>
    tpu.vector_store %arg3[%c0_3, %c0_4], %2 {strides = array<i32>} : memref<30x512xf32, #tpu.memory_space<vmem>>, vector<30x512xf32>,
    return
  }
  func.func @transform_0(%arg0: i32) -> (i32, i32) {
    %c0_i32 = arith.constant 0 : i32
    %c0_i32_0 = arith.constant 0 : i32
    %c0_i32_1 = arith.constant 0 : i32
    return %c0_i32, %c0_i32_0 : i32, i32
  }
  func.func @transform_1(%arg0: i32) -> (i32, i32) {
    %c0_i32 = arith.constant 0 : i32
    %c0_i32_0 = arith.constant 0 : i32
    return %c0_i32, %arg0 : i32, i32
  }
  func.func @transform_2(%arg0: i32) -> (i32, i32) {
    %c0_i32 = arith.constant 0 : i32
    %c0_i32_0 = arith.constant 0 : i32
    return %c0_i32, %arg0 : i32, i32
  }
}

</mosaic_0001>

<llo_original>
// kernel: autoencoder_forward.5
$region0: #{autoencoder_forward.5}
  #allocation0 [shape = 'u32[]', space=smem, size = 0x4, offset = 0x4, fixed_abs, tag = 'smem constant byte address 0x4 - core index']
  #allocation1 [shape = 'u32[72,128]{1,0:T(1,128)}', space=vmem, size = 0x9000, scoped, tag = 'internal scratch']
  %s0 = inlined_call_operand.vmem [shape: bf16[8,50], index: 0, kind: input, shape index: {}]
  %s1 = inlined_call_operand.vmem [shape: bf16[50,1024], index: 1, kind: input, shape index: {}]
  %s2 = inlined_call_operand.vmem [shape: f32[8,1], index: 2, kind: input, shape index: {}]
  %s3 = inlined_call_operand.vmem [shape: f32[8,1024], index: 3, kind: output, shape index: {}]
  %s4 = sld [smem:[#allocation0]]
  $region68: #{autoencoder_forward.5} parent=0
    _
  %s6 = ssub.s32 1, %s4
  %s7 = scalar_select 0, %s6, %s4
  $region1: #{autoencoder_forward.5} parent=0
    #allocation2 [shape = 'u8[114688]{0}', space=vmem, size = 0x1c000, scoped, tag = 'input window, operand 1']
    loop: start=0, step=1, limit=4
    $region2: #{autoencoder_forward.5} parent=1 // loop_pre_header
      _
    $region3: #{autoencoder_forward.5} parent=1 // loop_header
      %s9 = sphi 0, %s13
      %p10 = scmp.ge.s32.totalorder %s9, 4
      %s17 = sphi 0, %s17
      %s19 = sphi 0, %s17
      %s20 = sphi 0, %s19
      %s34 = sphi 0, %s20
      %s40 = sphi 0, %s42
      %s43 = sphi 0, %s40
      %s44 = sphi 0, %s43
      %s60 = sphi 0, %s44
      %s64 = sphi 0, %s64
      %s66 = sphi 0, %s64
      %s67 = sphi 0, %s66
      %s81 = sphi 0, %s67
      %s87 = sphi 0, %s89
      %s90 = sphi 0, %s87
      %s91 = sphi 0, %s90
      %s107 = sphi 0, %s91
    $region4: #{autoencoder_forward.5} parent=1 // loop_header_branch
      %12 = sbr.rel (%p10) target = $region8
    $region5: #{autoencoder_forward.5} parent=1 // loop_body
      %s14 = ssub.s32 %s9, 1
      %s15 = ssub.s32 %s9, 2
      %s16 = sadd.s32 %s9, 1
      %s18 = sadd.s32 %s17, 1
      %p21 = scmp.eq.s32.totalorder %s9, 1
      %p22 = scmp.ne.s32.totalorder %s17, %s19
      %p23 = scmp.eq.s32.totalorder %s9, 0
      %p24 = por %p22, %p23
      %p25 = scmp.ne.s32.totalorder %s17, %s19
      %p26 = scmp.eq.s32.totalorder %s14, 1
      %p27 = por %p25, %p26
      %p28 = scmp.ne.s32.totalorder %s19, %s20
      %p29 = scmp.eq.s32.totalorder %s14, 0
      %p30 = por %p28, %p29
      %p31 = scmp.ne.s32.totalorder %s19, %s20
      %p32 = scmp.eq.s32.totalorder %s15, 1
      %p33 = por %p31, %p32
      %p35 = scmp.ne.s32.totalorder %s20, %s34
      %p36 = scmp.eq.s32.totalorder %s15, 0
      %p37 = por %p35, %p36
      %s38 = ssub.s32 %s9, %s16
      %p39 = scmp.eq.s32.totalorder %s38, 0
      %s41 = sadd.s32 %s40, 1
      %s42 = scalar_select %p39, %s40, %s41
      %p45 = pneg %p39
      %p46 = scmp.eq.s32.totalorder %s9, 1
      %p47 = por %p45, %p46
      %p48 = scmp.ne.s32.totalorder %s40, %s43
      %p49 = scmp.eq.s32.totalorder %s9, 0
      %p50 = por %p48, %p49
      %p51 = scmp.ne.s32.totalorder %s40, %s43
      %p52 = scmp.eq.s32.totalorder %s14, 1
      %p53 = por %p51, %p52
      %p54 = scmp.ne.s32.totalorder %s43, %s44
      %p55 = scmp.eq.s32.totalorder %s14, 0
      %p56 = por %p54, %p55
      %p57 = scmp.ne.s32.totalorder %s43, %s44
      %p58 = scmp.eq.s32.totalorder %s15, 1
      %p59 = por %p57, %p58
      %p61 = scmp.ne.s32.totalorder %s44, %s60
      %p62 = scmp.eq.s32.totalorder %s15, 0
      %p63 = por %p61, %p62
      %s65 = sadd.s32 %s64, 1
      %p68 = scmp.eq.s32.totalorder %s9, 1
      %p69 = scmp.ne.s32.totalorder %s64, %s66
      %p70 = scmp.eq.s32.totalorder %s9, 0
      %p71 = por %p69, %p70
      %p72 = scmp.ne.s32.totalorder %s64, %s66
      %p73 = scmp.eq.s32.totalorder %s14, 1
      %p74 = por %p72, %p73
      %p75 = scmp.ne.s32.totalorder %s66, %s67
      %p76 = scmp.eq.s32.totalorder %s14, 0
      %p77 = por %p75, %p76
      %p78 = scmp.ne.s32.totalorder %s66, %s67
      %p79 = scmp.eq.s32.totalorder %s15, 1
      %p80 = por %p78, %p79
      %p82 = scmp.ne.s32.totalorder %s67, %s81
      %p83 = scmp.eq.s32.totalorder %s15, 0
      %p84 = por %p82, %p83
      %s85 = ssub.s32 %s9, %s16
      %p86 = scmp.eq.s32.totalorder %s85, 0
      %s88 = sadd.s32 %s87, 1
      %s89 = scalar_select %p86, %s87, %s88
      %p92 = pneg %p86
      %p93 = scmp.eq.s32.totalorder %s9, 1
      %p94 = por %p92, %p93
      %p95 = scmp.ne.s32.totalorder %s87, %s90
      %p96 = scmp.eq.s32.totalorder %s9, 0
      %p97 = por %p95, %p96
      %p98 = scmp.ne.s32.totalorder %s87, %s90
      %p99 = scmp.eq.s32.totalorder %s14, 1
      %p100 = por %p98, %p99
      %p101 = scmp.ne.s32.totalorder %s90, %s91
      %p102 = scmp.eq.s32.totalorder %s14, 0
      %p103 = por %p101, %p102
      %p104 = scmp.ne.s32.totalorder %s90, %s91
      %p105 = scmp.eq.s32.totalorder %s15, 1
      %p106 = por %p104, %p105
      %p108 = scmp.ne.s32.totalorder %s91, %s107
      %p109 = scmp.eq.s32.totalorder %s15, 0
      %p110 = por %p108, %p109
      %p111 = scmp.le.s32.totalorder 1, %s9
      %p112 = scmp.lt.s32.totalorder %s9, 3
      %p113 = pnand %p111, %p112
      %p114 = pneg %p113
      // Predicated region
      $region9: #{autoencoder_forward.5} parent=5 // pred_check
        _
      $region10: #{autoencoder_forward.5} parent=5 // pred_check_branch
        %116 = sbr.rel (%p113) target = $region12
      $region11: #{autoencoder_forward.5} parent=5 // pred_region
        %s117 = ssub.s32 %s9, 1
        // Predicated region
        $region13: #{autoencoder_forward.5} parent=11 // pred_check
          %p118 = pneg %p30
        $region14: #{autoencoder_forward.5} parent=11 // pred_check_branch
          %120 = sbr.rel (%p118) target = $region16
        $region15: #{autoencoder_forward.5} parent=11 // pred_region
          _
        $region16: #{autoencoder_forward.5} parent=11 // pred_fallthru
          _
        // Predicated region
        $region17: #{autoencoder_forward.5} parent=11 // pred_check
          %p121 = pneg %p77
        $region18: #{autoencoder_forward.5} parent=11 // pred_check_branch
          %123 = sbr.rel (%p121) target = $region20
        $region19: #{autoencoder_forward.5} parent=11 // pred_region
          _
        $region20: #{autoencoder_forward.5} parent=11 // pred_fallthru
          _
      $region12: #{autoencoder_forward.5} parent=5 // pred_fallthru
        _
      %p124 = scmp.lt.s32.totalorder %s9, 2
      // Predicated region
      $region21: #{autoencoder_forward.5} parent=5 // pred_check
        %p125 = pneg %p124
      $region22: #{autoencoder_forward.5} parent=5 // pred_check_branch
        %127 = sbr.rel (%p125) target = $region24
      $region23: #{autoencoder_forward.5} parent=5 // pred_region
        // Predicated region
        $region25: #{autoencoder_forward.5} parent=23 // pred_check
          %p128 = pneg %p50
        $region26: #{autoencoder_forward.5} parent=23 // pred_check_branch
          %130 = sbr.rel (%p128) target = $region28
        $region27: #{autoencoder_forward.5} parent=23 // pred_region
          %s131 = sand.u32 %s40, 1
          %s132 = sand.u32 %s40, 1
          %s133 = smul.addr %s132, 112
          %s134 = scalar_lea.vmem [#allocation2], %s133
          %s135 = smul.u32 4, %s9
          %s136 = smul.addr %s135, 4
          %s137 = scalar_lea.vmem %s1, %s136
          // Predicated region
          $region29: #{autoencoder_forward.5} parent=27 // pred_check
            _
          $region30: #{autoencoder_forward.5} parent=27 // pred_check_branch
            %139 = sbr.rel (0) target = $region32
          $region31: #{autoencoder_forward.5} parent=27 // pred_region
            // Predicated region
            $region33: #{autoencoder_forward.5} parent=31 // pred_check
              _
            $region34: #{autoencoder_forward.5} parent=31 // pred_check_branch
              %141 = sbr.rel (0) target = $region36
            $region35: #{autoencoder_forward.5} parent=31 // pred_region
              loop: start=0, step=1, limit=1
              $region37: #{autoencoder_forward.5} parent=35 // loop_pre_header
                _
              $region38: #{autoencoder_forward.5} parent=35 // loop_header
                %s143 = sphi 0, %s147
                %p144 = scmp.ge.s32.totalorder %s143, 1
                %s148 = sphi %s137, %s137
                %s149 = sphi %s134, %s134
              $region39: #{autoencoder_forward.5} parent=35 // loop_header_branch
                %146 = sbr.rel (%p144) target = $region43
              $region40: #{autoencoder_forward.5} parent=35 // loop_body
                %v150 = vld [vmem:[%s148] sm:$0xff]
                %151 = vst [vmem:[%s149] sm:$0xff] %v150
                %v152 = vld [vmem:[%s148 + $0x8] sm:$0xff]
                %153 = vst [vmem:[%s149 + $0x8] sm:$0xff] %v152
                %v154 = vld [vmem:[%s148 + $0x20] sm:$0xff]
                %155 = vst [vmem:[%s149 + $0x10] sm:$0xff] %v154
                %v156 = vld [vmem:[%s148 + $0x28] sm:$0xff]
                %157 = vst [vmem:[%s149 + $0x18] sm:$0xff] %v156
                %v158 = vld [vmem:[%s148 + $0x40] sm:$0xff]
                %159 = vst [vmem:[%s149 + $0x20] sm:$0xff] %v158
                %v160 = vld [vmem:[%s148 + $0x48] sm:$0xff]
                %161 = vst [vmem:[%s149 + $0x28] sm:$0xff] %v160
                %v162 = vld [vmem:[%s148 + $0x60] sm:$0xff]
                %163 = vst [vmem:[%s149 + $0x30] sm:$0xff] %v162
                %v164 = vld [vmem:[%s148 + $0x68] sm:$0xff]
                %165 = vst [vmem:[%s149 + $0x38] sm:$0xff] %v164
                %v166 = vld [vmem:[%s148 + $0x80] sm:$0xff]
                %167 = vst [vmem:[%s149 + $0x40] sm:$0xff] %v166
                %v168 = vld [vmem:[%s148 + $0x88] sm:$0xff]
                %169 = vst [vmem:[%s149 + $0x48] sm:$0xff] %v168
                %v170 = vld [vmem:[%s148 + $0xa0] sm:$0xff]
                %171 = vst [vmem:[%s149 + $0x50] sm:$0xff] %v170
                %v172 = vld [vmem:[%s148 + $0xa8] sm:$0xff]
                %173 = vst [vmem:[%s149 + $0x58] sm:$0xff] %v172
                %v174 = vld [vmem:[%s148 + $0xc0] sm:$0xff]
                %175 = vst [vmem:[%s149 + $0x60] sm:$0xff] %v174
                %v176 = vld [vmem:[%s148 + $0xc8] sm:$0xff]
                %177 = vst [vmem:[%s149 + $0x68] sm:$0xff] %v176
              $region41: #{autoencoder_forward.5} parent=35 // loop_footer
                %s147 = sadd.s32 1, %s143
              $region42: #{autoencoder_forward.5} parent=35 // loop_footer_branch
                %142 = sbr.rel target = $region38
              $region43: #{autoencoder_forward.5} parent=35 // loop_exit
                _
            $region36: #{autoencoder_forward.5} parent=31 // pred_fallthru
              _
            // Predicated region
            $region44: #{autoencoder_forward.5} parent=31 // pred_check
              _
            $region45: #{autoencoder_forward.5} parent=31 // pred_check_branch
              %179 = sbr.rel target = $region47
            $region46: #{autoencoder_forward.5} parent=31 // pred_region
              _
            $region47: #{autoencoder_forward.5} parent=31 // pred_fallthru
              _
          $region32: #{autoencoder_forward.5} parent=27 // pred_fallthru
            _
          %180 = vnop
        $region28: #{autoencoder_forward.5} parent=23 // pred_fallthru
          _
      $region24: #{autoencoder_forward.5} parent=5 // pred_fallthru
        _
      %p181 = scmp.le.s32.totalorder 1, %s9
      %p182 = scmp.lt.s32.totalorder %s9, 3
      %p183 = pnand %p181, %p182
      %p184 = pneg %p183
      // Predicated region
      $region48: #{autoencoder_forward.5} parent=5 // pred_check
        _
      $region49: #{autoencoder_forward.5} parent=5 // pred_check_branch
        %186 = sbr.rel (%p183) target = $region51
      $region50: #{autoencoder_forward.5} parent=5 // pred_region
        %s187 = ssub.s32 %s9, 1
        %s188 = sand.u32 %s43, 1
        %s189 = sand.u32 %s43, 1
        %s190 = smul.addr %s189, 112
        %s191 = scalar_lea.vmem [#allocation2], %s190
        // Predicated region
        $region52: #{autoencoder_forward.5} parent=50 // pred_check
          %p192 = pneg %p56
        $region53: #{autoencoder_forward.5} parent=50 // pred_check_branch
          %194 = sbr.rel (%p192) target = $region55
        $region54: #{autoencoder_forward.5} parent=50 // pred_region
          _
        $region55: #{autoencoder_forward.5} parent=50 // pred_fallthru
          _
        %p195 = pneg %p30
        %p196 = pneg %p27
        %s197 = sand.u32 %s43, 1
        %s198 = sand.u32 %s43, 1
        %s199 = smul.addr %s198, 112
        %s200 = scalar_lea.vmem [#allocation2], %s199
        %p201 = pneg %p56
        %p202 = pneg %p53
        %p203 = pneg %p77
        %p204 = pneg %p74
        %p205 = pneg %p103
        %p206 = pneg %p100
        %s207 = smul.u32 4, %s14
        %p208 = scmp.lt.s32.totalorder %s207, 7
        %s209 = scalar_select %p208, %s207, 7
        %s210 = smul.addr %s209, 8
        %s211 = scalar_lea.vmem %s3, %s210
        %s212 = smul.u32 4, %s14
        %s213 = smul.u32 4, %s14
        %p214 = scmp.lt.s32.totalorder %s213, 7
        %s215 = scalar_select %p214, %s213, 7
        %s216 = smul.addr %s215, 8
        %s217 = scalar_lea.vmem %s3, %s216
        %s218 = smul.u32 4, %s14
        %v220 = vld [vmem:[%s0] sm:$0xf]
        %v221 = vld [vmem:[%s191] sm:$0xff]
        %v222 = vld [vmem:[%s191 + $0x8] sm:$0xff]
        %v223 = vld [vmem:[%s191 + $0x10] sm:$0xff]
        %v224 = vld [vmem:[%s191 + $0x18] sm:$0xff]
        %v225 = vld [vmem:[%s191 + $0x20] sm:$0xff]
        %v226 = vld [vmem:[%s191 + $0x28] sm:$0xff]
        %v227 = vld [vmem:[%s191 + $0x30] sm:$0xff]
        %v228 = vld [vmem:[%s191 + $0x38] sm:$0xff]
        %v229 = vld [vmem:[%s191 + $0x40] sm:$0xff]
        %v230 = vld [vmem:[%s191 + $0x48] sm:$0xff]
        %v231 = vld [vmem:[%s191 + $0x50] sm:$0xff]
        %v232 = vld [vmem:[%s191 + $0x58] sm:$0xff]
        %v233 = vld [vmem:[%s191 + $0x60] sm:$0x11]
        %v234 = vld [vmem:[%s191 + $0x68] sm:$0x11]
        %v235 = vld [vmem:[%s2] sm:$0xff]
        %237 = vset.pattern.permute.xlu0 0
        %238 = vperm.xlu0 %237, %v235
        %v239 = vpop.permute.xlu0 %238
        %v255 = vunpack.c.l.b16 %v221
        %v256 = vunpack.c.h.b16 %v221
        %v257 = vunpack.c.l.b16 %v222
        %v258 = vunpack.c.h.b16 %v222
        %v259 = vunpack.c.l.b16 %v223
        %v260 = vunpack.c.h.b16 %v223
        %v261 = vunpack.c.l.b16 %v224
        %v262 = vunpack.c.h.b16 %v224
        %v263 = vunpack.c.l.b16 %v225
        %v264 = vunpack.c.h.b16 %v225
        %v265 = vunpack.c.l.b16 %v226
        %v266 = vunpack.c.h.b16 %v226
        %v267 = vunpack.c.l.b16 %v227
        %v268 = vunpack.c.h.b16 %v227
        %v269 = vunpack.c.l.b16 %v228
        %v270 = vunpack.c.h.b16 %v228
        %v271 = vunpack.c.l.b16 %v229
        %v272 = vunpack.c.h.b16 %v229
        %v273 = vunpack.c.l.b16 %v230
        %v274 = vunpack.c.h.b16 %v230
        %v275 = vunpack.c.l.b16 %v231
        %v276 = vunpack.c.h.b16 %v231
        %v277 = vunpack.c.l.b16 %v232
        %v278 = vunpack.c.h.b16 %v232
        %v279 = vunpack.c.l.b16 %v233
        %v280 = vunpack.c.h.b16 %v233
        %v281 = vunpack.c.l.b16 %v234
        %v282 = vunpack.c.h.b16 %v234
        %v283 = vpack.c.b16 %v259, %v255
        %v284 = vpack.c.b16 %v260, %v256
        %v285 = vpack.c.b16 %v261, %v257
        %v286 = vpack.c.b16 %v262, %v258
        %v287 = vpack.c.b16 %v267, %v263
        %v288 = vpack.c.b16 %v268, %v264
        %v289 = vpack.c.b16 %v269, %v265
        %v290 = vpack.c.b16 %v270, %v266
        %v291 = vpack.c.b16 %v275, %v271
        %v292 = vpack.c.b16 %v276, %v272
        %v293 = vpack.c.b16 %v277, %v273
        %v294 = vpack.c.b16 %v278, %v274
        %v295 = vpack.c.b16 %v279, %v279
        %v296 = vpack.c.b16 %v280, %v280
        %v297 = vpack.c.b16 %v281, %v281
        %v298 = vpack.c.b16 %v282, %v282
        %vm311 = vcmask 408576
        %v313 = vsel %vm311, %v220, 0
        %vm315 = vcmask 1040384
        %v317 = vsel %vm315, %v295, 0
        %v320 = vsel %vm315, %v296, 0
        %v323 = vsel %vm315, %v297, 0
        %v326 = vsel %vm315, %v298, 0
        %328 = vmatpush.bf16.msra.mxu0 0
        %329 = vmatpush.bf16.msra.mxu0 0
        %330 = vmatpush.bf16.msra.mxu0 0
        %331 = vmatpush.bf16.msra.mxu0 0
        %332 = vmatpush.bf16.msra.mxu0 %v317
        %333 = vmatpush.bf16.msra.mxu0 %v291
        %334 = vmatpush.bf16.msra.mxu0 %v287
        %335 = vmatpush.bf16.msra.mxu0 %v283
        %336 = vmatmul.bf16.gmra.mxu0 %v313
        %v337 = vpop.f32.mrf.mxu0
        %v338 = vadd.f32 %v239, %v337
        %v339 = vpop.f32.mrf.mxu0
        %340 = vdwg.mxu0
        %341 = vmatpush.bf16.msra.mxu0 0
        %342 = vmatpush.bf16.msra.mxu0 0
        %343 = vmatpush.bf16.msra.mxu0 0
        %344 = vmatpush.bf16.msra.mxu0 0
        %345 = vmatpush.bf16.msra.mxu0 %v320
        %346 = vmatpush.bf16.msra.mxu0 %v292
        %347 = vmatpush.bf16.msra.mxu0 %v288
        %348 = vmatpush.bf16.msra.mxu0 %v284
        %349 = vmatmul.bf16.gmra.mxu0 %v313
        %v350 = vpop.f32.mrf.mxu0
        %v351 = vadd.f32 %v239, %v350
        %v352 = vpop.f32.mrf.mxu0
        %353 = vdwg.mxu0
        %354 = vmatpush.bf16.msra.mxu0 0
        %355 = vmatpush.bf16.msra.mxu0 0
        %356 = vmatpush.bf16.msra.mxu0 0
        %357 = vmatpush.bf16.msra.mxu0 0
        %358 = vmatpush.bf16.msra.mxu0 %v323
        %359 = vmatpush.bf16.msra.mxu0 %v293
        %360 = vmatpush.bf16.msra.mxu0 %v289
        %361 = vmatpush.bf16.msra.mxu0 %v285
        %362 = vmatmul.bf16.gmra.mxu0 %v313
        %v363 = vpop.f32.mrf.mxu0
        %v364 = vadd.f32 %v239, %v363
        %v365 = vpop.f32.mrf.mxu0
        %366 = vdwg.mxu0
        %367 = vmatpush.bf16.msra.mxu0 0
        %368 = vmatpush.bf16.msra.mxu0 0
        %369 = vmatpush.bf16.msra.mxu0 0
        %370 = vmatpush.bf16.msra.mxu0 0
        %371 = vmatpush.bf16.msra.mxu0 %v326
        %372 = vmatpush.bf16.msra.mxu0 %v294
        %373 = vmatpush.bf16.msra.mxu0 %v290
        %374 = vmatpush.bf16.msra.mxu0 %v286
        %375 = vmatmul.bf16.gmra.mxu0 %v313
        %v376 = vpop.f32.mrf.mxu0
        %v377 = vadd.f32 %v239, %v376
        %v378 = vpop.f32.mrf.mxu0
        %379 = vdwg.mxu0
        %v380 = vtanh.pop %v338
        %v381 = vtanh.pop %v351
        %v382 = vtanh.pop %v364
        %v383 = vtanh.pop %v377
        %384 = vst [vmem:[%s217] sm:$0xff] %v380
        %385 = vst [vmem:[%s217 + $0x8] sm:$0xff] %v381
        %386 = vst [vmem:[%s217 + $0x10] sm:$0xff] %v382
        %387 = vst [vmem:[%s217 + $0x18] sm:$0xff] %v383
        %s388 = smul.u32 4, %s14
        %p389 = scmp.lt.s32.totalorder %s388, 7
        %s390 = scalar_select %p389, %s388, 7
        %s391 = smul.addr %s390, 8
        %s392 = scalar_lea.vmem %s3, %s391
        // Predicated region
        $region56: #{autoencoder_forward.5} parent=50 // pred_check
          %p393 = pneg %p100
        $region57: #{autoencoder_forward.5} parent=50 // pred_check_branch
          %395 = sbr.rel (%p393) target = $region59
        $region58: #{autoencoder_forward.5} parent=50 // pred_region
          %s396 = smul.u32 4, %s14
        $region59: #{autoencoder_forward.5} parent=50 // pred_fallthru
          _
      $region51: #{autoencoder_forward.5} parent=5 // pred_fallthru
        _
      %p397 = scmp.le.s32.totalorder 2, %s9
      // Predicated region
      $region60: #{autoencoder_forward.5} parent=5 // pred_check
        %p398 = pneg %p397
      $region61: #{autoencoder_forward.5} parent=5 // pred_check_branch
        %400 = sbr.rel (%p398) target = $region63
      $region62: #{autoencoder_forward.5} parent=5 // pred_region
        %s401 = ssub.s32 %s9, 2
        // Predicated region
        $region64: #{autoencoder_forward.5} parent=62 // pred_check
          %p402 = pneg %p106
        $region65: #{autoencoder_forward.5} parent=62 // pred_check_branch
          %404 = sbr.rel (%p402) target = $region67
        $region66: #{autoencoder_forward.5} parent=62 // pred_region
          %s405 = smul.u32 4, %s15
          %p406 = scmp.lt.s32.totalorder %s405, 7
          %s407 = scalar_select %p406, %s405, 7
          %s408 = smul.addr %s407, 8
          %s409 = scalar_lea.vmem %s3, %s408
        $region67: #{autoencoder_forward.5} parent=62 // pred_fallthru
          _
      $region63: #{autoencoder_forward.5} parent=5 // pred_fallthru
        _
    $region6: #{autoencoder_forward.5} parent=1 // loop_footer
      %s13 = sadd.s32 1, %s9
    $region7: #{autoencoder_forward.5} parent=1 // loop_footer_branch
      %8 = sbr.rel target = $region3
    $region8: #{autoencoder_forward.5} parent=1 // loop_exit
      _

// kernel: autoencoder_forward.6
$region0: #{autoencoder_forward.6}
  #allocation0 [shape = 'u32[]', space=smem, size = 0x4, offset = 0x4, fixed_abs, tag = 'smem constant byte address 0x4 - core index']
  #allocation1 [shape = 'u32[72,128]{1,0:T(1,128)}', space=vmem, size = 0x9000, scoped, tag = 'internal scratch']
  %s0 = inlined_call_operand.vmem [shape: bf16[36,192], index: 0, kind: input, shape index: {}]
  %s1 = inlined_call_operand.vmem [shape: bf16[192,120], index: 1, kind: input, shape index: {}]
  %s2 = inlined_call_operand.vmem [shape: f32[36,1], index: 2, kind: input, shape index: {}]
  %s3 = inlined_call_operand.vmem [shape: f32[36,120], index: 3, kind: output, shape index: {}]
  %s4 = sld [smem:[#allocation0]]
  $region22: #{autoencoder_forward.6} parent=0
    _
  %s6 = ssub.s32 1, %s4
  %s7 = scalar_select 0, %s6, %s4
  // Predicated region
  $region2: #{autoencoder_forward.6} parent=0 // pred_check
    _
  $region3: #{autoencoder_forward.6} parent=0 // pred_check_branch
    %9 = sbr.rel (0) target = $region5
  $region4: #{autoencoder_forward.6} parent=0 // pred_region
    _
  $region5: #{autoencoder_forward.6} parent=0 // pred_fallthru
    _
  // Predicated region
  $region6: #{autoencoder_forward.6} parent=0 // pred_check
    _
  $region7: #{autoencoder_forward.6} parent=0 // pred_check_branch
    %11 = sbr.rel (0) target = $region9
  $region8: #{autoencoder_forward.6} parent=0 // pred_region
    _
  $region9: #{autoencoder_forward.6} parent=0 // pred_fallthru
    _
  // Predicated region
  $region10: #{autoencoder_forward.6} parent=0 // pred_check
    _
  $region11: #{autoencoder_forward.6} parent=0 // pred_check_branch
    %13 = sbr.rel (0) target = $region13
  $region12: #{autoencoder_forward.6} parent=0 // pred_region
    _
  $region13: #{autoencoder_forward.6} parent=0 // pred_fallthru
    _
  %v15 = vld [vmem:[%s0] sm:$0xff]
  %v16 = vld [vmem:[%s0 + $0x8] sm:$0xff]
  %v17 = vld [vmem:[%s0 + $0x10] sm:$0xff]
  %v18 = vld [vmem:[%s0 + $0x18] sm:$0xff]
  %v19 = vld [vmem:[%s0 + $0x20] sm:$0x33]
  %v20 = vld [vmem:[%s1] sm:$0xf]
  %v21 = vld [vmem:[%s1 + $0x4] sm:$0xf]
  %v22 = vld [vmem:[%s1 + $0x8] sm:$0xf]
  %v23 = vld [vmem:[%s1 + $0xc] sm:$0xf]
  %v24 = vld [vmem:[%s1 + $0x10] sm:$0xf]
  %v25 = vld [vmem:[%s1 + $0x14] sm:$0xf]
  %v26 = vld [vmem:[%s1 + $0x18] sm:$0xf]
  %v27 = vld [vmem:[%s1 + $0x1c] sm:$0xf]
  %v28 = vld [vmem:[%s1 + $0x20] sm:$0xf]
  %v29 = vld [vmem:[%s1 + $0x24] sm:$0xf]
  %v30 = vld [vmem:[%s1 + $0x28] sm:$0xf]
  %v31 = vld [vmem:[%s1 + $0x2c] sm:$0xf]
  %v32 = vld [vmem:[%s1 + $0x30] sm:$0xf]
  %v33 = vld [vmem:[%s1 + $0x34] sm:$0xf]
  %v34 = vld [vmem:[%s1 + $0x38] sm:$0xf]
  %v35 = vld [vmem:[%s1 + $0x3c] sm:$0xf]
  %v36 = vld [vmem:[%s1 + $0x40] sm:$0xf]
  %v37 = vld [vmem:[%s1 + $0x44] sm:$0xf]
  %v38 = vld [vmem:[%s1 + $0x48] sm:$0xf]
  %v39 = vld [vmem:[%s1 + $0x4c] sm:$0xf]
  %v40 = vld [vmem:[%s1 + $0x50] sm:$0xf]
  %v41 = vld [vmem:[%s1 + $0x54] sm:$0xf]
  %v42 = vld [vmem:[%s1 + $0x58] sm:$0xf]
  %v43 = vld [vmem:[%s1 + $0x5c] sm:$0xf]
  %v44 = vld [vmem:[%s2] sm:$0xff]
  %v45 = vld [vmem:[%s2 + $0x8] sm:$0xff]
  %v46 = vld [vmem:[%s2 + $0x10] sm:$0xff]
  %v47 = vld [vmem:[%s2 + $0x18] sm:$0xff]
  %v48 = vld [vmem:[%s2 + $0x20] sm:$0xf]
  %50 = vset.pattern.permute.xlu0 0
  %51 = vperm.xlu0 %50, %v44
  %v52 = vpop.permute.xlu0 %51
  %55 = vset.pattern.permute.xlu0 0
  %56 = vperm.xlu0 %55, %v45
  %v57 = vpop.permute.xlu0 %56
  %60 = vset.pattern.permute.xlu0 0
  %61 = vperm.xlu0 %60, %v46
  %v62 = vpop.permute.xlu0 %61
  %65 = vset.pattern.permute.xlu0 0
  %66 = vperm.xlu0 %65, %v47
  %v67 = vpop.permute.xlu0 %66
  %70 = vset.pattern.permute.xlu0 0
  %71 = vperm.xlu0 %70, %v48
  %v72 = vpop.permute.xlu0 %71
  %v79 = vunpack.c.l.b16 %v15
  %v80 = vunpack.c.h.b16 %v15
  %v81 = vunpack.c.l.b16 %v16
  %v82 = vunpack.c.h.b16 %v16
  %v83 = vunpack.c.l.b16 %v17
  %v84 = vunpack.c.h.b16 %v17
  %v85 = vunpack.c.l.b16 %v18
  %v86 = vunpack.c.h.b16 %v18
  %v87 = vunpack.c.l.b16 %v19
  %v88 = vunpack.c.h.b16 %v19
  %v89 = vpack.c.b16 %v81, %v79
  %v90 = vpack.c.b16 %v82, %v80
  %v91 = vpack.c.b16 %v85, %v83
  %v92 = vpack.c.b16 %v86, %v84
  %v93 = vpack.c.b16 %v87, %v87
  %v94 = vpack.c.b16 %v88, %v88
  %v122 = vunpack.c.l.b16 %v20
  %v123 = vunpack.c.l.b16 %v21
  %v124 = vunpack.c.l.b16 %v22
  %v125 = vunpack.c.l.b16 %v23
  %v126 = vunpack.c.l.b16 %v24
  %v127 = vunpack.c.l.b16 %v25
  %v128 = vunpack.c.l.b16 %v26
  %v129 = vunpack.c.l.b16 %v27
  %v130 = vunpack.c.l.b16 %v28
  %v131 = vunpack.c.l.b16 %v29
  %v132 = vunpack.c.l.b16 %v30
  %v133 = vunpack.c.l.b16 %v31
  %v134 = vunpack.c.l.b16 %v32
  %v135 = vunpack.c.l.b16 %v33
  %v136 = vunpack.c.l.b16 %v34
  %v137 = vunpack.c.l.b16 %v35
  %v138 = vunpack.c.l.b16 %v36
  %v139 = vunpack.c.l.b16 %v37
  %v140 = vunpack.c.l.b16 %v38
  %v141 = vunpack.c.l.b16 %v39
  %v142 = vunpack.c.l.b16 %v40
  %v143 = vunpack.c.l.b16 %v41
  %v144 = vunpack.c.l.b16 %v42
  %v145 = vunpack.c.l.b16 %v43
  %v146 = vpack.c.b16 %v123, %v122
  %v147 = vpack.c.b16 %v125, %v124
  %v148 = vpack.c.b16 %v127, %v126
  %v149 = vpack.c.b16 %v129, %v128
  %v150 = vpack.c.b16 %v131, %v130
  %v151 = vpack.c.b16 %v133, %v132
  %v152 = vpack.c.b16 %v135, %v134
  %v153 = vpack.c.b16 %v137, %v136
  %v154 = vpack.c.b16 %v139, %v138
  %v155 = vpack.c.b16 %v141, %v140
  %v156 = vpack.c.b16 %v143, %v142
  %v157 = vpack.c.b16 %v145, %v144
  %vm170 = vcmask 523264
  %v172 = vsel %vm170, %v90, 0
  %v175 = vsel %vm170, %v92, 0
  %v178 = vsel %vm170, %v94, 0
  %180 = vmatpush.bf16.msra.mxu0 %v153
  %181 = vmatpush.bf16.msra.mxu0 %v152
  %182 = vmatpush.bf16.msra.mxu0 %v151
  %183 = vmatpush.bf16.msra.mxu0 %v150
  %184 = vmatpush.bf16.msra.mxu0 %v149
  %185 = vmatpush.bf16.msra.mxu0 %v148
  %186 = vmatpush.bf16.msra.mxu0 %v147
  %187 = vmatpush.bf16.msra.mxu0 %v146
  %188 = vmatmul.bf16.gmra.mxu0 %v89
  %v189 = vpop.f32.mrf.mxu0
  %v190 = vadd.f32 %v52, %v189
  %v191 = vpop.f32.mrf.mxu0
  %v192 = vadd.f32 %v57, %v191
  %193 = vmatmul.bf16.gmra.mxu0 %v91
  %v194 = vpop.f32.mrf.mxu0
  %v195 = vadd.f32 %v62, %v194
  %v196 = vpop.f32.mrf.mxu0
  %v197 = vadd.f32 %v67, %v196
  %198 = vmatmul.bf16.gmra.mxu0 %v93
  %v199 = vpop.f32.mrf.mxu0
  %v200 = vadd.f32 %v72, %v199
  %v201 = vpop.f32.mrf.mxu0
  %202 = vdwg.mxu0
  %203 = vmatpush.bf16.msra.mxu0 0
  %204 = vmatpush.bf16.msra.mxu0 0
  %205 = vmatpush.bf16.msra.mxu0 0
  %206 = vmatpush.bf16.msra.mxu0 0
  %207 = vmatpush.bf16.msra.mxu0 %v157
  %208 = vmatpush.bf16.msra.mxu0 %v156
  %209 = vmatpush.bf16.msra.mxu0 %v155
  %210 = vmatpush.bf16.msra.mxu0 %v154
  %211 = vmatmul.bf16.gmra.mxu0 %v172
  %v212 = vpop.f32.mrf.mxu0
  %v213 = vadd.f32 %v190, %v212
  %v214 = vpop.f32.mrf.mxu0
  %v215 = vadd.f32 %v192, %v214
  %216 = vmatmul.bf16.gmra.mxu0 %v175
  %v217 = vpop.f32.mrf.mxu0
  %v218 = vadd.f32 %v195, %v217
  %v219 = vpop.f32.mrf.mxu0
  %v220 = vadd.f32 %v197, %v219
  %221 = vmatmul.bf16.gmra.mxu0 %v178
  %v222 = vpop.f32.mrf.mxu0
  %v223 = vadd.f32 %v200, %v222
  %v224 = vpop.f32.mrf.mxu0
  %225 = vdwg.mxu0
  %v226 = vtanh.pop %v213
  %v227 = vtanh.pop %v215
  %v228 = vtanh.pop %v218
  %v229 = vtanh.pop %v220
  %v230 = vtanh.pop %v223
  %vm231 = vcmask 982016
  %232 = vst.msk [vmem:[%s3] sm:$0xff] %vm231, %v226
  %233 = vst.msk [vmem:[%s3 + $0x8] sm:$0xff] %vm231, %v227
  %234 = vst.msk [vmem:[%s3 + $0x10] sm:$0xff] %vm231, %v228
  %235 = vst.msk [vmem:[%s3 + $0x18] sm:$0xff] %vm231, %v229
  %vm236 = vcmask 977920
  %237 = vst.msk [vmem:[%s3 + $0x20] sm:$0xf] %vm236, %v230
  // Predicated region
  $region14: #{autoencoder_forward.6} parent=0 // pred_check
    _
  $region15: #{autoencoder_forward.6} parent=0 // pred_check_branch
    %239 = sbr.rel (0) target = $region17
  $region16: #{autoencoder_forward.6} parent=0 // pred_region
    _
  $region17: #{autoencoder_forward.6} parent=0 // pred_fallthru
    _
  // Predicated region
  $region18: #{autoencoder_forward.6} parent=0 // pred_check
    _
  $region19: #{autoencoder_forward.6} parent=0 // pred_check_branch
    %241 = sbr.rel (0) target = $region21
  $region20: #{autoencoder_forward.6} parent=0 // pred_region
    _
  $region21: #{autoencoder_forward.6} parent=0 // pred_fallthru
    _

// kernel: autoencoder_forward.8
$region0: #{autoencoder_forward.8}
  #allocation0 [shape = 'u32[]', space=smem, size = 0x4, offset = 0x4, fixed_abs, tag = 'smem constant byte address 0x4 - core index']
  #allocation1 [shape = 'u32[72,128]{1,0:T(1,128)}', space=vmem, size = 0x9000, scoped, tag = 'internal scratch']
  %s0 = inlined_call_operand.vmem [shape: bf16[120,36], index: 0, kind: input, shape index: {}]
  %s1 = inlined_call_operand.vmem [shape: bf16[36,192], index: 1, kind: input, shape index: {}]
  %s2 = inlined_call_operand.vmem [shape: f32[120,192], index: 2, kind: output, shape index: {}]
  %s3 = sld [smem:[#allocation0]]
  $region18: #{autoencoder_forward.8} parent=0
    _
  %s5 = ssub.s32 1, %s3
  %s6 = scalar_select 0, %s5, %s3
  // Predicated region
  $region2: #{autoencoder_forward.8} parent=0 // pred_check
    _
  $region3: #{autoencoder_forward.8} parent=0 // pred_check_branch
    %8 = sbr.rel (0) target = $region5
  $region4: #{autoencoder_forward.8} parent=0 // pred_region
    _
  $region5: #{autoencoder_forward.8} parent=0 // pred_fallthru
    _
  // Predicated region
  $region6: #{autoencoder_forward.8} parent=0 // pred_check
    _
  $region7: #{autoencoder_forward.8} parent=0 // pred_check_branch
    %10 = sbr.rel (0) target = $region9
  $region8: #{autoencoder_forward.8} parent=0 // pred_region
    _
  $region9: #{autoencoder_forward.8} parent=0 // pred_fallthru
    _
  %v12 = vld [vmem:[%s0] sm:$0xf]
  %v13 = vld [vmem:[%s0 + $0x4] sm:$0xf]
  %v14 = vld [vmem:[%s0 + $0x8] sm:$0xf]
  %v15 = vld [vmem:[%s0 + $0xc] sm:$0xf]
  %v16 = vld [vmem:[%s0 + $0x10] sm:$0xf]
  %v17 = vld [vmem:[%s0 + $0x14] sm:$0xf]
  %v18 = vld [vmem:[%s0 + $0x18] sm:$0xf]
  %v19 = vld [vmem:[%s0 + $0x1c] sm:$0xf]
  %v20 = vld [vmem:[%s0 + $0x20] sm:$0xf]
  %v21 = vld [vmem:[%s0 + $0x24] sm:$0xf]
  %v22 = vld [vmem:[%s0 + $0x28] sm:$0xf]
  %v23 = vld [vmem:[%s0 + $0x2c] sm:$0xf]
  %v24 = vld [vmem:[%s0 + $0x30] sm:$0xf]
  %v25 = vld [vmem:[%s0 + $0x34] sm:$0xf]
  %v26 = vld [vmem:[%s0 + $0x38] sm:$0xf]
  %v27 = vld [vmem:[%s1] sm:$0xff]
  %v28 = vld [vmem:[%s1 + $0x8] sm:$0xff]
  %v29 = vld [vmem:[%s1 + $0x10] sm:$0xff]
  %v30 = vld [vmem:[%s1 + $0x18] sm:$0xff]
  %v31 = vld [vmem:[%s1 + $0x20] sm:$0x33]
  %v47 = vunpack.c.l.b16 %v12
  %v48 = vunpack.c.l.b16 %v13
  %v49 = vunpack.c.l.b16 %v14
  %v50 = vunpack.c.l.b16 %v15
  %v51 = vunpack.c.l.b16 %v16
  %v52 = vunpack.c.l.b16 %v17
  %v53 = vunpack.c.l.b16 %v18
  %v54 = vunpack.c.l.b16 %v19
  %v55 = vunpack.c.l.b16 %v20
  %v56 = vunpack.c.l.b16 %v21
  %v57 = vunpack.c.l.b16 %v22
  %v58 = vunpack.c.l.b16 %v23
  %v59 = vunpack.c.l.b16 %v24
  %v60 = vunpack.c.l.b16 %v25
  %v61 = vunpack.c.l.b16 %v26
  %v62 = vpack.c.b16 %v48, %v47
  %v63 = vpack.c.b16 %v50, %v49
  %v64 = vpack.c.b16 %v52, %v51
  %v65 = vpack.c.b16 %v54, %v53
  %v66 = vpack.c.b16 %v56, %v55
  %v67 = vpack.c.b16 %v58, %v57
  %v68 = vpack.c.b16 %v60, %v59
  %v69 = vpack.c.b16 %v61, %v61
  %v75 = vunpack.c.l.b16 %v27
  %v76 = vunpack.c.h.b16 %v27
  %v77 = vunpack.c.l.b16 %v28
  %v78 = vunpack.c.h.b16 %v28
  %v79 = vunpack.c.l.b16 %v29
  %v80 = vunpack.c.h.b16 %v29
  %v81 = vunpack.c.l.b16 %v30
  %v82 = vunpack.c.h.b16 %v30
  %v83 = vunpack.c.l.b16 %v31
  %v84 = vunpack.c.h.b16 %v31
  %v85 = vpack.c.b16 %v77, %v75
  %v86 = vpack.c.b16 %v78, %v76
  %v87 = vpack.c.b16 %v81, %v79
  %v88 = vpack.c.b16 %v82, %v80
  %v89 = vpack.c.b16 %v83, %v83
  %v90 = vpack.c.b16 %v84, %v84
  %vm95 = vcmask 293888
  %v97 = vsel %vm95, %v62, 0
  %v100 = vsel %vm95, %v63, 0
  %v103 = vsel %vm95, %v64, 0
  %v106 = vsel %vm95, %v65, 0
  %v109 = vsel %vm95, %v66, 0
  %v112 = vsel %vm95, %v67, 0
  %v115 = vsel %vm95, %v68, 0
  %v118 = vsel %vm95, %v69, 0
  %vm120 = vcmask 1041408
  %v122 = vsel %vm120, %v89, 0
  %v125 = vsel %vm120, %v90, 0
  %127 = vmatpush.bf16.msra.mxu0 0
  %128 = vmatpush.bf16.msra.mxu0 0
  %129 = vmatpush.bf16.msra.mxu0 0
  %130 = vmatpush.bf16.msra.mxu0 0
  %131 = vmatpush.bf16.msra.mxu0 0
  %132 = vmatpush.bf16.msra.mxu0 %v122
  %133 = vmatpush.bf16.msra.mxu0 %v87
  %134 = vmatpush.bf16.msra.mxu0 %v85
  %135 = vmatmul.bf16.gmra.mxu0 %v97
  %v136 = vpop.f32.mrf.mxu0
  %v137 = vadd.f32 0.0, %v136
  %v138 = vpop.f32.mrf.mxu0
  %v139 = vadd.f32 0.0, %v138
  %140 = vmatmul.bf16.gmra.mxu0 %v100
  %v141 = vpop.f32.mrf.mxu0
  %v142 = vadd.f32 0.0, %v141
  %v143 = vpop.f32.mrf.mxu0
  %v144 = vadd.f32 0.0, %v143
  %145 = vmatmul.bf16.gmra.mxu0 %v103
  %v146 = vpop.f32.mrf.mxu0
  %v147 = vadd.f32 0.0, %v146
  %v148 = vpop.f32.mrf.mxu0
  %v149 = vadd.f32 0.0, %v148
  %150 = vmatmul.bf16.gmra.mxu0 %v106
  %v151 = vpop.f32.mrf.mxu0
  %v152 = vadd.f32 0.0, %v151
  %v153 = vpop.f32.mrf.mxu0
  %v154 = vadd.f32 0.0, %v153
  %155 = vmatmul.bf16.gmra.mxu0 %v109
  %v156 = vpop.f32.mrf.mxu0
  %v157 = vadd.f32 0.0, %v156
  %v158 = vpop.f32.mrf.mxu0
  %v159 = vadd.f32 0.0, %v158
  %160 = vmatmul.bf16.gmra.mxu0 %v112
  %v161 = vpop.f32.mrf.mxu0
  %v162 = vadd.f32 0.0, %v161
  %v163 = vpop.f32.mrf.mxu0
  %v164 = vadd.f32 0.0, %v163
  %165 = vmatmul.bf16.gmra.mxu0 %v115
  %v166 = vpop.f32.mrf.mxu0
  %v167 = vadd.f32 0.0, %v166
  %v168 = vpop.f32.mrf.mxu0
  %v169 = vadd.f32 0.0, %v168
  %170 = vmatmul.bf16.gmra.mxu0 %v118
  %v171 = vpop.f32.mrf.mxu0
  %v172 = vadd.f32 0.0, %v171
  %v173 = vpop.f32.mrf.mxu0
  %174 = vdwg.mxu0
  %175 = vmatpush.bf16.msra.mxu0 0
  %176 = vmatpush.bf16.msra.mxu0 0
  %177 = vmatpush.bf16.msra.mxu0 0
  %178 = vmatpush.bf16.msra.mxu0 0
  %179 = vmatpush.bf16.msra.mxu0 0
  %180 = vmatpush.bf16.msra.mxu0 %v125
  %181 = vmatpush.bf16.msra.mxu0 %v88
  %182 = vmatpush.bf16.msra.mxu0 %v86
  %183 = vmatmul.bf16.gmra.mxu0 %v97
  %v184 = vpop.f32.mrf.mxu0
  %v185 = vadd.f32 0.0, %v184
  %v186 = vpop.f32.mrf.mxu0
  %v187 = vadd.f32 0.0, %v186
  %188 = vmatmul.bf16.gmra.mxu0 %v100
  %v189 = vpop.f32.mrf.mxu0
  %v190 = vadd.f32 0.0, %v189
  %v191 = vpop.f32.mrf.mxu0
  %v192 = vadd.f32 0.0, %v191
  %193 = vmatmul.bf16.gmra.mxu0 %v103
  %v194 = vpop.f32.mrf.mxu0
  %v195 = vadd.f32 0.0, %v194
  %v196 = vpop.f32.mrf.mxu0
  %v197 = vadd.f32 0.0, %v196
  %198 = vmatmul.bf16.gmra.mxu0 %v106
  %v199 = vpop.f32.mrf.mxu0
  %v200 = vadd.f32 0.0, %v199
  %v201 = vpop.f32.mrf.mxu0
  %v202 = vadd.f32 0.0, %v201
  %203 = vmatmul.bf16.gmra.mxu0 %v109
  %v204 = vpop.f32.mrf.mxu0
  %v205 = vadd.f32 0.0, %v204
  %v206 = vpop.f32.mrf.mxu0
  %v207 = vadd.f32 0.0, %v206
  %208 = vmatmul.bf16.gmra.mxu0 %v112
  %v209 = vpop.f32.mrf.mxu0
  %v210 = vadd.f32 0.0, %v209
  %v211 = vpop.f32.mrf.mxu0
  %v212 = vadd.f32 0.0, %v211
  %213 = vmatmul.bf16.gmra.mxu0 %v115
  %v214 = vpop.f32.mrf.mxu0
  %v215 = vadd.f32 0.0, %v214
  %v216 = vpop.f32.mrf.mxu0
  %v217 = vadd.f32 0.0, %v216
  %218 = vmatmul.bf16.gmra.mxu0 %v118
  %v219 = vpop.f32.mrf.mxu0
  %v220 = vadd.f32 0.0, %v219
  %v221 = vpop.f32.mrf.mxu0
  %222 = vdwg.mxu0
  %223 = vst [vmem:[%s2] sm:$0xff] %v137
  %vm224 = vcmask 523264
  %225 = vst.msk [vmem:[%s2 + $0x8] sm:$0xff] %vm224, %v185
  %226 = vst [vmem:[%s2 + $0x10] sm:$0xff] %v139
  %227 = vst.msk [vmem:[%s2 + $0x18] sm:$0xff] %vm224, %v187
  %228 = vst [vmem:[%s2 + $0x20] sm:$0xff] %v142
  %229 = vst.msk [vmem:[%s2 + $0x28] sm:$0xff] %vm224, %v190
  %230 = vst [vmem:[%s2 + $0x30] sm:$0xff] %v144
  %231 = vst.msk [vmem:[%s2 + $0x38] sm:$0xff] %vm224, %v192
  %232 = vst [vmem:[%s2 + $0x40] sm:$0xff] %v147
  %233 = vst.msk [vmem:[%s2 + $0x48] sm:$0xff] %vm224, %v195
  %234 = vst [vmem:[%s2 + $0x50] sm:$0xff] %v149
  %235 = vst.msk [vmem:[%s2 + $0x58] sm:$0xff] %vm224, %v197
  %236 = vst [vmem:[%s2 + $0x60] sm:$0xff] %v152
  %237 = vst.msk [vmem:[%s2 + $0x68] sm:$0xff] %vm224, %v200
  %238 = vst [vmem:[%s2 + $0x70] sm:$0xff] %v154
  %239 = vst.msk [vmem:[%s2 + $0x78] sm:$0xff] %vm224, %v202
  %240 = vst [vmem:[%s2 + $0x80] sm:$0xff] %v157
  %241 = vst.msk [vmem:[%s2 + $0x88] sm:$0xff] %vm224, %v205
  %242 = vst [vmem:[%s2 + $0x90] sm:$0xff] %v159
  %243 = vst.msk [vmem:[%s2 + $0x98] sm:$0xff] %vm224, %v207
  %244 = vst [vmem:[%s2 + $0xa0] sm:$0xff] %v162
  %245 = vst.msk [vmem:[%s2 + $0xa8] sm:$0xff] %vm224, %v210
  %246 = vst [vmem:[%s2 + $0xb0] sm:$0xff] %v164
  %247 = vst.msk [vmem:[%s2 + $0xb8] sm:$0xff] %vm224, %v212
  %248 = vst [vmem:[%s2 + $0xc0] sm:$0xff] %v167
  %249 = vst.msk [vmem:[%s2 + $0xc8] sm:$0xff] %vm224, %v215
  %250 = vst [vmem:[%s2 + $0xd0] sm:$0xff] %v169
  %251 = vst.msk [vmem:[%s2 + $0xd8] sm:$0xff] %vm224, %v217
  %252 = vst [vmem:[%s2 + $0xe0] sm:$0xff] %v172
  %253 = vst.msk [vmem:[%s2 + $0xe8] sm:$0xff] %vm224, %v220
  // Predicated region
  $region10: #{autoencoder_forward.8} parent=0 // pred_check
    _
  $region11: #{autoencoder_forward.8} parent=0 // pred_check_branch
    %255 = sbr.rel (0) target = $region13
  $region12: #{autoencoder_forward.8} parent=0 // pred_region
    _
  $region13: #{autoencoder_forward.8} parent=0 // pred_fallthru
    _
  // Predicated region
  $region14: #{autoencoder_forward.8} parent=0 // pred_check
    _
  $region15: #{autoencoder_forward.8} parent=0 // pred_check_branch
    %257 = sbr.rel (0) target = $region17
  $region16: #{autoencoder_forward.8} parent=0 // pred_region
    _
  $region17: #{autoencoder_forward.8} parent=0 // pred_fallthru
    _

// kernel: autoencoder_forward.7
$region0: #{autoencoder_forward.7}
  #allocation0 [shape = 'u32[]', space=smem, size = 0x4, offset = 0x4, fixed_abs, tag = 'smem constant byte address 0x4 - core index']
  #allocation1 [shape = 'u32[72,128]{1,0:T(1,128)}', space=vmem, size = 0x9000, scoped, tag = 'internal scratch']
  %s0 = inlined_call_operand.vmem [shape: f32[8,864], index: 0, kind: input, shape index: {}]
  %s1 = inlined_call_operand.vmem [shape: f32[864,64], index: 1, kind: input, shape index: {}]
  %s2 = inlined_call_operand.vmem [shape: f32[1,64], index: 2, kind: input, shape index: {}]
  %s3 = inlined_call_operand.vmem [shape: f32[4,64,5], index: 3, kind: input, shape index: {}]
  %s4 = inlined_call_operand.vmem [shape: f32[1,5], index: 4, kind: input, shape index: {}]
  %s5 = inlined_call_operand.vmem [shape: f32[4,5,64], index: 5, kind: input, shape index: {}]
  %s6 = inlined_call_operand.vmem [shape: f32[4,1,64], index: 6, kind: input, shape index: {}]
  %s7 = inlined_call_operand.vmem [shape: f32[64,864], index: 7, kind: input, shape index: {}]
  %s8 = inlined_call_operand.vmem [shape: f32[8,864], index: 8, kind: output, shape index: {}]
  %s9 = sld [smem:[#allocation0]]
  $region42: #{autoencoder_forward.7} parent=0
    _
  %s11 = ssub.s32 1, %s9
  %s12 = scalar_select 0, %s11, %s9
  // Predicated region
  $region2: #{autoencoder_forward.7} parent=0 // pred_check
    _
  $region3: #{autoencoder_forward.7} parent=0 // pred_check_branch
    %14 = sbr.rel (0) target = $region5
  $region4: #{autoencoder_forward.7} parent=0 // pred_region
    _
  $region5: #{autoencoder_forward.7} parent=0 // pred_fallthru
    _
  // Predicated region
  $region6: #{autoencoder_forward.7} parent=0 // pred_check
    _
  $region7: #{autoencoder_forward.7} parent=0 // pred_check_branch
    %16 = sbr.rel (0) target = $region9
  $region8: #{autoencoder_forward.7} parent=0 // pred_region
    _
  $region9: #{autoencoder_forward.7} parent=0 // pred_fallthru
    _
  // Predicated region
  $region10: #{autoencoder_forward.7} parent=0 // pred_check
    _
  $region11: #{autoencoder_forward.7} parent=0 // pred_check_branch
    %18 = sbr.rel (0) target = $region13
  $region12: #{autoencoder_forward.7} parent=0 // pred_region
    _
  $region13: #{autoencoder_forward.7} parent=0 // pred_fallthru
    _
  // Predicated region
  $region14: #{autoencoder_forward.7} parent=0 // pred_check
    _
  $region15: #{autoencoder_forward.7} parent=0 // pred_check_branch
    %20 = sbr.rel (0) target = $region17
  $region16: #{autoencoder_forward.7} parent=0 // pred_region
    _
  $region17: #{autoencoder_forward.7} parent=0 // pred_fallthru
    _
  // Predicated region
  $region18: #{autoencoder_forward.7} parent=0 // pred_check
    _
  $region19: #{autoencoder_forward.7} parent=0 // pred_check_branch
    %22 = sbr.rel (0) target = $region21
  $region20: #{autoencoder_forward.7} parent=0 // pred_region
    _
  $region21: #{autoencoder_forward.7} parent=0 // pred_fallthru
    _
  // Predicated region
  $region22: #{autoencoder_forward.7} parent=0 // pred_check
    _
  $region23: #{autoencoder_forward.7} parent=0 // pred_check_branch
    %24 = sbr.rel (0) target = $region25
  $region24: #{autoencoder_forward.7} parent=0 // pred_region
    _
  $region25: #{autoencoder_forward.7} parent=0 // pred_fallthru
    _
  // Predicated region
  $region26: #{autoencoder_forward.7} parent=0 // pred_check
    _
  $region27: #{autoencoder_forward.7} parent=0 // pred_check_branch
    %26 = sbr.rel (0) target = $region29
  $region28: #{autoencoder_forward.7} parent=0 // pred_region
    _
  $region29: #{autoencoder_forward.7} parent=0 // pred_fallthru
    _
  // Predicated region
  $region30: #{autoencoder_forward.7} parent=0 // pred_check
    _
  $region31: #{autoencoder_forward.7} parent=0 // pred_check_branch
    %28 = sbr.rel (0) target = $region33
  $region32: #{autoencoder_forward.7} parent=0 // pred_region
    _
  $region33: #{autoencoder_forward.7} parent=0 // pred_fallthru
    _
  %v29 = vld [vmem:[%s0] sm:$0xff]
  %v30 = vld [vmem:[%s0 + $0x8] sm:$0xff]
  %v31 = vld [vmem:[%s0 + $0x10] sm:$0xff]
  %v32 = vld [vmem:[%s0 + $0x18] sm:$0xff]
  %v33 = vld [vmem:[%s0 + $0x20] sm:$0xff]
  %v34 = vld [vmem:[%s0 + $0x28] sm:$0xff]
  %v35 = vld [vmem:[%s0 + $0x30] sm:$0xff]
  %v36 = vld [vmem:[%s1] sm:$0xff]
  %v37 = vld [vmem:[%s1 + $0x8] sm:$0xff]
  %v38 = vld [vmem:[%s1 + $0x10] sm:$0xff]
  %v39 = vld [vmem:[%s1 + $0x18] sm:$0xff]
  %v40 = vld [vmem:[%s1 + $0x20] sm:$0xff]
  %v41 = vld [vmem:[%s1 + $0x28] sm:$0xff]
  %v42 = vld [vmem:[%s1 + $0x30] sm:$0xff]
  %v43 = vld [vmem:[%s1 + $0x38] sm:$0xff]
  %v44 = vld [vmem:[%s1 + $0x40] sm:$0xff]
  %v45 = vld [vmem:[%s1 + $0x48] sm:$0xff]
  %v46 = vld [vmem:[%s1 + $0x50] sm:$0xff]
  %v47 = vld [vmem:[%s1 + $0x58] sm:$0xff]
  %v48 = vld [vmem:[%s1 + $0x60] sm:$0xff]
  %v49 = vld [vmem:[%s1 + $0x68] sm:$0xff]
  %v50 = vld [vmem:[%s1 + $0x70] sm:$0xff]
  %v51 = vld [vmem:[%s1 + $0x78] sm:$0xff]
  %v52 = vld [vmem:[%s1 + $0x80] sm:$0xff]
  %v53 = vld [vmem:[%s1 + $0x88] sm:$0xff]
  %v54 = vld [vmem:[%s1 + $0x90] sm:$0xff]
  %v55 = vld [vmem:[%s1 + $0x98] sm:$0xff]
  %v56 = vld [vmem:[%s1 + $0xa0] sm:$0xff]
  %v57 = vld [vmem:[%s1 + $0xa8] sm:$0xff]
  %v58 = vld [vmem:[%s1 + $0xb0] sm:$0xff]
  %v59 = vld [vmem:[%s1 + $0xb8] sm:$0xff]
  %v60 = vld [vmem:[%s1 + $0xc0] sm:$0xff]
  %v61 = vld [vmem:[%s1 + $0xc8] sm:$0xff]
  %v62 = vld [vmem:[%s1 + $0xd0] sm:$0xff]
  %v63 = vld [vmem:[%s1 + $0xd8] sm:$0xff]
  %v64 = vld [vmem:[%s1 + $0xe0] sm:$0xff]
  %v65 = vld [vmem:[%s1 + $0xe8] sm:$0xff]
  %v66 = vld [vmem:[%s1 + $0xf0] sm:$0xff]
  %v67 = vld [vmem:[%s1 + $0xf8] sm:$0xff]
  %v68 = vld [vmem:[%s1 + $0x100] sm:$0xff]
  %v69 = vld [vmem:[%s1 + $0x108] sm:$0xff]
  %v70 = vld [vmem:[%s1 + $0x110] sm:$0xff]
  %v71 = vld [vmem:[%s1 + $0x118] sm:$0xff]
  %v72 = vld [vmem:[%s1 + $0x120] sm:$0xff]
  %v73 = vld [vmem:[%s1 + $0x128] sm:$0xff]
  %v74 = vld [vmem:[%s1 + $0x130] sm:$0xff]
  %v75 = vld [vmem:[%s1 + $0x138] sm:$0xff]
  %v76 = vld [vmem:[%s1 + $0x140] sm:$0xff]
  %v77 = vld [vmem:[%s1 + $0x148] sm:$0xff]
  %v78 = vld [vmem:[%s1 + $0x150] sm:$0xff]
  %v79 = vld [vmem:[%s1 + $0x158] sm:$0xff]
  %v80 = vld [vmem:[%s1 + $0x160] sm:$0xff]
  %v81 = vld [vmem:[%s1 + $0x168] sm:$0xff]
  %v82 = vld [vmem:[%s1 + $0x170] sm:$0xff]
  %v83 = vld [vmem:[%s1 + $0x178] sm:$0xff]
  %v84 = vld [vmem:[%s1 + $0x180] sm:$0xff]
  %v85 = vld [vmem:[%s1 + $0x188] sm:$0xff]
  %v86 = vld [vmem:[%s1 + $0x190] sm:$0xff]
  %v87 = vld [vmem:[%s1 + $0x198] sm:$0xff]
  %v88 = vld [vmem:[%s1 + $0x1a0] sm:$0xff]
  %v89 = vld [vmem:[%s1 + $0x1a8] sm:$0xff]
  %v90 = vld [vmem:[%s1 + $0x1b0] sm:$0xff]
  %v91 = vld [vmem:[%s1 + $0x1b8] sm:$0xff]
  %v92 = vld [vmem:[%s1 + $0x1c0] sm:$0xff]
  %v93 = vld [vmem:[%s1 + $0x1c8] sm:$0xff]
  %v94 = vld [vmem:[%s1 + $0x1d0] sm:$0xff]
  %v95 = vld [vmem:[%s1 + $0x1d8] sm:$0xff]
  %v96 = vld [vmem:[%s1 + $0x1e0] sm:$0xff]
  %v97 = vld [vmem:[%s1 + $0x1e8] sm:$0xff]
  %v98 = vld [vmem:[%s1 + $0x1f0] sm:$0xff]
  %v99 = vld [vmem:[%s1 + $0x1f8] sm:$0xff]
  %v100 = vld [vmem:[%s1 + $0x200] sm:$0xff]
  %v101 = vld [vmem:[%s1 + $0x208] sm:$0xff]
  %v102 = vld [vmem:[%s1 + $0x210] sm:$0xff]
  %v103 = vld [vmem:[%s1 + $0x218] sm:$0xff]
  %v104 = vld [vmem:[%s1 + $0x220] sm:$0xff]
  %v105 = vld [vmem:[%s1 + $0x228] sm:$0xff]
  %v106 = vld [vmem:[%s1 + $0x230] sm:$0xff]
  %v107 = vld [vmem:[%s1 + $0x238] sm:$0xff]
  %v108 = vld [vmem:[%s1 + $0x240] sm:$0xff]
  %v109 = vld [vmem:[%s1 + $0x248] sm:$0xff]
  %v110 = vld [vmem:[%s1 + $0x250] sm:$0xff]
  %v111 = vld [vmem:[%s1 + $0x258] sm:$0xff]
  %v112 = vld [vmem:[%s1 + $0x260] sm:$0xff]
  %v113 = vld [vmem:[%s1 + $0x268] sm:$0xff]
  %v114 = vld [vmem:[%s1 + $0x270] sm:$0xff]
  %v115 = vld [vmem:[%s1 + $0x278] sm:$0xff]
  %v116 = vld [vmem:[%s1 + $0x280] sm:$0xff]
  %v117 = vld [vmem:[%s1 + $0x288] sm:$0xff]
  %v118 = vld [vmem:[%s1 + $0x290] sm:$0xff]
  %v119 = vld [vmem:[%s1 + $0x298] sm:$0xff]
  %v120 = vld [vmem:[%s1 + $0x2a0] sm:$0xff]
  %v121 = vld [vmem:[%s1 + $0x2a8] sm:$0xff]
  %v122 = vld [vmem:[%s1 + $0x2b0] sm:$0xff]
  %v123 = vld [vmem:[%s1 + $0x2b8] sm:$0xff]
  %v124 = vld [vmem:[%s1 + $0x2c0] sm:$0xff]
  %v125 = vld [vmem:[%s1 + $0x2c8] sm:$0xff]
  %v126 = vld [vmem:[%s1 + $0x2d0] sm:$0xff]
  %v127 = vld [vmem:[%s1 + $0x2d8] sm:$0xff]
  %v128 = vld [vmem:[%s1 + $0x2e0] sm:$0xff]
  %v129 = vld [vmem:[%s1 + $0x2e8] sm:$0xff]
  %v130 = vld [vmem:[%s1 + $0x2f0] sm:$0xff]
  %v131 = vld [vmem:[%s1 + $0x2f8] sm:$0xff]
  %v132 = vld [vmem:[%s1 + $0x300] sm:$0xff]
  %v133 = vld [vmem:[%s1 + $0x308] sm:$0xff]
  %v134 = vld [vmem:[%s1 + $0x310] sm:$0xff]
  %v135 = vld [vmem:[%s1 + $0x318] sm:$0xff]
  %v136 = vld [vmem:[%s1 + $0x320] sm:$0xff]
  %v137 = vld [vmem:[%s1 + $0x328] sm:$0xff]
  %v138 = vld [vmem:[%s1 + $0x330] sm:$0xff]
  %v139 = vld [vmem:[%s1 + $0x338] sm:$0xff]
  %v140 = vld [vmem:[%s1 + $0x340] sm:$0xff]
  %v141 = vld [vmem:[%s1 + $0x348] sm:$0xff]
  %v142 = vld [vmem:[%s1 + $0x350] sm:$0xff]
  %v143 = vld [vmem:[%s1 + $0x358] sm:$0xff]
  %v144 = vld [vmem:[%s2] sm:$0x1]
  %v146 = vperm.slane %v144, 0
  %vm148 = vcmask 785408
  %v150 = vsel %vm148, %v35, 0
  %152 = vmatpush.msra.mxu0 %v51
  %153 = vmatpush.msra.mxu0 %v50
  %154 = vmatpush.msra.mxu0 %v49
  %155 = vmatpush.msra.mxu0 %v48
  %156 = vmatpush.msra.mxu0 %v47
  %157 = vmatpush.msra.mxu0 %v46
  %158 = vmatpush.msra.mxu0 %v45
  %159 = vmatpush.msra.mxu0 %v44
  %160 = vmatpush.msra.mxu0 %v43
  %161 = vmatpush.msra.mxu0 %v42
  %162 = vmatpush.msra.mxu0 %v41
  %163 = vmatpush.msra.mxu0 %v40
  %164 = vmatpush.msra.mxu0 %v39
  %165 = vmatpush.msra.mxu0 %v38
  %166 = vmatpush.msra.mxu0 %v37
  %167 = vmatpush.msra.mxu0 %v36
  %168 = vmatmul.f32.gmra.mxu0 %v29
  %v169 = vpop.f32.mrf.mxu0
  %v170 = vadd.f32 %v146, %v169
  %171 = vdwg.mxu0
  %172 = vmatpush.msra.mxu0 %v67
  %173 = vmatpush.msra.mxu0 %v66
  %174 = vmatpush.msra.mxu0 %v65
  %175 = vmatpush.msra.mxu0 %v64
  %176 = vmatpush.msra.mxu0 %v63
  %177 = vmatpush.msra.mxu0 %v62
  %178 = vmatpush.msra.mxu0 %v61
  %179 = vmatpush.msra.mxu0 %v60
  %180 = vmatpush.msra.mxu0 %v59
  %181 = vmatpush.msra.mxu0 %v58
  %182 = vmatpush.msra.mxu0 %v57
  %183 = vmatpush.msra.mxu0 %v56
  %184 = vmatpush.msra.mxu0 %v55
  %185 = vmatpush.msra.mxu0 %v54
  %186 = vmatpush.msra.mxu0 %v53
  %187 = vmatpush.msra.mxu0 %v52
  %188 = vmatmul.f32.gmra.mxu0 %v30
  %v189 = vpop.f32.mrf.mxu0
  %v190 = vadd.f32 %v170, %v189
  %191 = vdwg.mxu0
  %192 = vmatpush.msra.mxu0 %v83
  %193 = vmatpush.msra.mxu0 %v82
  %194 = vmatpush.msra.mxu0 %v81
  %195 = vmatpush.msra.mxu0 %v80
  %196 = vmatpush.msra.mxu0 %v79
  %197 = vmatpush.msra.mxu0 %v78
  %198 = vmatpush.msra.mxu0 %v77
  %199 = vmatpush.msra.mxu0 %v76
  %200 = vmatpush.msra.mxu0 %v75
  %201 = vmatpush.msra.mxu0 %v74
  %202 = vmatpush.msra.mxu0 %v73
  %203 = vmatpush.msra.mxu0 %v72
  %204 = vmatpush.msra.mxu0 %v71
  %205 = vmatpush.msra.mxu0 %v70
  %206 = vmatpush.msra.mxu0 %v69
  %207 = vmatpush.msra.mxu0 %v68
  %208 = vmatmul.f32.gmra.mxu0 %v31
  %v209 = vpop.f32.mrf.mxu0
  %v210 = vadd.f32 %v190, %v209
  %211 = vdwg.mxu0
  %212 = vmatpush.msra.mxu0 %v99
  %213 = vmatpush.msra.mxu0 %v98
  %214 = vmatpush.msra.mxu0 %v97
  %215 = vmatpush.msra.mxu0 %v96
  %216 = vmatpush.msra.mxu0 %v95
  %217 = vmatpush.msra.mxu0 %v94
  %218 = vmatpush.msra.mxu0 %v93
  %219 = vmatpush.msra.mxu0 %v92
  %220 = vmatpush.msra.mxu0 %v91
  %221 = vmatpush.msra.mxu0 %v90
  %222 = vmatpush.msra.mxu0 %v89
  %223 = vmatpush.msra.mxu0 %v88
  %224 = vmatpush.msra.mxu0 %v87
  %225 = vmatpush.msra.mxu0 %v86
  %226 = vmatpush.msra.mxu0 %v85
  %227 = vmatpush.msra.mxu0 %v84
  %228 = vmatmul.f32.gmra.mxu0 %v32
  %v229 = vpop.f32.mrf.mxu0
  %v230 = vadd.f32 %v210, %v229
  %231 = vdwg.mxu0
  %232 = vmatpush.msra.mxu0 %v115
  %233 = vmatpush.msra.mxu0 %v114
  %234 = vmatpush.msra.mxu0 %v113
  %235 = vmatpush.msra.mxu0 %v112
  %236 = vmatpush.msra.mxu0 %v111
  %237 = vmatpush.msra.mxu0 %v110
  %238 = vmatpush.msra.mxu0 %v109
  %239 = vmatpush.msra.mxu0 %v108
  %240 = vmatpush.msra.mxu0 %v107
  %241 = vmatpush.msra.mxu0 %v106
  %242 = vmatpush.msra.mxu0 %v105
  %243 = vmatpush.msra.mxu0 %v104
  %244 = vmatpush.msra.mxu0 %v103
  %245 = vmatpush.msra.mxu0 %v102
  %246 = vmatpush.msra.mxu0 %v101
  %247 = vmatpush.msra.mxu0 %v100
  %248 = vmatmul.f32.gmra.mxu0 %v33
  %v249 = vpop.f32.mrf.mxu0
  %v250 = vadd.f32 %v230, %v249
  %251 = vdwg.mxu0
  %252 = vmatpush.msra.mxu0 %v131
  %253 = vmatpush.msra.mxu0 %v130
  %254 = vmatpush.msra.mxu0 %v129
  %255 = vmatpush.msra.mxu0 %v128
  %256 = vmatpush.msra.mxu0 %v127
  %257 = vmatpush.msra.mxu0 %v126
  %258 = vmatpush.msra.mxu0 %v125
  %259 = vmatpush.msra.mxu0 %v124
  %260 = vmatpush.msra.mxu0 %v123
  %261 = vmatpush.msra.mxu0 %v122
  %262 = vmatpush.msra.mxu0 %v121
  %263 = vmatpush.msra.mxu0 %v120
  %264 = vmatpush.msra.mxu0 %v119
  %265 = vmatpush.msra.mxu0 %v118
  %266 = vmatpush.msra.mxu0 %v117
  %267 = vmatpush.msra.mxu0 %v116
  %268 = vmatmul.f32.gmra.mxu0 %v34
  %v269 = vpop.f32.mrf.mxu0
  %v270 = vadd.f32 %v250, %v269
  %271 = vdwg.mxu0
  %272 = vmatpush.msra.mxu0 0.0
  %273 = vmatpush.msra.mxu0 0.0
  %274 = vmatpush.msra.mxu0 0.0
  %275 = vmatpush.msra.mxu0 0.0
  %276 = vmatpush.msra.mxu0 %v143
  %277 = vmatpush.msra.mxu0 %v142
  %278 = vmatpush.msra.mxu0 %v141
  %279 = vmatpush.msra.mxu0 %v140
  %280 = vmatpush.msra.mxu0 %v139
  %281 = vmatpush.msra.mxu0 %v138
  %282 = vmatpush.msra.mxu0 %v137
  %283 = vmatpush.msra.mxu0 %v136
  %284 = vmatpush.msra.mxu0 %v135
  %285 = vmatpush.msra.mxu0 %v134
  %286 = vmatpush.msra.mxu0 %v133
  %287 = vmatpush.msra.mxu0 %v132
  %288 = vmatmul.f32.gmra.mxu0 %v150
  %v289 = vpop.f32.mrf.mxu0
  %v290 = vadd.f32 %v270, %v289
  %291 = vdwg.mxu0
  %v292 = vtanh.pop %v290
  %v293 = vld [vmem:[%s4] sm:$0x1]
  %v294 = vld [vmem:[%s3] sm:$0xff]
  %v295 = vld [vmem:[%s3 + $0x8] sm:$0xff]
  %v296 = vld [vmem:[%s3 + $0x10] sm:$0xff]
  %v297 = vld [vmem:[%s3 + $0x18] sm:$0xff]
  %v298 = vld [vmem:[%s3 + $0x20] sm:$0xff]
  %v299 = vld [vmem:[%s3 + $0x28] sm:$0xff]
  %v300 = vld [vmem:[%s3 + $0x30] sm:$0xff]
  %v301 = vld [vmem:[%s3 + $0x38] sm:$0xff]
  %vm302 = vcmask 523264
  %v304 = vsel %vm302, %v292, 0
  %306 = vmatpush.msra.mxu0 0.0
  %307 = vmatpush.msra.mxu0 0.0
  %308 = vmatpush.msra.mxu0 0.0
  %309 = vmatpush.msra.mxu0 0.0
  %310 = vmatpush.msra.mxu0 0.0
  %311 = vmatpush.msra.mxu0 0.0
  %312 = vmatpush.msra.mxu0 0.0
  %313 = vmatpush.msra.mxu0 0.0
  %314 = vmatpush.msra.mxu0 %v301
  %315 = vmatpush.msra.mxu0 %v300
  %316 = vmatpush.msra.mxu0 %v299
  %317 = vmatpush.msra.mxu0 %v298
  %318 = vmatpush.msra.mxu0 %v297
  %319 = vmatpush.msra.mxu0 %v296
  %320 = vmatpush.msra.mxu0 %v295
  %321 = vmatpush.msra.mxu0 %v294
  %322 = vmatmul.f32.gmra.mxu0 %v304
  %v323 = vpop.f32.mrf.mxu0
  %v324 = vadd.f32 0.0, %v323
  %325 = vdwg.mxu0
  %v327 = vperm.slane %v293, 0
  %v329 = vadd.f32 %v327, %v324
  %s330 = scalar_lea.vmem %s3, 64
  %v331 = vld [vmem:[%s330] sm:$0xff]
  %v332 = vld [vmem:[%s330 + $0x8] sm:$0xff]
  %v333 = vld [vmem:[%s330 + $0x10] sm:$0xff]
  %v334 = vld [vmem:[%s330 + $0x18] sm:$0xff]
  %v335 = vld [vmem:[%s330 + $0x20] sm:$0xff]
  %v336 = vld [vmem:[%s330 + $0x28] sm:$0xff]
  %v337 = vld [vmem:[%s330 + $0x30] sm:$0xff]
  %v338 = vld [vmem:[%s330 + $0x38] sm:$0xff]
  %v339 = vrot.slane %v292, 2
  %v340 = vsel %vm302, %v339, 0
  %342 = vmatpush.msra.mxu0 0.0
  %343 = vmatpush.msra.mxu0 0.0
  %344 = vmatpush.msra.mxu0 0.0
  %345 = vmatpush.msra.mxu0 0.0
  %346 = vmatpush.msra.mxu0 0.0
  %347 = vmatpush.msra.mxu0 0.0
  %348 = vmatpush.msra.mxu0 0.0
  %349 = vmatpush.msra.mxu0 0.0
  %350 = vmatpush.msra.mxu0 %v338
  %351 = vmatpush.msra.mxu0 %v337
  %352 = vmatpush.msra.mxu0 %v336
  %353 = vmatpush.msra.mxu0 %v335
  %354 = vmatpush.msra.mxu0 %v334
  %355 = vmatpush.msra.mxu0 %v333
  %356 = vmatpush.msra.mxu0 %v332
  %357 = vmatpush.msra.mxu0 %v331
  %358 = vmatmul.f32.gmra.mxu0 %v340
  %v359 = vpop.f32.mrf.mxu0
  %v360 = vadd.f32 0.0, %v359
  %361 = vdwg.mxu0
  %v362 = vadd.f32 %v329, %v360
  %s363 = scalar_lea.vmem %s3, 128
  %v364 = vld [vmem:[%s363] sm:$0xff]
  %v365 = vld [vmem:[%s363 + $0x8] sm:$0xff]
  %v366 = vld [vmem:[%s363 + $0x10] sm:$0xff]
  %v367 = vld [vmem:[%s363 + $0x18] sm:$0xff]
  %v368 = vld [vmem:[%s363 + $0x20] sm:$0xff]
  %v369 = vld [vmem:[%s363 + $0x28] sm:$0xff]
  %v370 = vld [vmem:[%s363 + $0x30] sm:$0xff]
  %v371 = vld [vmem:[%s363 + $0x38] sm:$0xff]
  %v372 = vrot.slane %v292, 4
  %v373 = vsel %vm302, %v372, 0
  %375 = vmatpush.msra.mxu0 0.0
  %376 = vmatpush.msra.mxu0 0.0
  %377 = vmatpush.msra.mxu0 0.0
  %378 = vmatpush.msra.mxu0 0.0
  %379 = vmatpush.msra.mxu0 0.0
  %380 = vmatpush.msra.mxu0 0.0
  %381 = vmatpush.msra.mxu0 0.0
  %382 = vmatpush.msra.mxu0 0.0
  %383 = vmatpush.msra.mxu0 %v371
  %384 = vmatpush.msra.mxu0 %v370
  %385 = vmatpush.msra.mxu0 %v369
  %386 = vmatpush.msra.mxu0 %v368
  %387 = vmatpush.msra.mxu0 %v367
  %388 = vmatpush.msra.mxu0 %v366
  %389 = vmatpush.msra.mxu0 %v365
  %390 = vmatpush.msra.mxu0 %v364
  %391 = vmatmul.f32.gmra.mxu0 %v373
  %v392 = vpop.f32.mrf.mxu0
  %v393 = vadd.f32 0.0, %v392
  %394 = vdwg.mxu0
  %v395 = vadd.f32 %v362, %v393
  %s396 = scalar_lea.vmem %s3, 192
  %v397 = vld [vmem:[%s396] sm:$0xff]
  %v398 = vld [vmem:[%s396 + $0x8] sm:$0xff]
  %v399 = vld [vmem:[%s396 + $0x10] sm:$0xff]
  %v400 = vld [vmem:[%s396 + $0x18] sm:$0xff]
  %v401 = vld [vmem:[%s396 + $0x20] sm:$0xff]
  %v402 = vld [vmem:[%s396 + $0x28] sm:$0xff]
  %v403 = vld [vmem:[%s396 + $0x30] sm:$0xff]
  %v404 = vld [vmem:[%s396 + $0x38] sm:$0xff]
  %v405 = vrot.slane %v292, 6
  %v406 = vsel %vm302, %v405, 0
  %408 = vmatpush.msra.mxu0 0.0
  %409 = vmatpush.msra.mxu0 0.0
  %410 = vmatpush.msra.mxu0 0.0
  %411 = vmatpush.msra.mxu0 0.0
  %412 = vmatpush.msra.mxu0 0.0
  %413 = vmatpush.msra.mxu0 0.0
  %414 = vmatpush.msra.mxu0 0.0
  %415 = vmatpush.msra.mxu0 0.0
  %416 = vmatpush.msra.mxu0 %v404
  %417 = vmatpush.msra.mxu0 %v403
  %418 = vmatpush.msra.mxu0 %v402
  %419 = vmatpush.msra.mxu0 %v401
  %420 = vmatpush.msra.mxu0 %v400
  %421 = vmatpush.msra.mxu0 %v399
  %422 = vmatpush.msra.mxu0 %v398
  %423 = vmatpush.msra.mxu0 %v397
  %424 = vmatmul.f32.gmra.mxu0 %v406
  %v425 = vpop.f32.mrf.mxu0
  %v426 = vadd.f32 0.0, %v425
  %427 = vdwg.mxu0
  %v428 = vadd.f32 %v395, %v426
  %v429 = vld [vmem:[%s5] sm:$0x1f]
  %v430 = vld [vmem:[%s6] sm:$0x1]
  %v432 = vperm.slane %v430, 0
  %vm434 = vcmask 39936
  %v436 = vsel %vm434, %v428, 0
  %vm438 = vcmask 1044480
  %v440 = vsel %vm438, %v429, 0
  %442 = vmatpush.msra.mxu0 0.0
  %443 = vmatpush.msra.mxu0 0.0
  %444 = vmatpush.msra.mxu0 0.0
  %445 = vmatpush.msra.mxu0 0.0
  %446 = vmatpush.msra.mxu0 0.0
  %447 = vmatpush.msra.mxu0 0.0
  %448 = vmatpush.msra.mxu0 0.0
  %449 = vmatpush.msra.mxu0 0.0
  %450 = vmatpush.msra.mxu0 0.0
  %451 = vmatpush.msra.mxu0 0.0
  %452 = vmatpush.msra.mxu0 0.0
  %453 = vmatpush.msra.mxu0 0.0
  %454 = vmatpush.msra.mxu0 0.0
  %455 = vmatpush.msra.mxu0 0.0
  %456 = vmatpush.msra.mxu0 0.0
  %457 = vmatpush.msra.mxu0 %v440
  %458 = vmatmul.f32.gmra.mxu0 %v436
  %v459 = vpop.f32.mrf.mxu0
  %v460 = vadd.f32 %v432, %v459
  %461 = vdwg.mxu0
  %v462 = vld [vmem:[%s7] sm:$0xff]
  %v463 = vld [vmem:[%s7 + $0x8] sm:$0xff]
  %v464 = vld [vmem:[%s7 + $0x10] sm:$0xff]
  %v465 = vld [vmem:[%s7 + $0x18] sm:$0xff]
  %v466 = vld [vmem:[%s7 + $0x20] sm:$0xff]
  %v467 = vld [vmem:[%s7 + $0x28] sm:$0xff]
  %v468 = vld [vmem:[%s7 + $0x30] sm:$0xff]
  %v469 = vld [vmem:[%s7 + $0x38] sm:$0xff]
  %v470 = vld [vmem:[%s7 + $0x40] sm:$0xff]
  %v471 = vld [vmem:[%s7 + $0x48] sm:$0xff]
  %v472 = vld [vmem:[%s7 + $0x50] sm:$0xff]
  %v473 = vld [vmem:[%s7 + $0x58] sm:$0xff]
  %v474 = vld [vmem:[%s7 + $0x60] sm:$0xff]
  %v475 = vld [vmem:[%s7 + $0x68] sm:$0xff]
  %v476 = vld [vmem:[%s7 + $0x70] sm:$0xff]
  %v477 = vld [vmem:[%s7 + $0x78] sm:$0xff]
  %v478 = vld [vmem:[%s7 + $0x80] sm:$0xff]
  %v479 = vld [vmem:[%s7 + $0x88] sm:$0xff]
  %v480 = vld [vmem:[%s7 + $0x90] sm:$0xff]
  %v481 = vld [vmem:[%s7 + $0x98] sm:$0xff]
  %v482 = vld [vmem:[%s7 + $0xa0] sm:$0xff]
  %v483 = vld [vmem:[%s7 + $0xa8] sm:$0xff]
  %v484 = vld [vmem:[%s7 + $0xb0] sm:$0xff]
  %v485 = vld [vmem:[%s7 + $0xb8] sm:$0xff]
  %v486 = vld [vmem:[%s7 + $0xc0] sm:$0xff]
  %v487 = vld [vmem:[%s7 + $0xc8] sm:$0xff]
  %v488 = vld [vmem:[%s7 + $0xd0] sm:$0xff]
  %v489 = vld [vmem:[%s7 + $0xd8] sm:$0xff]
  %v490 = vld [vmem:[%s7 + $0xe0] sm:$0xff]
  %v491 = vld [vmem:[%s7 + $0xe8] sm:$0xff]
  %v492 = vld [vmem:[%s7 + $0xf0] sm:$0xff]
  %v493 = vld [vmem:[%s7 + $0xf8] sm:$0xff]
  %v494 = vld [vmem:[%s7 + $0x100] sm:$0xff]
  %v495 = vld [vmem:[%s7 + $0x108] sm:$0xff]
  %v496 = vld [vmem:[%s7 + $0x110] sm:$0xff]
  %v497 = vld [vmem:[%s7 + $0x118] sm:$0xff]
  %v498 = vld [vmem:[%s7 + $0x120] sm:$0xff]
  %v499 = vld [vmem:[%s7 + $0x128] sm:$0xff]
  %v500 = vld [vmem:[%s7 + $0x130] sm:$0xff]
  %v501 = vld [vmem:[%s7 + $0x138] sm:$0xff]
  %v502 = vld [vmem:[%s7 + $0x140] sm:$0xff]
  %v503 = vld [vmem:[%s7 + $0x148] sm:$0xff]
  %v504 = vld [vmem:[%s7 + $0x150] sm:$0xff]
  %v505 = vld [vmem:[%s7 + $0x158] sm:$0xff]
  %v506 = vld [vmem:[%s7 + $0x160] sm:$0xff]
  %v507 = vld [vmem:[%s7 + $0x168] sm:$0xff]
  %v508 = vld [vmem:[%s7 + $0x170] sm:$0xff]
  %v509 = vld [vmem:[%s7 + $0x178] sm:$0xff]
  %v510 = vld [vmem:[%s7 + $0x180] sm:$0xff]
  %v511 = vld [vmem:[%s7 + $0x188] sm:$0xff]
  %v512 = vld [vmem:[%s7 + $0x190] sm:$0xff]
  %v513 = vld [vmem:[%s7 + $0x198] sm:$0xff]
  %v514 = vld [vmem:[%s7 + $0x1a0] sm:$0xff]
  %v515 = vld [vmem:[%s7 + $0x1a8] sm:$0xff]
  %v516 = vld [vmem:[%s7 + $0x1b0] sm:$0xff]
  %v517 = vld [vmem:[%s7 + $0x1b8] sm:$0xff]
  %v519 = vsel %vm302, %v460, 0
  %521 = vmatpush.msra.mxu0 0.0
  %522 = vmatpush.msra.mxu0 0.0
  %523 = vmatpush.msra.mxu0 0.0
  %524 = vmatpush.msra.mxu0 0.0
  %525 = vmatpush.msra.mxu0 0.0
  %526 = vmatpush.msra.mxu0 0.0
  %527 = vmatpush.msra.mxu0 0.0
  %528 = vmatpush.msra.mxu0 0.0
  %529 = vmatpush.msra.mxu0 %v511
  %530 = vmatpush.msra.mxu0 %v504
  %531 = vmatpush.msra.mxu0 %v497
  %532 = vmatpush.msra.mxu0 %v490
  %533 = vmatpush.msra.mxu0 %v483
  %534 = vmatpush.msra.mxu0 %v476
  %535 = vmatpush.msra.mxu0 %v469
  %536 = vmatpush.msra.mxu0 %v462
  %537 = vmatmul.f32.gmra.mxu0 %v519
  %v538 = vpop.f32.mrf.mxu0
  %v539 = vadd.f32 0.0, %v538
  %540 = vdwg.mxu0
  %541 = vmatpush.msra.mxu0 0.0
  %542 = vmatpush.msra.mxu0 0.0
  %543 = vmatpush.msra.mxu0 0.0
  %544 = vmatpush.msra.mxu0 0.0
  %545 = vmatpush.msra.mxu0 0.0
  %546 = vmatpush.msra.mxu0 0.0
  %547 = vmatpush.msra.mxu0 0.0
  %548 = vmatpush.msra.mxu0 0.0
  %549 = vmatpush.msra.mxu0 %v512
  %550 = vmatpush.msra.mxu0 %v505
  %551 = vmatpush.msra.mxu0 %v498
  %552 = vmatpush.msra.mxu0 %v491
  %553 = vmatpush.msra.mxu0 %v484
  %554 = vmatpush.msra.mxu0 %v477
  %555 = vmatpush.msra.mxu0 %v470
  %556 = vmatpush.msra.mxu0 %v463
  %557 = vmatmul.f32.gmra.mxu0 %v519
  %v558 = vpop.f32.mrf.mxu0
  %v559 = vadd.f32 0.0, %v558
  %560 = vdwg.mxu0
  %561 = vmatpush.msra.mxu0 0.0
  %562 = vmatpush.msra.mxu0 0.0
  %563 = vmatpush.msra.mxu0 0.0
  %564 = vmatpush.msra.mxu0 0.0
  %565 = vmatpush.msra.mxu0 0.0
  %566 = vmatpush.msra.mxu0 0.0
  %567 = vmatpush.msra.mxu0 0.0
  %568 = vmatpush.msra.mxu0 0.0
  %569 = vmatpush.msra.mxu0 %v513
  %570 = vmatpush.msra.mxu0 %v506
  %571 = vmatpush.msra.mxu0 %v499
  %572 = vmatpush.msra.mxu0 %v492
  %573 = vmatpush.msra.mxu0 %v485
  %574 = vmatpush.msra.mxu0 %v478
  %575 = vmatpush.msra.mxu0 %v471
  %576 = vmatpush.msra.mxu0 %v464
  %577 = vmatmul.f32.gmra.mxu0 %v519
  %v578 = vpop.f32.mrf.mxu0
  %v579 = vadd.f32 0.0, %v578
  %580 = vdwg.mxu0
  %581 = vmatpush.msra.mxu0 0.0
  %582 = vmatpush.msra.mxu0 0.0
  %583 = vmatpush.msra.mxu0 0.0
  %584 = vmatpush.msra.mxu0 0.0
  %585 = vmatpush.msra.mxu0 0.0
  %586 = vmatpush.msra.mxu0 0.0
  %587 = vmatpush.msra.mxu0 0.0
  %588 = vmatpush.msra.mxu0 0.0
  %589 = vmatpush.msra.mxu0 %v514
  %590 = vmatpush.msra.mxu0 %v507
  %591 = vmatpush.msra.mxu0 %v500
  %592 = vmatpush.msra.mxu0 %v493
  %593 = vmatpush.msra.mxu0 %v486
  %594 = vmatpush.msra.mxu0 %v479
  %595 = vmatpush.msra.mxu0 %v472
  %596 = vmatpush.msra.mxu0 %v465
  %597 = vmatmul.f32.gmra.mxu0 %v519
  %v598 = vpop.f32.mrf.mxu0
  %v599 = vadd.f32 0.0, %v598
  %600 = vdwg.mxu0
  %601 = vmatpush.msra.mxu0 0.0
  %602 = vmatpush.msra.mxu0 0.0
  %603 = vmatpush.msra.mxu0 0.0
  %604 = vmatpush.msra.mxu0 0.0
  %605 = vmatpush.msra.mxu0 0.0
  %606 = vmatpush.msra.mxu0 0.0
  %607 = vmatpush.msra.mxu0 0.0
  %608 = vmatpush.msra.mxu0 0.0
  %609 = vmatpush.msra.mxu0 %v515
  %610 = vmatpush.msra.mxu0 %v508
  %611 = vmatpush.msra.mxu0 %v501
  %612 = vmatpush.msra.mxu0 %v494
  %613 = vmatpush.msra.mxu0 %v487
  %614 = vmatpush.msra.mxu0 %v480
  %615 = vmatpush.msra.mxu0 %v473
  %616 = vmatpush.msra.mxu0 %v466
  %617 = vmatmul.f32.gmra.mxu0 %v519
  %v618 = vpop.f32.mrf.mxu0
  %v619 = vadd.f32 0.0, %v618
  %620 = vdwg.mxu0
  %621 = vmatpush.msra.mxu0 0.0
  %622 = vmatpush.msra.mxu0 0.0
  %623 = vmatpush.msra.mxu0 0.0
  %624 = vmatpush.msra.mxu0 0.0
  %625 = vmatpush.msra.mxu0 0.0
  %626 = vmatpush.msra.mxu0 0.0
  %627 = vmatpush.msra.mxu0 0.0
  %628 = vmatpush.msra.mxu0 0.0
  %629 = vmatpush.msra.mxu0 %v516
  %630 = vmatpush.msra.mxu0 %v509
  %631 = vmatpush.msra.mxu0 %v502
  %632 = vmatpush.msra.mxu0 %v495
  %633 = vmatpush.msra.mxu0 %v488
  %634 = vmatpush.msra.mxu0 %v481
  %635 = vmatpush.msra.mxu0 %v474
  %636 = vmatpush.msra.mxu0 %v467
  %637 = vmatmul.f32.gmra.mxu0 %v519
  %v638 = vpop.f32.mrf.mxu0
  %v639 = vadd.f32 0.0, %v638
  %640 = vdwg.mxu0
  %641 = vmatpush.msra.mxu0 0.0
  %642 = vmatpush.msra.mxu0 0.0
  %643 = vmatpush.msra.mxu0 0.0
  %644 = vmatpush.msra.mxu0 0.0
  %645 = vmatpush.msra.mxu0 0.0
  %646 = vmatpush.msra.mxu0 0.0
  %647 = vmatpush.msra.mxu0 0.0
  %648 = vmatpush.msra.mxu0 0.0
  %649 = vmatpush.msra.mxu0 %v517
  %650 = vmatpush.msra.mxu0 %v510
  %651 = vmatpush.msra.mxu0 %v503
  %652 = vmatpush.msra.mxu0 %v496
  %653 = vmatpush.msra.mxu0 %v489
  %654 = vmatpush.msra.mxu0 %v482
  %655 = vmatpush.msra.mxu0 %v475
  %656 = vmatpush.msra.mxu0 %v468
  %657 = vmatmul.f32.gmra.mxu0 %v519
  %v658 = vpop.f32.mrf.mxu0
  %v659 = vadd.f32 0.0, %v658
  %660 = vdwg.mxu0
  %661 = vst [vmem:[%s8] sm:$0x3] %v539
  %662 = vst [vmem:[%s8 + $0x8] sm:$0x3] %v559
  %663 = vst [vmem:[%s8 + $0x10] sm:$0x3] %v579
  %664 = vst [vmem:[%s8 + $0x18] sm:$0x3] %v599
  %665 = vst [vmem:[%s8 + $0x20] sm:$0x3] %v619
  %666 = vst [vmem:[%s8 + $0x28] sm:$0x3] %v639
  %vm667 = vcmask 779264
  %668 = vst.msk [vmem:[%s8 + $0x30] sm:$0x3] %vm667, %v659
  %s669 = scalar_lea.vmem %s5, 8
  %v670 = vld [vmem:[%s669] sm:$0x1f]
  %s671 = scalar_lea.vmem %s6, 1
  %v672 = vld [vmem:[%s671] sm:$0x1]
  %v674 = vperm.slane %v672, 0
  %v677 = vsel %vm438, %v670, 0
  %679 = vmatpush.msra.mxu0 0.0
  %680 = vmatpush.msra.mxu0 0.0
  %681 = vmatpush.msra.mxu0 0.0
  %682 = vmatpush.msra.mxu0 0.0
  %683 = vmatpush.msra.mxu0 0.0
  %684 = vmatpush.msra.mxu0 0.0
  %685 = vmatpush.msra.mxu0 0.0
  %686 = vmatpush.msra.mxu0 0.0
  %687 = vmatpush.msra.mxu0 0.0
  %688 = vmatpush.msra.mxu0 0.0
  %689 = vmatpush.msra.mxu0 0.0
  %690 = vmatpush.msra.mxu0 0.0
  %691 = vmatpush.msra.mxu0 0.0
  %692 = vmatpush.msra.mxu0 0.0
  %693 = vmatpush.msra.mxu0 0.0
  %694 = vmatpush.msra.mxu0 %v677
  %695 = vmatmul.f32.gmra.mxu0 %v436
  %v696 = vpop.f32.mrf.mxu0
  %v697 = vadd.f32 %v674, %v696
  %698 = vdwg.mxu0
  %v699 = vld [vmem:[%s7] sm:$0xff]
  %v700 = vld [vmem:[%s7 + $0x8] sm:$0xff]
  %v701 = vld [vmem:[%s7 + $0x10] sm:$0xff]
  %v702 = vld [vmem:[%s7 + $0x18] sm:$0xff]
  %v703 = vld [vmem:[%s7 + $0x20] sm:$0xff]
  %v704 = vld [vmem:[%s7 + $0x28] sm:$0xff]
  %v705 = vld [vmem:[%s7 + $0x30] sm:$0xff]
  %v706 = vld [vmem:[%s7 + $0x38] sm:$0xff]
  %v707 = vld [vmem:[%s7 + $0x40] sm:$0xff]
  %v708 = vld [vmem:[%s7 + $0x48] sm:$0xff]
  %v709 = vld [vmem:[%s7 + $0x50] sm:$0xff]
  %v710 = vld [vmem:[%s7 + $0x58] sm:$0xff]
  %v711 = vld [vmem:[%s7 + $0x60] sm:$0xff]
  %v712 = vld [vmem:[%s7 + $0x68] sm:$0xff]
  %v713 = vld [vmem:[%s7 + $0x70] sm:$0xff]
  %v714 = vld [vmem:[%s7 + $0x78] sm:$0xff]
  %v715 = vld [vmem:[%s7 + $0x80] sm:$0xff]
  %v716 = vld [vmem:[%s7 + $0x88] sm:$0xff]
  %v717 = vld [vmem:[%s7 + $0x90] sm:$0xff]
  %v718 = vld [vmem:[%s7 + $0x98] sm:$0xff]
  %v719 = vld [vmem:[%s7 + $0xa0] sm:$0xff]
  %v720 = vld [vmem:[%s7 + $0xa8] sm:$0xff]
  %v721 = vld [vmem:[%s7 + $0xb0] sm:$0xff]
  %v722 = vld [vmem:[%s7 + $0xb8] sm:$0xff]
  %v723 = vld [vmem:[%s7 + $0xc0] sm:$0xff]
  %v724 = vld [vmem:[%s7 + $0xc8] sm:$0xff]
  %v725 = vld [vmem:[%s7 + $0xd0] sm:$0xff]
  %v726 = vld [vmem:[%s7 + $0xd8] sm:$0xff]
  %v727 = vld [vmem:[%s7 + $0xe0] sm:$0xff]
  %v728 = vld [vmem:[%s7 + $0xe8] sm:$0xff]
  %v729 = vld [vmem:[%s7 + $0xf0] sm:$0xff]
  %v730 = vld [vmem:[%s7 + $0xf8] sm:$0xff]
  %v731 = vld [vmem:[%s7 + $0x100] sm:$0xff]
  %v732 = vld [vmem:[%s7 + $0x108] sm:$0xff]
  %v733 = vld [vmem:[%s7 + $0x110] sm:$0xff]
  %v734 = vld [vmem:[%s7 + $0x118] sm:$0xff]
  %v735 = vld [vmem:[%s7 + $0x120] sm:$0xff]
  %v736 = vld [vmem:[%s7 + $0x128] sm:$0xff]
  %v737 = vld [vmem:[%s7 + $0x130] sm:$0xff]
  %v738 = vld [vmem:[%s7 + $0x138] sm:$0xff]
  %v739 = vld [vmem:[%s7 + $0x140] sm:$0xff]
  %v740 = vld [vmem:[%s7 + $0x148] sm:$0xff]
  %v741 = vld [vmem:[%s7 + $0x150] sm:$0xff]
  %v742 = vld [vmem:[%s7 + $0x158] sm:$0xff]
  %v743 = vld [vmem:[%s7 + $0x160] sm:$0xff]
  %v744 = vld [vmem:[%s7 + $0x168] sm:$0xff]
  %v745 = vld [vmem:[%s7 + $0x170] sm:$0xff]
  %v746 = vld [vmem:[%s7 + $0x178] sm:$0xff]
  %v747 = vld [vmem:[%s7 + $0x180] sm:$0xff]
  %v748 = vld [vmem:[%s7 + $0x188] sm:$0xff]
  %v749 = vld [vmem:[%s7 + $0x190] sm:$0xff]
  %v750 = vld [vmem:[%s7 + $0x198] sm:$0xff]
  %v751 = vld [vmem:[%s7 + $0x1a0] sm:$0xff]
  %v752 = vld [vmem:[%s7 + $0x1a8] sm:$0xff]
  %v753 = vld [vmem:[%s7 + $0x1b0] sm:$0xff]
  %v754 = vld [vmem:[%s7 + $0x1b8] sm:$0xff]
  %v756 = vsel %vm302, %v697, 0
  %758 = vmatpush.msra.mxu0 0.0
  %759 = vmatpush.msra.mxu0 0.0
  %760 = vmatpush.msra.mxu0 0.0
  %761 = vmatpush.msra.mxu0 0.0
  %762 = vmatpush.msra.mxu0 0.0
  %763 = vmatpush.msra.mxu0 0.0
  %764 = vmatpush.msra.mxu0 0.0
  %765 = vmatpush.msra.mxu0 0.0
  %766 = vmatpush.msra.mxu0 %v748
  %767 = vmatpush.msra.mxu0 %v741
  %768 = vmatpush.msra.mxu0 %v734
  %769 = vmatpush.msra.mxu0 %v727
  %770 = vmatpush.msra.mxu0 %v720
  %771 = vmatpush.msra.mxu0 %v713
  %772 = vmatpush.msra.mxu0 %v706
  %773 = vmatpush.msra.mxu0 %v699
  %774 = vmatmul.f32.gmra.mxu0 %v756
  %v775 = vpop.f32.mrf.mxu0
  %v776 = vadd.f32 0.0, %v775
  %777 = vdwg.mxu0
  %778 = vmatpush.msra.mxu0 0.0
  %779 = vmatpush.msra.mxu0 0.0
  %780 = vmatpush.msra.mxu0 0.0
  %781 = vmatpush.msra.mxu0 0.0
  %782 = vmatpush.msra.mxu0 0.0
  %783 = vmatpush.msra.mxu0 0.0
  %784 = vmatpush.msra.mxu0 0.0
  %785 = vmatpush.msra.mxu0 0.0
  %786 = vmatpush.msra.mxu0 %v749
  %787 = vmatpush.msra.mxu0 %v742
  %788 = vmatpush.msra.mxu0 %v735
  %789 = vmatpush.msra.mxu0 %v728
  %790 = vmatpush.msra.mxu0 %v721
  %791 = vmatpush.msra.mxu0 %v714
  %792 = vmatpush.msra.mxu0 %v707
  %793 = vmatpush.msra.mxu0 %v700
  %794 = vmatmul.f32.gmra.mxu0 %v756
  %v795 = vpop.f32.mrf.mxu0
  %v796 = vadd.f32 0.0, %v795
  %797 = vdwg.mxu0
  %798 = vmatpush.msra.mxu0 0.0
  %799 = vmatpush.msra.mxu0 0.0
  %800 = vmatpush.msra.mxu0 0.0
  %801 = vmatpush.msra.mxu0 0.0
  %802 = vmatpush.msra.mxu0 0.0
  %803 = vmatpush.msra.mxu0 0.0
  %804 = vmatpush.msra.mxu0 0.0
  %805 = vmatpush.msra.mxu0 0.0
  %806 = vmatpush.msra.mxu0 %v750
  %807 = vmatpush.msra.mxu0 %v743
  %808 = vmatpush.msra.mxu0 %v736
  %809 = vmatpush.msra.mxu0 %v729
  %810 = vmatpush.msra.mxu0 %v722
  %811 = vmatpush.msra.mxu0 %v715
  %812 = vmatpush.msra.mxu0 %v708
  %813 = vmatpush.msra.mxu0 %v701
  %814 = vmatmul.f32.gmra.mxu0 %v756
  %v815 = vpop.f32.mrf.mxu0
  %v816 = vadd.f32 0.0, %v815
  %817 = vdwg.mxu0
  %818 = vmatpush.msra.mxu0 0.0
  %819 = vmatpush.msra.mxu0 0.0
  %820 = vmatpush.msra.mxu0 0.0
  %821 = vmatpush.msra.mxu0 0.0
  %822 = vmatpush.msra.mxu0 0.0
  %823 = vmatpush.msra.mxu0 0.0
  %824 = vmatpush.msra.mxu0 0.0
  %825 = vmatpush.msra.mxu0 0.0
  %826 = vmatpush.msra.mxu0 %v751
  %827 = vmatpush.msra.mxu0 %v744
  %828 = vmatpush.msra.mxu0 %v737
  %829 = vmatpush.msra.mxu0 %v730
  %830 = vmatpush.msra.mxu0 %v723
  %831 = vmatpush.msra.mxu0 %v716
  %832 = vmatpush.msra.mxu0 %v709
  %833 = vmatpush.msra.mxu0 %v702
  %834 = vmatmul.f32.gmra.mxu0 %v756
  %v835 = vpop.f32.mrf.mxu0
  %v836 = vadd.f32 0.0, %v835
  %837 = vdwg.mxu0
  %838 = vmatpush.msra.mxu0 0.0
  %839 = vmatpush.msra.mxu0 0.0
  %840 = vmatpush.msra.mxu0 0.0
  %841 = vmatpush.msra.mxu0 0.0
  %842 = vmatpush.msra.mxu0 0.0
  %843 = vmatpush.msra.mxu0 0.0
  %844 = vmatpush.msra.mxu0 0.0
  %845 = vmatpush.msra.mxu0 0.0
  %846 = vmatpush.msra.mxu0 %v752
  %847 = vmatpush.msra.mxu0 %v745
  %848 = vmatpush.msra.mxu0 %v738
  %849 = vmatpush.msra.mxu0 %v731
  %850 = vmatpush.msra.mxu0 %v724
  %851 = vmatpush.msra.mxu0 %v717
  %852 = vmatpush.msra.mxu0 %v710
  %853 = vmatpush.msra.mxu0 %v703
  %854 = vmatmul.f32.gmra.mxu0 %v756
  %v855 = vpop.f32.mrf.mxu0
  %v856 = vadd.f32 0.0, %v855
  %857 = vdwg.mxu0
  %858 = vmatpush.msra.mxu0 0.0
  %859 = vmatpush.msra.mxu0 0.0
  %860 = vmatpush.msra.mxu0 0.0
  %861 = vmatpush.msra.mxu0 0.0
  %862 = vmatpush.msra.mxu0 0.0
  %863 = vmatpush.msra.mxu0 0.0
  %864 = vmatpush.msra.mxu0 0.0
  %865 = vmatpush.msra.mxu0 0.0
  %866 = vmatpush.msra.mxu0 %v753
  %867 = vmatpush.msra.mxu0 %v746
  %868 = vmatpush.msra.mxu0 %v739
  %869 = vmatpush.msra.mxu0 %v732
  %870 = vmatpush.msra.mxu0 %v725
  %871 = vmatpush.msra.mxu0 %v718
  %872 = vmatpush.msra.mxu0 %v711
  %873 = vmatpush.msra.mxu0 %v704
  %874 = vmatmul.f32.gmra.mxu0 %v756
  %v875 = vpop.f32.mrf.mxu0
  %v876 = vadd.f32 0.0, %v875
  %877 = vdwg.mxu0
  %878 = vmatpush.msra.mxu0 0.0
  %879 = vmatpush.msra.mxu0 0.0
  %880 = vmatpush.msra.mxu0 0.0
  %881 = vmatpush.msra.mxu0 0.0
  %882 = vmatpush.msra.mxu0 0.0
  %883 = vmatpush.msra.mxu0 0.0
  %884 = vmatpush.msra.mxu0 0.0
  %885 = vmatpush.msra.mxu0 0.0
  %886 = vmatpush.msra.mxu0 %v754
  %887 = vmatpush.msra.mxu0 %v747
  %888 = vmatpush.msra.mxu0 %v740
  %889 = vmatpush.msra.mxu0 %v733
  %890 = vmatpush.msra.mxu0 %v726
  %891 = vmatpush.msra.mxu0 %v719
  %892 = vmatpush.msra.mxu0 %v712
  %893 = vmatpush.msra.mxu0 %v705
  %894 = vmatmul.f32.gmra.mxu0 %v756
  %v895 = vpop.f32.mrf.mxu0
  %v896 = vadd.f32 0.0, %v895
  %897 = vdwg.mxu0
  %v905 = vrot.slane %v776, 6
  %v906 = vrot.slane %v796, 6
  %v907 = vrot.slane %v816, 6
  %v908 = vrot.slane %v836, 6
  %v909 = vrot.slane %v856, 6
  %v910 = vrot.slane %v876, 6
  %v911 = vrot.slane %v896, 6
  %919 = vst [vmem:[%s8] sm:$0xc] %v905
  %920 = vst [vmem:[%s8 + $0x8] sm:$0xc] %v906
  %921 = vst [vmem:[%s8 + $0x10] sm:$0xc] %v907
  %922 = vst [vmem:[%s8 + $0x18] sm:$0xc] %v908
  %923 = vst [vmem:[%s8 + $0x20] sm:$0xc] %v909
  %924 = vst [vmem:[%s8 + $0x28] sm:$0xc] %v910
  %vm925 = vcmask 781314
  %926 = vst.msk [vmem:[%s8 + $0x30] sm:$0xc] %vm925, %v911
  %s927 = scalar_lea.vmem %s5, 16
  %v928 = vld [vmem:[%s927] sm:$0x1f]
  %s929 = scalar_lea.vmem %s6, 2
  %v930 = vld [vmem:[%s929] sm:$0x1]
  %v932 = vperm.slane %v930, 0
  %v935 = vsel %vm438, %v928, 0
  %937 = vmatpush.msra.mxu0 0.0
  %938 = vmatpush.msra.mxu0 0.0
  %939 = vmatpush.msra.mxu0 0.0
  %940 = vmatpush.msra.mxu0 0.0
  %941 = vmatpush.msra.mxu0 0.0
  %942 = vmatpush.msra.mxu0 0.0
  %943 = vmatpush.msra.mxu0 0.0
  %944 = vmatpush.msra.mxu0 0.0
  %945 = vmatpush.msra.mxu0 0.0
  %946 = vmatpush.msra.mxu0 0.0
  %947 = vmatpush.msra.mxu0 0.0
  %948 = vmatpush.msra.mxu0 0.0
  %949 = vmatpush.msra.mxu0 0.0
  %950 = vmatpush.msra.mxu0 0.0
  %951 = vmatpush.msra.mxu0 0.0
  %952 = vmatpush.msra.mxu0 %v935
  %953 = vmatmul.f32.gmra.mxu0 %v436
  %v954 = vpop.f32.mrf.mxu0
  %v955 = vadd.f32 %v932, %v954
  %956 = vdwg.mxu0
  %v957 = vld [vmem:[%s7] sm:$0xff]
  %v958 = vld [vmem:[%s7 + $0x8] sm:$0xff]
  %v959 = vld [vmem:[%s7 + $0x10] sm:$0xff]
  %v960 = vld [vmem:[%s7 + $0x18] sm:$0xff]
  %v961 = vld [vmem:[%s7 + $0x20] sm:$0xff]
  %v962 = vld [vmem:[%s7 + $0x28] sm:$0xff]
  %v963 = vld [vmem:[%s7 + $0x30] sm:$0xff]
  %v964 = vld [vmem:[%s7 + $0x38] sm:$0xff]
  %v965 = vld [vmem:[%s7 + $0x40] sm:$0xff]
  %v966 = vld [vmem:[%s7 + $0x48] sm:$0xff]
  %v967 = vld [vmem:[%s7 + $0x50] sm:$0xff]
  %v968 = vld [vmem:[%s7 + $0x58] sm:$0xff]
  %v969 = vld [vmem:[%s7 + $0x60] sm:$0xff]
  %v970 = vld [vmem:[%s7 + $0x68] sm:$0xff]
  %v971 = vld [vmem:[%s7 + $0x70] sm:$0xff]
  %v972 = vld [vmem:[%s7 + $0x78] sm:$0xff]
  %v973 = vld [vmem:[%s7 + $0x80] sm:$0xff]
  %v974 = vld [vmem:[%s7 + $0x88] sm:$0xff]
  %v975 = vld [vmem:[%s7 + $0x90] sm:$0xff]
  %v976 = vld [vmem:[%s7 + $0x98] sm:$0xff]
  %v977 = vld [vmem:[%s7 + $0xa0] sm:$0xff]
  %v978 = vld [vmem:[%s7 + $0xa8] sm:$0xff]
  %v979 = vld [vmem:[%s7 + $0xb0] sm:$0xff]
  %v980 = vld [vmem:[%s7 + $0xb8] sm:$0xff]
  %v981 = vld [vmem:[%s7 + $0xc0] sm:$0xff]
  %v982 = vld [vmem:[%s7 + $0xc8] sm:$0xff]
  %v983 = vld [vmem:[%s7 + $0xd0] sm:$0xff]
  %v984 = vld [vmem:[%s7 + $0xd8] sm:$0xff]
  %v985 = vld [vmem:[%s7 + $0xe0] sm:$0xff]
  %v986 = vld [vmem:[%s7 + $0xe8] sm:$0xff]
  %v987 = vld [vmem:[%s7 + $0xf0] sm:$0xff]
  %v988 = vld [vmem:[%s7 + $0xf8] sm:$0xff]
  %v989 = vld [vmem:[%s7 + $0x100] sm:$0xff]
  %v990 = vld [vmem:[%s7 + $0x108] sm:$0xff]
  %v991 = vld [vmem:[%s7 + $0x110] sm:$0xff]
  %v992 = vld [vmem:[%s7 + $0x118] sm:$0xff]
  %v993 = vld [vmem:[%s7 + $0x120] sm:$0xff]
  %v994 = vld [vmem:[%s7 + $0x128] sm:$0xff]
  %v995 = vld [vmem:[%s7 + $0x130] sm:$0xff]
  %v996 = vld [vmem:[%s7 + $0x138] sm:$0xff]
  %v997 = vld [vmem:[%s7 + $0x140] sm:$0xff]
  %v998 = vld [vmem:[%s7 + $0x148] sm:$0xff]
  %v999 = vld [vmem:[%s7 + $0x150] sm:$0xff]
  %v1000 = vld [vmem:[%s7 + $0x158] sm:$0xff]
  %v1001 = vld [vmem:[%s7 + $0x160] sm:$0xff]
  %v1002 = vld [vmem:[%s7 + $0x168] sm:$0xff]
  %v1003 = vld [vmem:[%s7 + $0x170] sm:$0xff]
  %v1004 = vld [vmem:[%s7 + $0x178] sm:$0xff]
  %v1005 = vld [vmem:[%s7 + $0x180] sm:$0xff]
  %v1006 = vld [vmem:[%s7 + $0x188] sm:$0xff]
  %v1007 = vld [vmem:[%s7 + $0x190] sm:$0xff]
  %v1008 = vld [vmem:[%s7 + $0x198] sm:$0xff]
  %v1009 = vld [vmem:[%s7 + $0x1a0] sm:$0xff]
  %v1010 = vld [vmem:[%s7 + $0x1a8] sm:$0xff]
  %v1011 = vld [vmem:[%s7 + $0x1b0] sm:$0xff]
  %v1012 = vld [vmem:[%s7 + $0x1b8] sm:$0xff]
  %v1014 = vsel %vm302, %v955, 0
  %1016 = vmatpush.msra.mxu0 0.0
  %1017 = vmatpush.msra.mxu0 0.0
  %1018 = vmatpush.msra.mxu0 0.0
  %1019 = vmatpush.msra.mxu0 0.0
  %1020 = vmatpush.msra.mxu0 0.0
  %1021 = vmatpush.msra.mxu0 0.0
  %1022 = vmatpush.msra.mxu0 0.0
  %1023 = vmatpush.msra.mxu0 0.0
  %1024 = vmatpush.msra.mxu0 %v1006
  %1025 = vmatpush.msra.mxu0 %v999
  %1026 = vmatpush.msra.mxu0 %v992
  %1027 = vmatpush.msra.mxu0 %v985
  %1028 = vmatpush.msra.mxu0 %v978
  %1029 = vmatpush.msra.mxu0 %v971
  %1030 = vmatpush.msra.mxu0 %v964
  %1031 = vmatpush.msra.mxu0 %v957
  %1032 = vmatmul.f32.gmra.mxu0 %v1014
  %v1033 = vpop.f32.mrf.mxu0
  %v1034 = vadd.f32 0.0, %v1033
  %1035 = vdwg.mxu0
  %1036 = vmatpush.msra.mxu0 0.0
  %1037 = vmatpush.msra.mxu0 0.0
  %1038 = vmatpush.msra.mxu0 0.0
  %1039 = vmatpush.msra.mxu0 0.0
  %1040 = vmatpush.msra.mxu0 0.0
  %1041 = vmatpush.msra.mxu0 0.0
  %1042 = vmatpush.msra.mxu0 0.0
  %1043 = vmatpush.msra.mxu0 0.0
  %1044 = vmatpush.msra.mxu0 %v1007
  %1045 = vmatpush.msra.mxu0 %v1000
  %1046 = vmatpush.msra.mxu0 %v993
  %1047 = vmatpush.msra.mxu0 %v986
  %1048 = vmatpush.msra.mxu0 %v979
  %1049 = vmatpush.msra.mxu0 %v972
  %1050 = vmatpush.msra.mxu0 %v965
  %1051 = vmatpush.msra.mxu0 %v958
  %1052 = vmatmul.f32.gmra.mxu0 %v1014
  %v1053 = vpop.f32.mrf.mxu0
  %v1054 = vadd.f32 0.0, %v1053
  %1055 = vdwg.mxu0
  %1056 = vmatpush.msra.mxu0 0.0
  %1057 = vmatpush.msra.mxu0 0.0
  %1058 = vmatpush.msra.mxu0 0.0
  %1059 = vmatpush.msra.mxu0 0.0
  %1060 = vmatpush.msra.mxu0 0.0
  %1061 = vmatpush.msra.mxu0 0.0
  %1062 = vmatpush.msra.mxu0 0.0
  %1063 = vmatpush.msra.mxu0 0.0
  %1064 = vmatpush.msra.mxu0 %v1008
  %1065 = vmatpush.msra.mxu0 %v1001
  %1066 = vmatpush.msra.mxu0 %v994
  %1067 = vmatpush.msra.mxu0 %v987
  %1068 = vmatpush.msra.mxu0 %v980
  %1069 = vmatpush.msra.mxu0 %v973
  %1070 = vmatpush.msra.mxu0 %v966
  %1071 = vmatpush.msra.mxu0 %v959
  %1072 = vmatmul.f32.gmra.mxu0 %v1014
  %v1073 = vpop.f32.mrf.mxu0
  %v1074 = vadd.f32 0.0, %v1073
  %1075 = vdwg.mxu0
  %1076 = vmatpush.msra.mxu0 0.0
  %1077 = vmatpush.msra.mxu0 0.0
  %1078 = vmatpush.msra.mxu0 0.0
  %1079 = vmatpush.msra.mxu0 0.0
  %1080 = vmatpush.msra.mxu0 0.0
  %1081 = vmatpush.msra.mxu0 0.0
  %1082 = vmatpush.msra.mxu0 0.0
  %1083 = vmatpush.msra.mxu0 0.0
  %1084 = vmatpush.msra.mxu0 %v1009
  %1085 = vmatpush.msra.mxu0 %v1002
  %1086 = vmatpush.msra.mxu0 %v995
  %1087 = vmatpush.msra.mxu0 %v988
  %1088 = vmatpush.msra.mxu0 %v981
  %1089 = vmatpush.msra.mxu0 %v974
  %1090 = vmatpush.msra.mxu0 %v967
  %1091 = vmatpush.msra.mxu0 %v960
  %1092 = vmatmul.f32.gmra.mxu0 %v1014
  %v1093 = vpop.f32.mrf.mxu0
  %v1094 = vadd.f32 0.0, %v1093
  %1095 = vdwg.mxu0
  %1096 = vmatpush.msra.mxu0 0.0
  %1097 = vmatpush.msra.mxu0 0.0
  %1098 = vmatpush.msra.mxu0 0.0
  %1099 = vmatpush.msra.mxu0 0.0
  %1100 = vmatpush.msra.mxu0 0.0
  %1101 = vmatpush.msra.mxu0 0.0
  %1102 = vmatpush.msra.mxu0 0.0
  %1103 = vmatpush.msra.mxu0 0.0
  %1104 = vmatpush.msra.mxu0 %v1010
  %1105 = vmatpush.msra.mxu0 %v1003
  %1106 = vmatpush.msra.mxu0 %v996
  %1107 = vmatpush.msra.mxu0 %v989
  %1108 = vmatpush.msra.mxu0 %v982
  %1109 = vmatpush.msra.mxu0 %v975
  %1110 = vmatpush.msra.mxu0 %v968
  %1111 = vmatpush.msra.mxu0 %v961
  %1112 = vmatmul.f32.gmra.mxu0 %v1014
  %v1113 = vpop.f32.mrf.mxu0
  %v1114 = vadd.f32 0.0, %v1113
  %1115 = vdwg.mxu0
  %1116 = vmatpush.msra.mxu0 0.0
  %1117 = vmatpush.msra.mxu0 0.0
  %1118 = vmatpush.msra.mxu0 0.0
  %1119 = vmatpush.msra.mxu0 0.0
  %1120 = vmatpush.msra.mxu0 0.0
  %1121 = vmatpush.msra.mxu0 0.0
  %1122 = vmatpush.msra.mxu0 0.0
  %1123 = vmatpush.msra.mxu0 0.0
  %1124 = vmatpush.msra.mxu0 %v1011
  %1125 = vmatpush.msra.mxu0 %v1004
  %1126 = vmatpush.msra.mxu0 %v997
  %1127 = vmatpush.msra.mxu0 %v990
  %1128 = vmatpush.msra.mxu0 %v983
  %1129 = vmatpush.msra.mxu0 %v976
  %1130 = vmatpush.msra.mxu0 %v969
  %1131 = vmatpush.msra.mxu0 %v962
  %1132 = vmatmul.f32.gmra.mxu0 %v1014
  %v1133 = vpop.f32.mrf.mxu0
  %v1134 = vadd.f32 0.0, %v1133
  %1135 = vdwg.mxu0
  %1136 = vmatpush.msra.mxu0 0.0
  %1137 = vmatpush.msra.mxu0 0.0
  %1138 = vmatpush.msra.mxu0 0.0
  %1139 = vmatpush.msra.mxu0 0.0
  %1140 = vmatpush.msra.mxu0 0.0
  %1141 = vmatpush.msra.mxu0 0.0
  %1142 = vmatpush.msra.mxu0 0.0
  %1143 = vmatpush.msra.mxu0 0.0
  %1144 = vmatpush.msra.mxu0 %v1012
  %1145 = vmatpush.msra.mxu0 %v1005
  %1146 = vmatpush.msra.mxu0 %v998
  %1147 = vmatpush.msra.mxu0 %v991
  %1148 = vmatpush.msra.mxu0 %v984
  %1149 = vmatpush.msra.mxu0 %v977
  %1150 = vmatpush.msra.mxu0 %v970
  %1151 = vmatpush.msra.mxu0 %v963
  %1152 = vmatmul.f32.gmra.mxu0 %v1014
  %v1153 = vpop.f32.mrf.mxu0
  %v1154 = vadd.f32 0.0, %v1153
  %1155 = vdwg.mxu0
  %v1163 = vrot.slane %v1034, 4
  %v1164 = vrot.slane %v1054, 4
  %v1165 = vrot.slane %v1074, 4
  %v1166 = vrot.slane %v1094, 4
  %v1167 = vrot.slane %v1114, 4
  %v1168 = vrot.slane %v1134, 4
  %v1169 = vrot.slane %v1154, 4
  %1177 = vst [vmem:[%s8] sm:$0x30] %v1163
  %1178 = vst [vmem:[%s8 + $0x8] sm:$0x30] %v1164
  %1179 = vst [vmem:[%s8 + $0x10] sm:$0x30] %v1165
  %1180 = vst [vmem:[%s8 + $0x18] sm:$0x30] %v1166
  %1181 = vst [vmem:[%s8 + $0x20] sm:$0x30] %v1167
  %1182 = vst [vmem:[%s8 + $0x28] sm:$0x30] %v1168
  %vm1183 = vcmask 783364
  %1184 = vst.msk [vmem:[%s8 + $0x30] sm:$0x30] %vm1183, %v1169
  %s1185 = scalar_lea.vmem %s5, 24
  %v1186 = vld [vmem:[%s1185] sm:$0x1f]
  %s1187 = scalar_lea.vmem %s6, 3
  %v1188 = vld [vmem:[%s1187] sm:$0x1]
  %v1190 = vperm.slane %v1188, 0
  %v1193 = vsel %vm438, %v1186, 0
  %1195 = vmatpush.msra.mxu0 0.0
  %1196 = vmatpush.msra.mxu0 0.0
  %1197 = vmatpush.msra.mxu0 0.0
  %1198 = vmatpush.msra.mxu0 0.0
  %1199 = vmatpush.msra.mxu0 0.0
  %1200 = vmatpush.msra.mxu0 0.0
  %1201 = vmatpush.msra.mxu0 0.0
  %1202 = vmatpush.msra.mxu0 0.0
  %1203 = vmatpush.msra.mxu0 0.0
  %1204 = vmatpush.msra.mxu0 0.0
  %1205 = vmatpush.msra.mxu0 0.0
  %1206 = vmatpush.msra.mxu0 0.0
  %1207 = vmatpush.msra.mxu0 0.0
  %1208 = vmatpush.msra.mxu0 0.0
  %1209 = vmatpush.msra.mxu0 0.0
  %1210 = vmatpush.msra.mxu0 %v1193
  %1211 = vmatmul.f32.gmra.mxu0 %v436
  %v1212 = vpop.f32.mrf.mxu0
  %v1213 = vadd.f32 %v1190, %v1212
  %1214 = vdwg.mxu0
  %v1215 = vld [vmem:[%s7] sm:$0xff]
  %v1216 = vld [vmem:[%s7 + $0x8] sm:$0xff]
  %v1217 = vld [vmem:[%s7 + $0x10] sm:$0xff]
  %v1218 = vld [vmem:[%s7 + $0x18] sm:$0xff]
  %v1219 = vld [vmem:[%s7 + $0x20] sm:$0xff]
  %v1220 = vld [vmem:[%s7 + $0x28] sm:$0xff]
  %v1221 = vld [vmem:[%s7 + $0x30] sm:$0xff]
  %v1222 = vld [vmem:[%s7 + $0x38] sm:$0xff]
  %v1223 = vld [vmem:[%s7 + $0x40] sm:$0xff]
  %v1224 = vld [vmem:[%s7 + $0x48] sm:$0xff]
  %v1225 = vld [vmem:[%s7 + $0x50] sm:$0xff]
  %v1226 = vld [vmem:[%s7 + $0x58] sm:$0xff]
  %v1227 = vld [vmem:[%s7 + $0x60] sm:$0xff]
  %v1228 = vld [vmem:[%s7 + $0x68] sm:$0xff]
  %v1229 = vld [vmem:[%s7 + $0x70] sm:$0xff]
  %v1230 = vld [vmem:[%s7 + $0x78] sm:$0xff]
  %v1231 = vld [vmem:[%s7 + $0x80] sm:$0xff]
  %v1232 = vld [vmem:[%s7 + $0x88] sm:$0xff]
  %v1233 = vld [vmem:[%s7 + $0x90] sm:$0xff]
  %v1234 = vld [vmem:[%s7 + $0x98] sm:$0xff]
  %v1235 = vld [vmem:[%s7 + $0xa0] sm:$0xff]
  %v1236 = vld [vmem:[%s7 + $0xa8] sm:$0xff]
  %v1237 = vld [vmem:[%s7 + $0xb0] sm:$0xff]
  %v1238 = vld [vmem:[%s7 + $0xb8] sm:$0xff]
  %v1239 = vld [vmem:[%s7 + $0xc0] sm:$0xff]
  %v1240 = vld [vmem:[%s7 + $0xc8] sm:$0xff]
  %v1241 = vld [vmem:[%s7 + $0xd0] sm:$0xff]
  %v1242 = vld [vmem:[%s7 + $0xd8] sm:$0xff]
  %v1243 = vld [vmem:[%s7 + $0xe0] sm:$0xff]
  %v1244 = vld [vmem:[%s7 + $0xe8] sm:$0xff]
  %v1245 = vld [vmem:[%s7 + $0xf0] sm:$0xff]
  %v1246 = vld [vmem:[%s7 + $0xf8] sm:$0xff]
  %v1247 = vld [vmem:[%s7 + $0x100] sm:$0xff]
  %v1248 = vld [vmem:[%s7 + $0x108] sm:$0xff]
  %v1249 = vld [vmem:[%s7 + $0x110] sm:$0xff]
  %v1250 = vld [vmem:[%s7 + $0x118] sm:$0xff]
  %v1251 = vld [vmem:[%s7 + $0x120] sm:$0xff]
  %v1252 = vld [vmem:[%s7 + $0x128] sm:$0xff]
  %v1253 = vld [vmem:[%s7 + $0x130] sm:$0xff]
  %v1254 = vld [vmem:[%s7 + $0x138] sm:$0xff]
  %v1255 = vld [vmem:[%s7 + $0x140] sm:$0xff]
  %v1256 = vld [vmem:[%s7 + $0x148] sm:$0xff]
  %v1257 = vld [vmem:[%s7 + $0x150] sm:$0xff]
  %v1258 = vld [vmem:[%s7 + $0x158] sm:$0xff]
  %v1259 = vld [vmem:[%s7 + $0x160] sm:$0xff]
  %v1260 = vld [vmem:[%s7 + $0x168] sm:$0xff]
  %v1261 = vld [vmem:[%s7 + $0x170] sm:$0xff]
  %v1262 = vld [vmem:[%s7 + $0x178] sm:$0xff]
  %v1263 = vld [vmem:[%s7 + $0x180] sm:$0xff]
  %v1264 = vld [vmem:[%s7 + $0x188] sm:$0xff]
  %v1265 = vld [vmem:[%s7 + $0x190] sm:$0xff]
  %v1266 = vld [vmem:[%s7 + $0x198] sm:$0xff]
  %v1267 = vld [vmem:[%s7 + $0x1a0] sm:$0xff]
  %v1268 = vld [vmem:[%s7 + $0x1a8] sm:$0xff]
  %v1269 = vld [vmem:[%s7 + $0x1b0] sm:$0xff]
  %v1270 = vld [vmem:[%s7 + $0x1b8] sm:$0xff]
  %v1272 = vsel %vm302, %v1213, 0
  %1274 = vmatpush.msra.mxu0 0.0
  %1275 = vmatpush.msra.mxu0 0.0
  %1276 = vmatpush.msra.mxu0 0.0
  %1277 = vmatpush.msra.mxu0 0.0
  %1278 = vmatpush.msra.mxu0 0.0
  %1279 = vmatpush.msra.mxu0 0.0
  %1280 = vmatpush.msra.mxu0 0.0
  %1281 = vmatpush.msra.mxu0 0.0
  %1282 = vmatpush.msra.mxu0 %v1264
  %1283 = vmatpush.msra.mxu0 %v1257
  %1284 = vmatpush.msra.mxu0 %v1250
  %1285 = vmatpush.msra.mxu0 %v1243
  %1286 = vmatpush.msra.mxu0 %v1236
  %1287 = vmatpush.msra.mxu0 %v1229
  %1288 = vmatpush.msra.mxu0 %v1222
  %1289 = vmatpush.msra.mxu0 %v1215
  %1290 = vmatmul.f32.gmra.mxu0 %v1272
  %v1291 = vpop.f32.mrf.mxu0
  %v1292 = vadd.f32 0.0, %v1291
  %1293 = vdwg.mxu0
  %1294 = vmatpush.msra.mxu0 0.0
  %1295 = vmatpush.msra.mxu0 0.0
  %1296 = vmatpush.msra.mxu0 0.0
  %1297 = vmatpush.msra.mxu0 0.0
  %1298 = vmatpush.msra.mxu0 0.0
  %1299 = vmatpush.msra.mxu0 0.0
  %1300 = vmatpush.msra.mxu0 0.0
  %1301 = vmatpush.msra.mxu0 0.0
  %1302 = vmatpush.msra.mxu0 %v1265
  %1303 = vmatpush.msra.mxu0 %v1258
  %1304 = vmatpush.msra.mxu0 %v1251
  %1305 = vmatpush.msra.mxu0 %v1244
  %1306 = vmatpush.msra.mxu0 %v1237
  %1307 = vmatpush.msra.mxu0 %v1230
  %1308 = vmatpush.msra.mxu0 %v1223
  %1309 = vmatpush.msra.mxu0 %v1216
  %1310 = vmatmul.f32.gmra.mxu0 %v1272
  %v1311 = vpop.f32.mrf.mxu0
  %v1312 = vadd.f32 0.0, %v1311
  %1313 = vdwg.mxu0
  %1314 = vmatpush.msra.mxu0 0.0
  %1315 = vmatpush.msra.mxu0 0.0
  %1316 = vmatpush.msra.mxu0 0.0
  %1317 = vmatpush.msra.mxu0 0.0
  %1318 = vmatpush.msra.mxu0 0.0
  %1319 = vmatpush.msra.mxu0 0.0
  %1320 = vmatpush.msra.mxu0 0.0
  %1321 = vmatpush.msra.mxu0 0.0
  %1322 = vmatpush.msra.mxu0 %v1266
  %1323 = vmatpush.msra.mxu0 %v1259
  %1324 = vmatpush.msra.mxu0 %v1252
  %1325 = vmatpush.msra.mxu0 %v1245
  %1326 = vmatpush.msra.mxu0 %v1238
  %1327 = vmatpush.msra.mxu0 %v1231
  %1328 = vmatpush.msra.mxu0 %v1224
  %1329 = vmatpush.msra.mxu0 %v1217
  %1330 = vmatmul.f32.gmra.mxu0 %v1272
  %v1331 = vpop.f32.mrf.mxu0
  %v1332 = vadd.f32 0.0, %v1331
  %1333 = vdwg.mxu0
  %1334 = vmatpush.msra.mxu0 0.0
  %1335 = vmatpush.msra.mxu0 0.0
  %1336 = vmatpush.msra.mxu0 0.0
  %1337 = vmatpush.msra.mxu0 0.0
  %1338 = vmatpush.msra.mxu0 0.0
  %1339 = vmatpush.msra.mxu0 0.0
  %1340 = vmatpush.msra.mxu0 0.0
  %1341 = vmatpush.msra.mxu0 0.0
  %1342 = vmatpush.msra.mxu0 %v1267
  %1343 = vmatpush.msra.mxu0 %v1260
  %1344 = vmatpush.msra.mxu0 %v1253
  %1345 = vmatpush.msra.mxu0 %v1246
  %1346 = vmatpush.msra.mxu0 %v1239
  %1347 = vmatpush.msra.mxu0 %v1232
  %1348 = vmatpush.msra.mxu0 %v1225
  %1349 = vmatpush.msra.mxu0 %v1218
  %1350 = vmatmul.f32.gmra.mxu0 %v1272
  %v1351 = vpop.f32.mrf.mxu0
  %v1352 = vadd.f32 0.0, %v1351
  %1353 = vdwg.mxu0
  %1354 = vmatpush.msra.mxu0 0.0
  %1355 = vmatpush.msra.mxu0 0.0
  %1356 = vmatpush.msra.mxu0 0.0
  %1357 = vmatpush.msra.mxu0 0.0
  %1358 = vmatpush.msra.mxu0 0.0
  %1359 = vmatpush.msra.mxu0 0.0
  %1360 = vmatpush.msra.mxu0 0.0
  %1361 = vmatpush.msra.mxu0 0.0
  %1362 = vmatpush.msra.mxu0 %v1268
  %1363 = vmatpush.msra.mxu0 %v1261
  %1364 = vmatpush.msra.mxu0 %v1254
  %1365 = vmatpush.msra.mxu0 %v1247
  %1366 = vmatpush.msra.mxu0 %v1240
  %1367 = vmatpush.msra.mxu0 %v1233
  %1368 = vmatpush.msra.mxu0 %v1226
  %1369 = vmatpush.msra.mxu0 %v1219
  %1370 = vmatmul.f32.gmra.mxu0 %v1272
  %v1371 = vpop.f32.mrf.mxu0
  %v1372 = vadd.f32 0.0, %v1371
  %1373 = vdwg.mxu0
  %1374 = vmatpush.msra.mxu0 0.0
  %1375 = vmatpush.msra.mxu0 0.0
  %1376 = vmatpush.msra.mxu0 0.0
  %1377 = vmatpush.msra.mxu0 0.0
  %1378 = vmatpush.msra.mxu0 0.0
  %1379 = vmatpush.msra.mxu0 0.0
  %1380 = vmatpush.msra.mxu0 0.0
  %1381 = vmatpush.msra.mxu0 0.0
  %1382 = vmatpush.msra.mxu0 %v1269
  %1383 = vmatpush.msra.mxu0 %v1262
  %1384 = vmatpush.msra.mxu0 %v1255
  %1385 = vmatpush.msra.mxu0 %v1248
  %1386 = vmatpush.msra.mxu0 %v1241
  %1387 = vmatpush.msra.mxu0 %v1234
  %1388 = vmatpush.msra.mxu0 %v1227
  %1389 = vmatpush.msra.mxu0 %v1220
  %1390 = vmatmul.f32.gmra.mxu0 %v1272
  %v1391 = vpop.f32.mrf.mxu0
  %v1392 = vadd.f32 0.0, %v1391
  %1393 = vdwg.mxu0
  %1394 = vmatpush.msra.mxu0 0.0
  %1395 = vmatpush.msra.mxu0 0.0
  %1396 = vmatpush.msra.mxu0 0.0
  %1397 = vmatpush.msra.mxu0 0.0
  %1398 = vmatpush.msra.mxu0 0.0
  %1399 = vmatpush.msra.mxu0 0.0
  %1400 = vmatpush.msra.mxu0 0.0
  %1401 = vmatpush.msra.mxu0 0.0
  %1402 = vmatpush.msra.mxu0 %v1270
  %1403 = vmatpush.msra.mxu0 %v1263
  %1404 = vmatpush.msra.mxu0 %v1256
  %1405 = vmatpush.msra.mxu0 %v1249
  %1406 = vmatpush.msra.mxu0 %v1242
  %1407 = vmatpush.msra.mxu0 %v1235
  %1408 = vmatpush.msra.mxu0 %v1228
  %1409 = vmatpush.msra.mxu0 %v1221
  %1410 = vmatmul.f32.gmra.mxu0 %v1272
  %v1411 = vpop.f32.mrf.mxu0
  %v1412 = vadd.f32 0.0, %v1411
  %1413 = vdwg.mxu0
  %v1421 = vrot.slane %v1292, 2
  %v1422 = vrot.slane %v1312, 2
  %v1423 = vrot.slane %v1332, 2
  %v1424 = vrot.slane %v1352, 2
  %v1425 = vrot.slane %v1372, 2
  %v1426 = vrot.slane %v1392, 2
  %v1427 = vrot.slane %v1412, 2
  %1435 = vst [vmem:[%s8] sm:$0xc0] %v1421
  %1436 = vst [vmem:[%s8 + $0x8] sm:$0xc0] %v1422
  %1437 = vst [vmem:[%s8 + $0x10] sm:$0xc0] %v1423
  %1438 = vst [vmem:[%s8 + $0x18] sm:$0xc0] %v1424
  %1439 = vst [vmem:[%s8 + $0x20] sm:$0xc0] %v1425
  %1440 = vst [vmem:[%s8 + $0x28] sm:$0xc0] %v1426
  %vm1441 = vcmask 785414
  %1442 = vst.msk [vmem:[%s8 + $0x30] sm:$0xc0] %vm1441, %v1427
  // Predicated region
  $region34: #{autoencoder_forward.7} parent=0 // pred_check
    _
  $region35: #{autoencoder_forward.7} parent=0 // pred_check_branch
    %1444 = sbr.rel (0) target = $region37
  $region36: #{autoencoder_forward.7} parent=0 // pred_region
    _
  $region37: #{autoencoder_forward.7} parent=0 // pred_fallthru
    _
  // Predicated region
  $region38: #{autoencoder_forward.7} parent=0 // pred_check
    _
  $region39: #{autoencoder_forward.7} parent=0 // pred_check_branch
    %1446 = sbr.rel (0) target = $region41
  $region40: #{autoencoder_forward.7} parent=0 // pred_region
    _
  $region41: #{autoencoder_forward.7} parent=0 // pred_fallthru
    _

// kernel: autoencoder_forward.9
$region0: #{autoencoder_forward.9}
  #allocation0 [shape = 'u32[]', space=smem, size = 0x4, offset = 0x4, fixed_abs, tag = 'smem constant byte address 0x4 - core index']
  #allocation1 [shape = 'u32[72,128]{1,0:T(1,128)}', space=vmem, size = 0x9000, scoped, tag = 'internal scratch']
  %s0 = inlined_call_operand.vmem [shape: bf16[30,8], index: 0, kind: input, shape index: {}]
  %s1 = inlined_call_operand.vmem [shape: bf16[8,1024], index: 1, kind: input, shape index: {}]
  %s2 = inlined_call_operand.vmem [shape: f32[30,1024], index: 2, kind: output, shape index: {}]
  %s3 = sld [smem:[#allocation0]]
  $region60: #{autoencoder_forward.9} parent=0
    _
  %s5 = ssub.s32 1, %s3
  %s6 = scalar_select 0, %s5, %s3
  $region1: #{autoencoder_forward.9} parent=0
    #allocation2 [shape = 'u8[131072]{0}', space=vmem, size = 0x20000, scoped, tag = 'output window, operand 0']
    loop: start=0, step=1, limit=4
    $region2: #{autoencoder_forward.9} parent=1 // loop_pre_header
      _
    $region3: #{autoencoder_forward.9} parent=1 // loop_header
      %s8 = sphi 0, %s12
      %p9 = scmp.ge.s32.totalorder %s8, 4
      %s16 = sphi 0, %s16
      %s18 = sphi 0, %s16
      %s19 = sphi 0, %s18
      %s33 = sphi 0, %s19
      %s39 = sphi 0, %s41
      %s42 = sphi 0, %s39
      %s43 = sphi 0, %s42
      %s59 = sphi 0, %s43
      %s65 = sphi 0, %s67
      %s68 = sphi 0, %s65
      %s69 = sphi 0, %s68
      %s85 = sphi 0, %s69
    $region4: #{autoencoder_forward.9} parent=1 // loop_header_branch
      %11 = sbr.rel (%p9) target = $region8
    $region5: #{autoencoder_forward.9} parent=1 // loop_body
      %s13 = ssub.s32 %s8, 1
      %s14 = ssub.s32 %s8, 2
      %s15 = sadd.s32 %s8, 1
      %s17 = sadd.s32 %s16, 1
      %p20 = scmp.eq.s32.totalorder %s8, 1
      %p21 = scmp.ne.s32.totalorder %s16, %s18
      %p22 = scmp.eq.s32.totalorder %s8, 0
      %p23 = por %p21, %p22
      %p24 = scmp.ne.s32.totalorder %s16, %s18
      %p25 = scmp.eq.s32.totalorder %s13, 1
      %p26 = por %p24, %p25
      %p27 = scmp.ne.s32.totalorder %s18, %s19
      %p28 = scmp.eq.s32.totalorder %s13, 0
      %p29 = por %p27, %p28
      %p30 = scmp.ne.s32.totalorder %s18, %s19
      %p31 = scmp.eq.s32.totalorder %s14, 1
      %p32 = por %p30, %p31
      %p34 = scmp.ne.s32.totalorder %s19, %s33
      %p35 = scmp.eq.s32.totalorder %s14, 0
      %p36 = por %p34, %p35
      %s37 = ssub.s32 %s8, %s15
      %p38 = scmp.eq.s32.totalorder %s37, 0
      %s40 = sadd.s32 %s39, 1
      %s41 = scalar_select %p38, %s39, %s40
      %p44 = pneg %p38
      %p45 = scmp.eq.s32.totalorder %s8, 1
      %p46 = por %p44, %p45
      %p47 = scmp.ne.s32.totalorder %s39, %s42
      %p48 = scmp.eq.s32.totalorder %s8, 0
      %p49 = por %p47, %p48
      %p50 = scmp.ne.s32.totalorder %s39, %s42
      %p51 = scmp.eq.s32.totalorder %s13, 1
      %p52 = por %p50, %p51
      %p53 = scmp.ne.s32.totalorder %s42, %s43
      %p54 = scmp.eq.s32.totalorder %s13, 0
      %p55 = por %p53, %p54
      %p56 = scmp.ne.s32.totalorder %s42, %s43
      %p57 = scmp.eq.s32.totalorder %s14, 1
      %p58 = por %p56, %p57
      %p60 = scmp.ne.s32.totalorder %s43, %s59
      %p61 = scmp.eq.s32.totalorder %s14, 0
      %p62 = por %p60, %p61
      %s63 = ssub.s32 %s8, %s15
      %p64 = scmp.eq.s32.totalorder %s63, 0
      %s66 = sadd.s32 %s65, 1
      %s67 = scalar_select %p64, %s65, %s66
      %p70 = pneg %p64
      %p71 = scmp.eq.s32.totalorder %s8, 1
      %p72 = por %p70, %p71
      %p73 = scmp.ne.s32.totalorder %s65, %s68
      %p74 = scmp.eq.s32.totalorder %s8, 0
      %p75 = por %p73, %p74
      %p76 = scmp.ne.s32.totalorder %s65, %s68
      %p77 = scmp.eq.s32.totalorder %s13, 1
      %p78 = por %p76, %p77
      %p79 = scmp.ne.s32.totalorder %s68, %s69
      %p80 = scmp.eq.s32.totalorder %s13, 0
      %p81 = por %p79, %p80
      %p82 = scmp.ne.s32.totalorder %s68, %s69
      %p83 = scmp.eq.s32.totalorder %s14, 1
      %p84 = por %p82, %p83
      %p86 = scmp.ne.s32.totalorder %s69, %s85
      %p87 = scmp.eq.s32.totalorder %s14, 0
      %p88 = por %p86, %p87
      %p89 = scmp.le.s32.totalorder 1, %s8
      %p90 = scmp.lt.s32.totalorder %s8, 3
      %p91 = pnand %p89, %p90
      %p92 = pneg %p91
      // Predicated region
      $region9: #{autoencoder_forward.9} parent=5 // pred_check
        _
      $region10: #{autoencoder_forward.9} parent=5 // pred_check_branch
        %94 = sbr.rel (%p91) target = $region12
      $region11: #{autoencoder_forward.9} parent=5 // pred_region
        %s95 = ssub.s32 %s8, 1
        // Predicated region
        $region13: #{autoencoder_forward.9} parent=11 // pred_check
          %p96 = pneg %p29
        $region14: #{autoencoder_forward.9} parent=11 // pred_check_branch
          %98 = sbr.rel (%p96) target = $region16
        $region15: #{autoencoder_forward.9} parent=11 // pred_region
          _
        $region16: #{autoencoder_forward.9} parent=11 // pred_fallthru
          _
      $region12: #{autoencoder_forward.9} parent=5 // pred_fallthru
        _
      %p99 = scmp.lt.s32.totalorder %s8, 2
      // Predicated region
      $region17: #{autoencoder_forward.9} parent=5 // pred_check
        %p100 = pneg %p99
      $region18: #{autoencoder_forward.9} parent=5 // pred_check_branch
        %102 = sbr.rel (%p100) target = $region20
      $region19: #{autoencoder_forward.9} parent=5 // pred_region
        // Predicated region
        $region21: #{autoencoder_forward.9} parent=19 // pred_check
          %p103 = pneg %p49
        $region22: #{autoencoder_forward.9} parent=19 // pred_check_branch
          %105 = sbr.rel (%p103) target = $region24
        $region23: #{autoencoder_forward.9} parent=19 // pred_region
          %s106 = smul.u32 4, %s8
          %p107 = scmp.lt.s32.totalorder %s106, 7
          %s108 = scalar_select %p107, %s106, 7
          %s109 = smul.addr %s108, 4
          %s110 = scalar_lea.vmem %s1, %s109
          %s111 = smul.u32 4, %s8
        $region24: #{autoencoder_forward.9} parent=19 // pred_fallthru
          _
      $region20: #{autoencoder_forward.9} parent=5 // pred_fallthru
        _
      %p112 = scmp.le.s32.totalorder 1, %s8
      %p113 = scmp.lt.s32.totalorder %s8, 3
      %p114 = pnand %p112, %p113
      %p115 = pneg %p114
      // Predicated region
      $region25: #{autoencoder_forward.9} parent=5 // pred_check
        _
      $region26: #{autoencoder_forward.9} parent=5 // pred_check_branch
        %117 = sbr.rel (%p114) target = $region28
      $region27: #{autoencoder_forward.9} parent=5 // pred_region
        %s118 = ssub.s32 %s8, 1
        %p119 = pneg %p29
        %p120 = pneg %p26
        %s121 = smul.u32 4, %s13
        %p122 = scmp.lt.s32.totalorder %s121, 7
        %s123 = scalar_select %p122, %s121, 7
        %s124 = smul.addr %s123, 4
        %s125 = scalar_lea.vmem %s1, %s124
        %p126 = pneg %p55
        %p127 = pneg %p52
        %p128 = pneg %p81
        %p129 = pneg %p78
        %s130 = sand.u32 %s68, 1
        %s131 = sand.u32 %s68, 1
        %s132 = smul.addr %s131, 128
        %s133 = scalar_lea.vmem [#allocation2], %s132
        %s134 = smul.u32 4, %s13
        %p135 = scmp.lt.s32.totalorder %s134, 7
        %s136 = scalar_select %p135, %s134, 7
        %s137 = smul.addr %s136, 4
        %s138 = scalar_lea.vmem %s1, %s137
        %s139 = smul.u32 4, %s13
        %s140 = smul.u32 4, %s13
        %v142 = vld [vmem:[%s0] sm:$0xf]
        %v143 = vld [vmem:[%s0 + $0x4] sm:$0xf]
        %v144 = vld [vmem:[%s0 + $0x8] sm:$0xf]
        %v145 = vld [vmem:[%s0 + $0xc] sm:$0x7]
        %v146 = vld [vmem:[%s138] sm:$0xff]
        %v147 = vld [vmem:[%s138 + $0x8] sm:$0xff]
        %v152 = vunpack.c.l.b16 %v142
        %v153 = vunpack.c.l.b16 %v143
        %v154 = vunpack.c.l.b16 %v144
        %v155 = vunpack.c.l.b16 %v145
        %v156 = vpack.c.b16 %v153, %v152
        %v157 = vpack.c.b16 %v155, %v154
        %v160 = vunpack.c.l.b16 %v146
        %v161 = vunpack.c.h.b16 %v146
        %v162 = vunpack.c.l.b16 %v147
        %v163 = vunpack.c.h.b16 %v147
        %v164 = vpack.c.b16 %v160, %v160
        %v165 = vpack.c.b16 %v161, %v161
        %v166 = vpack.c.b16 %v162, %v162
        %v167 = vpack.c.b16 %v163, %v163
        %vm168 = vcmask 64512
        %v170 = vsel %vm168, %v156, 0
        %v173 = vsel %vm168, %v157, 0
        %vm175 = vcmask 1043456
        %v177 = vsel %vm175, %v164, 0
        %v180 = vsel %vm175, %v165, 0
        %v183 = vsel %vm175, %v166, 0
        %v186 = vsel %vm175, %v167, 0
        %188 = vmatpush.bf16.msra.mxu0 0
        %189 = vmatpush.bf16.msra.mxu0 0
        %190 = vmatpush.bf16.msra.mxu0 0
        %191 = vmatpush.bf16.msra.mxu0 0
        %192 = vmatpush.bf16.msra.mxu0 0
        %193 = vmatpush.bf16.msra.mxu0 0
        %194 = vmatpush.bf16.msra.mxu0 0
        %195 = vmatpush.bf16.msra.mxu0 %v177
        %196 = vmatmul.bf16.gmra.mxu0 %v170
        %v197 = vpop.f32.mrf.mxu0
        %v198 = vadd.f32 0.0, %v197
        %v199 = vpop.f32.mrf.mxu0
        %v200 = vadd.f32 0.0, %v199
        %201 = vmatmul.bf16.gmra.mxu0 %v173
        %v202 = vpop.f32.mrf.mxu0
        %v203 = vadd.f32 0.0, %v202
        %v204 = vpop.f32.mrf.mxu0
        %v205 = vadd.f32 0.0, %v204
        %206 = vdwg.mxu0
        %207 = vmatpush.bf16.msra.mxu0 0
        %208 = vmatpush.bf16.msra.mxu0 0
        %209 = vmatpush.bf16.msra.mxu0 0
        %210 = vmatpush.bf16.msra.mxu0 0
        %211 = vmatpush.bf16.msra.mxu0 0
        %212 = vmatpush.bf16.msra.mxu0 0
        %213 = vmatpush.bf16.msra.mxu0 0
        %214 = vmatpush.bf16.msra.mxu0 %v180
        %215 = vmatmul.bf16.gmra.mxu0 %v170
        %v216 = vpop.f32.mrf.mxu0
        %v217 = vadd.f32 0.0, %v216
        %v218 = vpop.f32.mrf.mxu0
        %v219 = vadd.f32 0.0, %v218
        %220 = vmatmul.bf16.gmra.mxu0 %v173
        %v221 = vpop.f32.mrf.mxu0
        %v222 = vadd.f32 0.0, %v221
        %v223 = vpop.f32.mrf.mxu0
        %v224 = vadd.f32 0.0, %v223
        %225 = vdwg.mxu0
        %226 = vmatpush.bf16.msra.mxu0 0
        %227 = vmatpush.bf16.msra.mxu0 0
        %228 = vmatpush.bf16.msra.mxu0 0
        %229 = vmatpush.bf16.msra.mxu0 0
        %230 = vmatpush.bf16.msra.mxu0 0
        %231 = vmatpush.bf16.msra.mxu0 0
        %232 = vmatpush.bf16.msra.mxu0 0
        %233 = vmatpush.bf16.msra.mxu0 %v183
        %234 = vmatmul.bf16.gmra.mxu0 %v170
        %v235 = vpop.f32.mrf.mxu0
        %v236 = vadd.f32 0.0, %v235
        %v237 = vpop.f32.mrf.mxu0
        %v238 = vadd.f32 0.0, %v237
        %239 = vmatmul.bf16.gmra.mxu0 %v173
        %v240 = vpop.f32.mrf.mxu0
        %v241 = vadd.f32 0.0, %v240
        %v242 = vpop.f32.mrf.mxu0
        %v243 = vadd.f32 0.0, %v242
        %244 = vdwg.mxu0
        %245 = vmatpush.bf16.msra.mxu0 0
        %246 = vmatpush.bf16.msra.mxu0 0
        %247 = vmatpush.bf16.msra.mxu0 0
        %248 = vmatpush.bf16.msra.mxu0 0
        %249 = vmatpush.bf16.msra.mxu0 0
        %250 = vmatpush.bf16.msra.mxu0 0
        %251 = vmatpush.bf16.msra.mxu0 0
        %252 = vmatpush.bf16.msra.mxu0 %v186
        %253 = vmatmul.bf16.gmra.mxu0 %v170
        %v254 = vpop.f32.mrf.mxu0
        %v255 = vadd.f32 0.0, %v254
        %v256 = vpop.f32.mrf.mxu0
        %v257 = vadd.f32 0.0, %v256
        %258 = vmatmul.bf16.gmra.mxu0 %v173
        %v259 = vpop.f32.mrf.mxu0
        %v260 = vadd.f32 0.0, %v259
        %v261 = vpop.f32.mrf.mxu0
        %v262 = vadd.f32 0.0, %v261
        %263 = vdwg.mxu0
        %264 = vst [vmem:[%s133] sm:$0xff] %v198
        %265 = vst [vmem:[%s133 + $0x8] sm:$0xff] %v217
        %266 = vst [vmem:[%s133 + $0x10] sm:$0xff] %v236
        %267 = vst [vmem:[%s133 + $0x18] sm:$0xff] %v255
        %268 = vst [vmem:[%s133 + $0x20] sm:$0xff] %v200
        %269 = vst [vmem:[%s133 + $0x28] sm:$0xff] %v219
        %270 = vst [vmem:[%s133 + $0x30] sm:$0xff] %v238
        %271 = vst [vmem:[%s133 + $0x38] sm:$0xff] %v257
        %272 = vst [vmem:[%s133 + $0x40] sm:$0xff] %v203
        %273 = vst [vmem:[%s133 + $0x48] sm:$0xff] %v222
        %274 = vst [vmem:[%s133 + $0x50] sm:$0xff] %v241
        %275 = vst [vmem:[%s133 + $0x58] sm:$0xff] %v260
        %276 = vst [vmem:[%s133 + $0x60] sm:$0x3f] %v205
        %277 = vst [vmem:[%s133 + $0x68] sm:$0x3f] %v224
        %278 = vst [vmem:[%s133 + $0x70] sm:$0x3f] %v243
        %279 = vst [vmem:[%s133 + $0x78] sm:$0x3f] %v262
        %s280 = sand.u32 %s68, 1
        %s281 = sand.u32 %s68, 1
        %s282 = smul.addr %s281, 128
        %s283 = scalar_lea.vmem [#allocation2], %s282
        // Predicated region
        $region29: #{autoencoder_forward.9} parent=27 // pred_check
          %p284 = pneg %p78
        $region30: #{autoencoder_forward.9} parent=27 // pred_check_branch
          %286 = sbr.rel (%p284) target = $region32
        $region31: #{autoencoder_forward.9} parent=27 // pred_region
          %s287 = smul.u32 4, %s13
          %s288 = smul.addr %s287, 8
          %s289 = scalar_lea.vmem %s2, %s288
          // Predicated region
          $region33: #{autoencoder_forward.9} parent=31 // pred_check
            _
          $region34: #{autoencoder_forward.9} parent=31 // pred_check_branch
            %291 = sbr.rel (0) target = $region36
          $region35: #{autoencoder_forward.9} parent=31 // pred_region
            // Predicated region
            $region37: #{autoencoder_forward.9} parent=35 // pred_check
              _
            $region38: #{autoencoder_forward.9} parent=35 // pred_check_branch
              %293 = sbr.rel (0) target = $region40
            $region39: #{autoencoder_forward.9} parent=35 // pred_region
              loop: start=0, step=1, limit=1
              $region41: #{autoencoder_forward.9} parent=39 // loop_pre_header
                _
              $region42: #{autoencoder_forward.9} parent=39 // loop_header
                %s295 = sphi 0, %s299
                %p296 = scmp.ge.s32.totalorder %s295, 1
                %s300 = sphi %s283, %s283
                %s301 = sphi %s289, %s289
              $region43: #{autoencoder_forward.9} parent=39 // loop_header_branch
                %298 = sbr.rel (%p296) target = $region47
              $region44: #{autoencoder_forward.9} parent=39 // loop_body
                %v302 = vld [vmem:[%s300] sm:$0xff]
                %303 = vst [vmem:[%s301] sm:$0xff] %v302
                %v304 = vld [vmem:[%s300 + $0x8] sm:$0xff]
                %305 = vst [vmem:[%s301 + $0x8] sm:$0xff] %v304
                %v306 = vld [vmem:[%s300 + $0x10] sm:$0xff]
                %307 = vst [vmem:[%s301 + $0x10] sm:$0xff] %v306
                %v308 = vld [vmem:[%s300 + $0x18] sm:$0xff]
                %309 = vst [vmem:[%s301 + $0x18] sm:$0xff] %v308
                %v310 = vld [vmem:[%s300 + $0x20] sm:$0xff]
                %311 = vst [vmem:[%s301 + $0x40] sm:$0xff] %v310
                %v312 = vld [vmem:[%s300 + $0x28] sm:$0xff]
                %313 = vst [vmem:[%s301 + $0x48] sm:$0xff] %v312
                %v314 = vld [vmem:[%s300 + $0x30] sm:$0xff]
                %315 = vst [vmem:[%s301 + $0x50] sm:$0xff] %v314
                %v316 = vld [vmem:[%s300 + $0x38] sm:$0xff]
                %317 = vst [vmem:[%s301 + $0x58] sm:$0xff] %v316
                %v318 = vld [vmem:[%s300 + $0x40] sm:$0xff]
                %319 = vst [vmem:[%s301 + $0x80] sm:$0xff] %v318
                %v320 = vld [vmem:[%s300 + $0x48] sm:$0xff]
                %321 = vst [vmem:[%s301 + $0x88] sm:$0xff] %v320
                %v322 = vld [vmem:[%s300 + $0x50] sm:$0xff]
                %323 = vst [vmem:[%s301 + $0x90] sm:$0xff] %v322
                %v324 = vld [vmem:[%s300 + $0x58] sm:$0xff]
                %325 = vst [vmem:[%s301 + $0x98] sm:$0xff] %v324
                %v326 = vld [vmem:[%s300 + $0x60] sm:$0xff]
                %327 = vst [vmem:[%s301 + $0xc0] sm:$0xff] %v326
                %v328 = vld [vmem:[%s300 + $0x68] sm:$0xff]
                %329 = vst [vmem:[%s301 + $0xc8] sm:$0xff] %v328
                %v330 = vld [vmem:[%s300 + $0x70] sm:$0xff]
                %331 = vst [vmem:[%s301 + $0xd0] sm:$0xff] %v330
                %v332 = vld [vmem:[%s300 + $0x78] sm:$0xff]
                %333 = vst [vmem:[%s301 + $0xd8] sm:$0xff] %v332
              $region45: #{autoencoder_forward.9} parent=39 // loop_footer
                %s299 = sadd.s32 1, %s295
              $region46: #{autoencoder_forward.9} parent=39 // loop_footer_branch
                %294 = sbr.rel target = $region42
              $region47: #{autoencoder_forward.9} parent=39 // loop_exit
                _
            $region40: #{autoencoder_forward.9} parent=35 // pred_fallthru
              _
            // Predicated region
            $region48: #{autoencoder_forward.9} parent=35 // pred_check
              _
            $region49: #{autoencoder_forward.9} parent=35 // pred_check_branch
              %335 = sbr.rel target = $region51
            $region50: #{autoencoder_forward.9} parent=35 // pred_region
              _
            $region51: #{autoencoder_forward.9} parent=35 // pred_fallthru
              _
          $region36: #{autoencoder_forward.9} parent=31 // pred_fallthru
            _
          %336 = vnop
        $region32: #{autoencoder_forward.9} parent=27 // pred_fallthru
          _
      $region28: #{autoencoder_forward.9} parent=5 // pred_fallthru
        _
      %p337 = scmp.le.s32.totalorder 2, %s8
      // Predicated region
      $region52: #{autoencoder_forward.9} parent=5 // pred_check
        %p338 = pneg %p337
      $region53: #{autoencoder_forward.9} parent=5 // pred_check_branch
        %340 = sbr.rel (%p338) target = $region55
      $region54: #{autoencoder_forward.9} parent=5 // pred_region
        %s341 = ssub.s32 %s8, 2
        // Predicated region
        $region56: #{autoencoder_forward.9} parent=54 // pred_check
          %p342 = pneg %p84
        $region57: #{autoencoder_forward.9} parent=54 // pred_check_branch
          %344 = sbr.rel (%p342) target = $region59
        $region58: #{autoencoder_forward.9} parent=54 // pred_region
          %s345 = sand.u32 %s69, 1
          %s346 = sand.u32 %s69, 1
          %s347 = smul.addr %s346, 128
          %s348 = scalar_lea.vmem [#allocation2], %s347
        $region59: #{autoencoder_forward.9} parent=54 // pred_fallthru
          _
      $region55: #{autoencoder_forward.9} parent=5 // pred_fallthru
        _
    $region6: #{autoencoder_forward.9} parent=1 // loop_footer
      %s12 = sadd.s32 1, %s8
    $region7: #{autoencoder_forward.9} parent=1 // loop_footer_branch
      %7 = sbr.rel target = $region3
    $region8: #{autoencoder_forward.9} parent=1 // loop_exit
      _

</llo_original>
